<compile_context>
chip_gen: v7x
topology: tpu7x:2x2x1
jax: 0.10.0
libtpu: 0.0.40
codegen_flags: <defaults>
</compile_context>

<pallas_src>
import jax
import jax.numpy as jnp
from jax.experimental import pallas as pl
from jax.experimental.pallas import tpu as pltpu

# Everything is tiny (<1 MiB total) -> whole arrays live in VMEM.
VMEM_SPEC = pl.BlockSpec(memory_space=pltpu.MemorySpace.VMEM)


# ---------------------------------------------------------------------------
# In-kernel helpers (pure jnp, traced inside the fused kernel)
# ---------------------------------------------------------------------------

def _lstm_cell(gx_t, h, c, whh_t):
    """One LSTM step. gx_t: (B, 4H) precomputed x-projection (+bias);
    h, c: (B, H); whh_t: (H, 4H) pre-transposed recurrent weights."""
    H = h.shape[-1]
    gates = gx_t + jnp.dot(h, whh_t, preferred_element_type=jnp.float32)
    # PyTorch gate order: input, forget, cell(g), output.
    i = jax.nn.sigmoid(gates[:, 0 * H:1 * H])
    f = jax.nn.sigmoid(gates[:, 1 * H:2 * H])
    g = jnp.tanh(gates[:, 2 * H:3 * H])
    o = jax.nn.sigmoid(gates[:, 3 * H:4 * H])
    c_new = f * c + i * g
    h_new = o * jnp.tanh(c_new)
    return h_new, c_new


def _bilstm_layer(x, wih_cat, b_cat, whh_f, whh_b):
    """Bidirectional LSTM layer, both directions in one unrolled loop.
    x: (B, T, Din); wih_cat: (Din, 8H) = [fwd | bwd]; b_cat: (1, 8H);
    whh_f / whh_b: (H, 4H)."""
    B, T, Din = x.shape
    H = whh_f.shape[0]
    x2 = x.reshape(B * T, Din)
    # One hoisted lane-dense input projection for BOTH directions.
    gx = (jnp.dot(x2, wih_cat, preferred_element_type=jnp.float32)
          + b_cat).reshape(B, T, 8 * H)
    gx_f = gx[..., :4 * H]            # aligned 128-lane split
    gx_b = gx[..., 4 * H:]

    h_f = jnp.zeros((B, H), jnp.float32)
    c_f = jnp.zeros((B, H), jnp.float32)
    h_b = jnp.zeros((B, H), jnp.float32)
    c_b = jnp.zeros((B, H), jnp.float32)
    outs_f, outs_b = [], []
    for t in range(T):                       # static unroll; T is small
        h_f, c_f = _lstm_cell(gx_f[:, t, :], h_f, c_f, whh_f)
        outs_f.append(h_f)
        tb = T - 1 - t                       # backward direction, no flips
        h_b, c_b = _lstm_cell(gx_b[:, tb, :], h_b, c_b, whh_b)
        outs_b.append(h_b)
    out_f = jnp.stack(outs_f, axis=1)                 # (B, T, H)
    out_b = jnp.stack(outs_b[::-1], axis=1)           # (B, T, H), time-aligned
    return jnp.concatenate([out_f, out_b], axis=-1)   # (B, T, 2H)


def _cross_attention_fc(x, wq_t, wk_t, wv_fc, fc_b):
    """Batched self cross-attention with the (bn_att + fc)-folded value path.
    x: (B, T, D); wq_t/wk_t: (D, D); wv_fc: (D, K) = Wv^T @ (bn_att*Wfc^T);
    fc_b: (1, K). NOTE: reference CrossAttention has NO 1/sqrt(d) scaling."""
    B, T, D = x.shape
    x2 = x.reshape(B * T, D)
    q = jnp.dot(x2, wq_t, preferred_element_type=jnp.float32).reshape(B, T, D)
    k = jnp.dot(x2, wk_t, preferred_element_type=jnp.float32).reshape(B, T, D)
    v = jnp.dot(x2, wv_fc, preferred_element_type=jnp.float32).reshape(B, T, -1)
    s = jnp.einsum('bqd,bkd->bqk', q, k, preferred_element_type=jnp.float32)
    s = s - jnp.max(s, axis=-1, keepdims=True)        # numerically safe softmax
    p = jnp.exp(s)
    denom = jnp.sum(p, axis=-1, keepdims=True)
    p = p * pl.reciprocal(denom, approx=True)
    ctx = jnp.einsum('bqk,bkd->bqd', p, v, preferred_element_type=jnp.float32)
    return ctx + fc_b                                  # (B, T, K)


# ---------------------------------------------------------------------------
# The single fused Pallas kernel
# ---------------------------------------------------------------------------

def _fused_forward_kernel(
    emb_ref,
    wih0_ref, b0_ref, whh_f0_ref, whh_b0_ref,
    wih1_ref, b1_ref, whh_f1_ref, whh_b1_ref,
    wq_ref, wk_ref, wv_fc_ref, fc_b_ref,
    out_ref,
):
    # bn_emb is already folded into the layer-0 input projection.
    x = emb_ref[...]                                              # (B, T, E)
    h1 = _bilstm_layer(x, wih0_ref[...], b0_ref[...],
                       whh_f0_ref[...], whh_b0_ref[...])
    # inter-layer dropout: identity (eval mode)
    h2 = _bilstm_layer(h1, wih1_ref[...], b1_ref[...],
                       whh_f1_ref[...], whh_b1_ref[...])
    # cross-attention with bn_att + fc folded into the value projection.
    out_ref[...] = _cross_attention_fc(h2, wq_ref[...], wk_ref[...],
                                       wv_fc_ref[...], fc_b_ref[...])


# ---------------------------------------------------------------------------
# Host-side parameter preparation (BN folding, fc folding, pre-transpose)
# ---------------------------------------------------------------------------

def prepare_params(params, eps=1e-5):
    g_e, be_e, m_e, v_e = params['bn_emb']
    scale_e = g_e / jnp.sqrt(v_e + eps)
    shift_e = be_e - m_e * scale_e
    g_a, be_a, m_a, v_a = params['bn_att']
    scale_a = g_a / jnp.sqrt(v_a + eps)
    shift_a = be_a - m_a * scale_a

    def fold_layer0(wp):
        # Fold the bn_emb affine (x*scale+shift) into W_ih / bias.
        w_ih, w_hh, b = wp
        wih_t = w_ih.T * scale_e[:, None]            # (E, 4H)
        bias = b + shift_e @ w_ih.T                  # (4H,)
        return wih_t, w_hh.T, bias

    def pre_layer1(wp):
        w_ih, w_hh, b = wp
        return w_ih.T, w_hh.T, b

    wih_f0, whh_f0, b_f0 = fold_layer0(params['lstm0']['fwd'])
    wih_b0, whh_b0, b_b0 = fold_layer0(params['lstm0']['bwd'])
    wih_f1, whh_f1, b_f1 = pre_layer1(params['lstm1']['fwd'])
    wih_b1, whh_b1, b_b1 = pre_layer1(params['lstm1']['bwd'])

    # Fuse fwd/bwd input projections into one lane-dense matmul per layer.
    wih0 = jnp.concatenate([wih_f0, wih_b0], axis=1)           # (E, 8H)
    b0 = jnp.concatenate([b_f0, b_b0]).reshape(1, -1)          # (1, 8H)
    wih1 = jnp.concatenate([wih_f1, wih_b1], axis=1)           # (2H, 8H)
    b1 = jnp.concatenate([b_f1, b_b1]).reshape(1, -1)          # (1, 8H)

    # Fold bn_att into the final linear: (att*scale+shift) @ Wfc^T + bfc,
    # then fold that linear into the attention value projection.
    fc_wT = params['fc_w'].T * scale_a[:, None]                # (D, K)
    fc_b = params['fc_b'] + shift_a @ params['fc_w'].T         # (K,)
    wv_fc = params['wv'].T @ fc_wT                             # (D, K)

    return (wih0, b0, whh_f0, whh_b0,
            wih1, b1, whh_f1, whh_b1,
            params['wq'].T, params['wk'].T, wv_fc, fc_b.reshape(1, -1))


def forward(params, x_ids):
    # Embedding lookup (gather) stays in plain JAX glue.
    # TODO(synk): data-dependent gather has no tidy rectangular BlockSpec;
    # kept as jnp.take outside the fused kernel.
    emb = jnp.take(params['embedding'], x_ids, axis=0)            # (B, T, E)
    prepped = prepare_params(params)
    B, T, _ = emb.shape
    K = prepped[-1].shape[-1]
    args = (emb,) + prepped
    return pl.pallas_call(
        _fused_forward_kernel,
        out_shape=jax.ShapeDtypeStruct((B, T, K), jnp.float32),
        in_specs=[VMEM_SPEC] * len(args),
        out_specs=VMEM_SPEC,
    )(*args)


# ---------------------------------------------------------------------------
# Deterministic parameter init (shapes follow the PyTorch module __init__)
# ---------------------------------------------------------------------------

def init_params(key, vocab_size, tagset_size, embedding_dim, hidden_dim):
    keys = iter(jax.random.split(key, 32))

    def u(shape, scale=0.1):
        return jax.random.uniform(next(keys), shape, jnp.float32, -scale, scale)

    H = hidden_dim

    def lstm_dir(in_dim):
        w_ih = u((4 * H, in_dim))
        w_hh = u((4 * H, H))
        b = u((4 * H,)) + u((4 * H,))   # b_ih + b_hh combined
        return (w_ih, w_hh, b)

    return {
        'embedding': jax.random.normal(next(keys),
                                       (vocab_size, embedding_dim), jnp.float32),
        'bn_emb': (u((embedding_dim,)) + 1.0,   # gamma
                   u((embedding_dim,)),         # beta
                   u((embedding_dim,)),         # running_mean
                   u((embedding_dim,)) + 1.0),  # running_var (>0)
        'lstm0': {'fwd': lstm_dir(embedding_dim), 'bwd': lstm_dir(embedding_dim)},
        'lstm1': {'fwd': lstm_dir(2 * H), 'bwd': lstm_dir(2 * H)},
        'wq': u((2 * H, 2 * H)),
        'wk': u((2 * H, 2 * H)),
        'wv': u((2 * H, 2 * H)),
        'bn_att': (u((2 * H,)) + 1.0, u((2 * H,)), u((2 * H,)), u((2 * H,)) + 1.0),
        'fc_w': u((tagset_size, 2 * H)),
        'fc_b': u((tagset_size,)),
    }


if __name__ == "__main__":
    VOCAB, TAGSET, EMB, HID = 50, 7, 32, 32
    B, T = 2, 8
    key = jax.random.PRNGKey(0)
    pkey, xkey = jax.random.split(key)
    params = init_params(pkey, VOCAB, TAGSET, EMB, HID)
    x_ids = jax.random.randint(xkey, (B, T), 0, VOCAB, dtype=jnp.int32)

    out = jax.jit(forward)(params, x_ids)
    out = jax.block_until_ready(out)
    assert out.shape == (B, T, TAGSET), out.shape
    assert bool(jnp.all(jnp.isfinite(out)))
    print("KERNEL_OK")
</pallas_src>

<mosaic_0001>
module attributes {stable_mosaic.version = 11 : i64} {
  func.func @_fused_forward_kernel(%arg0: memref<2x8x32xf32, #tpu.memory_space<vmem>>, %arg1: memref<32x256xf32, #tpu.memory_space<vmem>>, %arg2: memref<1x256xf32, #tpu.memory_space<vmem>>, %arg3: memref<32x128xf32, #tpu.memory_space<vmem>>, %arg4: memref<32x128xf32, #tpu.memory_space<vmem>>, %arg5: memref<64x256xf32, #tpu.memory_space<vmem>>, %arg6: memref<1x256xf32, #tpu.memory_space<vmem>>, %arg7: memref<32x128xf32, #tpu.memory_space<vmem>>, %arg8: memref<32x128xf32, #tpu.memory_space<vmem>>, %arg9: memref<64x64xf32, #tpu.memory_space<vmem>>, %arg10: memref<64x64xf32, #tpu.memory_space<vmem>>, %arg11: memref<64x7xf32, #tpu.memory_space<vmem>>, %arg12: memref<1x7xf32, #tpu.memory_space<vmem>>, %arg13: memref<2x8x7xf32, #tpu.memory_space<vmem>>) attributes {dimension_semantics = [], scalar_prefetch = 0 : i64, scratch_operands = 0 : i64, tpu.core_type = #tpu.core_type<tc>} {
    %c0 = arith.constant 0 : index
    %c0_0 = arith.constant 0 : index
    %c0_1 = arith.constant 0 : index
    %0 = vector.load %arg0[%c0, %c0_0, %c0_1] : memref<2x8x32xf32, #tpu.memory_space<vmem>>, vector<2x8x32xf32>
    %c0_2 = arith.constant 0 : index
    %c0_3 = arith.constant 0 : index
    %1 = vector.load %arg1[%c0_2, %c0_3] : memref<32x256xf32, #tpu.memory_space<vmem>>, vector<32x256xf32>
    %c0_4 = arith.constant 0 : index
    %c0_5 = arith.constant 0 : index
    %2 = vector.load %arg2[%c0_4, %c0_5] : memref<1x256xf32, #tpu.memory_space<vmem>>, vector<1x256xf32>
    %c0_6 = arith.constant 0 : index
    %c0_7 = arith.constant 0 : index
    %3 = vector.load %arg3[%c0_6, %c0_7] : memref<32x128xf32, #tpu.memory_space<vmem>>, vector<32x128xf32>
    %c0_8 = arith.constant 0 : index
    %c0_9 = arith.constant 0 : index
    %4 = vector.load %arg4[%c0_8, %c0_9] : memref<32x128xf32, #tpu.memory_space<vmem>>, vector<32x128xf32>
    %5 = vector.shape_cast %0 : vector<2x8x32xf32> to vector<16x32xf32>
    %cst = arith.constant dense<0.000000e+00> : vector<16x256xf32>
    %6 = tpu.matmul %5, %1, %cst {dimension_numbers = #tpu.dot_dimension_numbers<[1], [0], [0], [1], [0, 0, 1, 1], [], []>} : vector<16x32xf32>, vector<32x256xf32>, vector<16x256xf32> -> vector<16x256xf32>
    %7 = vector.broadcast %2 : vector<1x256xf32> to vector<16x256xf32>
    %8 = arith.addf %6, %7 : vector<16x256xf32>
    %9 = vector.shape_cast %8 : vector<16x256xf32> to vector<2x8x256xf32>
    %10 = vector.extract_strided_slice %9 {offsets = [0, 0, 0], sizes = [2, 8, 128], strides = [1, 1, 1]} : vector<2x8x256xf32> to vector<2x8x128xf32>
    %11 = vector.extract_strided_slice %9 {offsets = [0, 0, 128], sizes = [2, 8, 128], strides = [1, 1, 1]} : vector<2x8x256xf32> to vector<2x8x128xf32>
    %cst_10 = arith.constant 0.000000e+00 : f32
    %12 = vector.broadcast %cst_10 : f32 to vector<2x32xf32>
    %cst_11 = arith.constant 0.000000e+00 : f32
    %13 = vector.broadcast %cst_11 : f32 to vector<2x32xf32>
    %cst_12 = arith.constant 0.000000e+00 : f32
    %14 = vector.broadcast %cst_12 : f32 to vector<2x32xf32>
    %cst_13 = arith.constant 0.000000e+00 : f32
    %15 = vector.broadcast %cst_13 : f32 to vector<2x32xf32>
    %16 = vector.extract_strided_slice %10 {offsets = [0, 0, 0], sizes = [2, 1, 128], strides = [1, 1, 1]} : vector<2x8x128xf32> to vector<2x1x128xf32>
    %17 = vector.shape_cast %16 : vector<2x1x128xf32> to vector<2x128xf32>
    %cst_14 = arith.constant dense<0.000000e+00> : vector<2x128xf32>
    %18 = tpu.matmul %12, %3, %cst_14 {dimension_numbers = #tpu.dot_dimension_numbers<[1], [0], [0], [1], [0, 0, 1, 1], [], []>} : vector<2x32xf32>, vector<32x128xf32>, vector<2x128xf32> -> vector<2x128xf32>
    %19 = arith.addf %17, %18 : vector<2x128xf32>
    %20 = vector.extract_strided_slice %19 {offsets = [0, 0], sizes = [2, 32], strides = [1, 1]} : vector<2x128xf32> to vector<2x32xf32>
    %21 = arith.negf %20 : vector<2x32xf32>
    %22 = math.exp %21 : vector<2x32xf32>
    %cst_15 = arith.constant 1.000000e+00 : f32
    %23 = vector.broadcast %cst_15 : f32 to vector<2x32xf32>
    %24 = arith.addf %23, %22 : vector<2x32xf32>
    %25 = arith.divf %23, %24 : vector<2x32xf32>
    %26 = vector.extract_strided_slice %19 {offsets = [0, 32], sizes = [2, 32], strides = [1, 1]} : vector<2x128xf32> to vector<2x32xf32>
    %27 = arith.negf %26 : vector<2x32xf32>
    %28 = math.exp %27 : vector<2x32xf32>
    %cst_16 = arith.constant 1.000000e+00 : f32
    %29 = vector.broadcast %cst_16 : f32 to vector<2x32xf32>
    %30 = arith.addf %29, %28 : vector<2x32xf32>
    %31 = arith.divf %29, %30 : vector<2x32xf32>
    %32 = vector.extract_strided_slice %19 {offsets = [0, 64], sizes = [2, 32], strides = [1, 1]} : vector<2x128xf32> to vector<2x32xf32>
    %33 = math.tanh %32 : vector<2x32xf32>
    %34 = vector.extract_strided_slice %19 {offsets = [0, 96], sizes = [2, 32], strides = [1, 1]} : vector<2x128xf32> to vector<2x32xf32>
    %35 = arith.negf %34 : vector<2x32xf32>
    %36 = math.exp %35 : vector<2x32xf32>
    %cst_17 = arith.constant 1.000000e+00 : f32
    %37 = vector.broadcast %cst_17 : f32 to vector<2x32xf32>
    %38 = arith.addf %37, %36 : vector<2x32xf32>
    %39 = arith.divf %37, %38 : vector<2x32xf32>
    %40 = arith.mulf %31, %13 : vector<2x32xf32>
    %41 = arith.mulf %25, %33 : vector<2x32xf32>
    %42 = arith.addf %40, %41 : vector<2x32xf32>
    %43 = math.tanh %42 : vector<2x32xf32>
    %44 = arith.mulf %39, %43 : vector<2x32xf32>
    %45 = vector.extract_strided_slice %11 {offsets = [0, 7, 0], sizes = [2, 1, 128], strides = [1, 1, 1]} : vector<2x8x128xf32> to vector<2x1x128xf32>
    %46 = vector.shape_cast %45 : vector<2x1x128xf32> to vector<2x128xf32>
    %cst_18 = arith.constant dense<0.000000e+00> : vector<2x128xf32>
    %47 = tpu.matmul %14, %4, %cst_18 {dimension_numbers = #tpu.dot_dimension_numbers<[1], [0], [0], [1], [0, 0, 1, 1], [], []>} : vector<2x32xf32>, vector<32x128xf32>, vector<2x128xf32> -> vector<2x128xf32>
    %48 = arith.addf %46, %47 : vector<2x128xf32>
    %49 = vector.extract_strided_slice %48 {offsets = [0, 0], sizes = [2, 32], strides = [1, 1]} : vector<2x128xf32> to vector<2x32xf32>
    %50 = arith.negf %49 : vector<2x32xf32>
    %51 = math.exp %50 : vector<2x32xf32>
    %cst_19 = arith.constant 1.000000e+00 : f32
    %52 = vector.broadcast %cst_19 : f32 to vector<2x32xf32>
    %53 = arith.addf %52, %51 : vector<2x32xf32>
    %54 = arith.divf %52, %53 : vector<2x32xf32>
    %55 = vector.extract_strided_slice %48 {offsets = [0, 32], sizes = [2, 32], strides = [1, 1]} : vector<2x128xf32> to vector<2x32xf32>
    %56 = arith.negf %55 : vector<2x32xf32>
    %57 = math.exp %56 : vector<2x32xf32>
    %cst_20 = arith.constant 1.000000e+00 : f32
    %58 = vector.broadcast %cst_20 : f32 to vector<2x32xf32>
    %59 = arith.addf %58, %57 : vector<2x32xf32>
    %60 = arith.divf %58, %59 : vector<2x32xf32>
    %61 = vector.extract_strided_slice %48 {offsets = [0, 64], sizes = [2, 32], strides = [1, 1]} : vector<2x128xf32> to vector<2x32xf32>
    %62 = math.tanh %61 : vector<2x32xf32>
    %63 = vector.extract_strided_slice %48 {offsets = [0, 96], sizes = [2, 32], strides = [1, 1]} : vector<2x128xf32> to vector<2x32xf32>
    %64 = arith.negf %63 : vector<2x32xf32>
    %65 = math.exp %64 : vector<2x32xf32>
    %cst_21 = arith.constant 1.000000e+00 : f32
    %66 = vector.broadcast %cst_21 : f32 to vector<2x32xf32>
    %67 = arith.addf %66, %65 : vector<2x32xf32>
    %68 = arith.divf %66, %67 : vector<2x32xf32>
    %69 = arith.mulf %60, %15 : vector<2x32xf32>
    %70 = arith.mulf %54, %62 : vector<2x32xf32>
    %71 = arith.addf %69, %70 : vector<2x32xf32>
    %72 = math.tanh %71 : vector<2x32xf32>
    %73 = arith.mulf %68, %72 : vector<2x32xf32>
    %74 = vector.extract_strided_slice %10 {offsets = [0, 1, 0], sizes = [2, 1, 128], strides = [1, 1, 1]} : vector<2x8x128xf32> to vector<2x1x128xf32>
    %75 = vector.shape_cast %74 : vector<2x1x128xf32> to vector<2x128xf32>
    %cst_22 = arith.constant dense<0.000000e+00> : vector<2x128xf32>
    %76 = tpu.matmul %44, %3, %cst_22 {dimension_numbers = #tpu.dot_dimension_numbers<[1], [0], [0], [1], [0, 0, 1, 1], [], []>} : vector<2x32xf32>, vector<32x128xf32>, vector<2x128xf32> -> vector<2x128xf32>
    %77 = arith.addf %75, %76 : vector<2x128xf32>
    %78 = vector.extract_strided_slice %77 {offsets = [0, 0], sizes = [2, 32], strides = [1, 1]} : vector<2x128xf32> to vector<2x32xf32>
    %79 = arith.negf %78 : vector<2x32xf32>
    %80 = math.exp %79 : vector<2x32xf32>
    %cst_23 = arith.constant 1.000000e+00 : f32
    %81 = vector.broadcast %cst_23 : f32 to vector<2x32xf32>
    %82 = arith.addf %81, %80 : vector<2x32xf32>
    %83 = arith.divf %81, %82 : vector<2x32xf32>
    %84 = vector.extract_strided_slice %77 {offsets = [0, 32], sizes = [2, 32], strides = [1, 1]} : vector<2x128xf32> to vector<2x32xf32>
    %85 = arith.negf %84 : vector<2x32xf32>
    %86 = math.exp %85 : vector<2x32xf32>
    %cst_24 = arith.constant 1.000000e+00 : f32
    %87 = vector.broadcast %cst_24 : f32 to vector<2x32xf32>
    %88 = arith.addf %87, %86 : vector<2x32xf32>
    %89 = arith.divf %87, %88 : vector<2x32xf32>
    %90 = vector.extract_strided_slice %77 {offsets = [0, 64], sizes = [2, 32], strides = [1, 1]} : vector<2x128xf32> to vector<2x32xf32>
    %91 = math.tanh %90 : vector<2x32xf32>
    %92 = vector.extract_strided_slice %77 {offsets = [0, 96], sizes = [2, 32], strides = [1, 1]} : vector<2x128xf32> to vector<2x32xf32>
    %93 = arith.negf %92 : vector<2x32xf32>
    %94 = math.exp %93 : vector<2x32xf32>
    %cst_25 = arith.constant 1.000000e+00 : f32
    %95 = vector.broadcast %cst_25 : f32 to vector<2x32xf32>
    %96 = arith.addf %95, %94 : vector<2x32xf32>
    %97 = arith.divf %95, %96 : vector<2x32xf32>
    %98 = arith.mulf %89, %42 : vector<2x32xf32>
    %99 = arith.mulf %83, %91 : vector<2x32xf32>
    %100 = arith.addf %98, %99 : vector<2x32xf32>
    %101 = math.tanh %100 : vector<2x32xf32>
    %102 = arith.mulf %97, %101 : vector<2x32xf32>
    %103 = vector.extract_strided_slice %11 {offsets = [0, 6, 0], sizes = [2, 1, 128], strides = [1, 1, 1]} : vector<2x8x128xf32> to vector<2x1x128xf32>
    %104 = vector.shape_cast %103 : vector<2x1x128xf32> to vector<2x128xf32>
    %cst_26 = arith.constant dense<0.000000e+00> : vector<2x128xf32>
    %105 = tpu.matmul %73, %4, %cst_26 {dimension_numbers = #tpu.dot_dimension_numbers<[1], [0], [0], [1], [0, 0, 1, 1], [], []>} : vector<2x32xf32>, vector<32x128xf32>, vector<2x128xf32> -> vector<2x128xf32>
    %106 = arith.addf %104, %105 : vector<2x128xf32>
    %107 = vector.extract_strided_slice %106 {offsets = [0, 0], sizes = [2, 32], strides = [1, 1]} : vector<2x128xf32> to vector<2x32xf32>
    %108 = arith.negf %107 : vector<2x32xf32>
    %109 = math.exp %108 : vector<2x32xf32>
    %cst_27 = arith.constant 1.000000e+00 : f32
    %110 = vector.broadcast %cst_27 : f32 to vector<2x32xf32>
    %111 = arith.addf %110, %109 : vector<2x32xf32>
    %112 = arith.divf %110, %111 : vector<2x32xf32>
    %113 = vector.extract_strided_slice %106 {offsets = [0, 32], sizes = [2, 32], strides = [1, 1]} : vector<2x128xf32> to vector<2x32xf32>
    %114 = arith.negf %113 : vector<2x32xf32>
    %115 = math.exp %114 : vector<2x32xf32>
    %cst_28 = arith.constant 1.000000e+00 : f32
    %116 = vector.broadcast %cst_28 : f32 to vector<2x32xf32>
    %117 = arith.addf %116, %115 : vector<2x32xf32>
    %118 = arith.divf %116, %117 : vector<2x32xf32>
    %119 = vector.extract_strided_slice %106 {offsets = [0, 64], sizes = [2, 32], strides = [1, 1]} : vector<2x128xf32> to vector<2x32xf32>
    %120 = math.tanh %119 : vector<2x32xf32>
    %121 = vector.extract_strided_slice %106 {offsets = [0, 96], sizes = [2, 32], strides = [1, 1]} : vector<2x128xf32> to vector<2x32xf32>
    %122 = arith.negf %121 : vector<2x32xf32>
    %123 = math.exp %122 : vector<2x32xf32>
    %cst_29 = arith.constant 1.000000e+00 : f32
    %124 = vector.broadcast %cst_29 : f32 to vector<2x32xf32>
    %125 = arith.addf %124, %123 : vector<2x32xf32>
    %126 = arith.divf %124, %125 : vector<2x32xf32>
    %127 = arith.mulf %118, %71 : vector<2x32xf32>
    %128 = arith.mulf %112, %120 : vector<2x32xf32>
    %129 = arith.addf %127, %128 : vector<2x32xf32>
    %130 = math.tanh %129 : vector<2x32xf32>
    %131 = arith.mulf %126, %130 : vector<2x32xf32>
    %132 = vector.extract_strided_slice %10 {offsets = [0, 2, 0], sizes = [2, 1, 128], strides = [1, 1, 1]} : vector<2x8x128xf32> to vector<2x1x128xf32>
    %133 = vector.shape_cast %132 : vector<2x1x128xf32> to vector<2x128xf32>
    %cst_30 = arith.constant dense<0.000000e+00> : vector<2x128xf32>
    %134 = tpu.matmul %102, %3, %cst_30 {dimension_numbers = #tpu.dot_dimension_numbers<[1], [0], [0], [1], [0, 0, 1, 1], [], []>} : vector<2x32xf32>, vector<32x128xf32>, vector<2x128xf32> -> vector<2x128xf32>
    %135 = arith.addf %133, %134 : vector<2x128xf32>
    %136 = vector.extract_strided_slice %135 {offsets = [0, 0], sizes = [2, 32], strides = [1, 1]} : vector<2x128xf32> to vector<2x32xf32>
    %137 = arith.negf %136 : vector<2x32xf32>
    %138 = math.exp %137 : vector<2x32xf32>
    %cst_31 = arith.constant 1.000000e+00 : f32
    %139 = vector.broadcast %cst_31 : f32 to vector<2x32xf32>
    %140 = arith.addf %139, %138 : vector<2x32xf32>
    %141 = arith.divf %139, %140 : vector<2x32xf32>
    %142 = vector.extract_strided_slice %135 {offsets = [0, 32], sizes = [2, 32], strides = [1, 1]} : vector<2x128xf32> to vector<2x32xf32>
    %143 = arith.negf %142 : vector<2x32xf32>
    %144 = math.exp %143 : vector<2x32xf32>
    %cst_32 = arith.constant 1.000000e+00 : f32
    %145 = vector.broadcast %cst_32 : f32 to vector<2x32xf32>
    %146 = arith.addf %145, %144 : vector<2x32xf32>
    %147 = arith.divf %145, %146 : vector<2x32xf32>
    %148 = vector.extract_strided_slice %135 {offsets = [0, 64], sizes = [2, 32], strides = [1, 1]} : vector<2x128xf32> to vector<2x32xf32>
    %149 = math.tanh %148 : vector<2x32xf32>
    %150 = vector.extract_strided_slice %135 {offsets = [0, 96], sizes = [2, 32], strides = [1, 1]} : vector<2x128xf32> to vector<2x32xf32>
    %151 = arith.negf %150 : vector<2x32xf32>
    %152 = math.exp %151 : vector<2x32xf32>
    %cst_33 = arith.constant 1.000000e+00 : f32
    %153 = vector.broadcast %cst_33 : f32 to vector<2x32xf32>
    %154 = arith.addf %153, %152 : vector<2x32xf32>
    %155 = arith.divf %153, %154 : vector<2x32xf32>
    %156 = arith.mulf %147, %100 : vector<2x32xf32>
    %157 = arith.mulf %141, %149 : vector<2x32xf32>
    %158 = arith.addf %156, %157 : vector<2x32xf32>
    %159 = math.tanh %158 : vector<2x32xf32>
    %160 = arith.mulf %155, %159 : vector<2x32xf32>
    %161 = vector.extract_strided_slice %11 {offsets = [0, 5, 0], sizes = [2, 1, 128], strides = [1, 1, 1]} : vector<2x8x128xf32> to vector<2x1x128xf32>
    %162 = vector.shape_cast %161 : vector<2x1x128xf32> to vector<2x128xf32>
    %cst_34 = arith.constant dense<0.000000e+00> : vector<2x128xf32>
    %163 = tpu.matmul %131, %4, %cst_34 {dimension_numbers = #tpu.dot_dimension_numbers<[1], [0], [0], [1], [0, 0, 1, 1], [], []>} : vector<2x32xf32>, vector<32x128xf32>, vector<2x128xf32> -> vector<2x128xf32>
    %164 = arith.addf %162, %163 : vector<2x128xf32>
    %165 = vector.extract_strided_slice %164 {offsets = [0, 0], sizes = [2, 32], strides = [1, 1]} : vector<2x128xf32> to vector<2x32xf32>
    %166 = arith.negf %165 : vector<2x32xf32>
    %167 = math.exp %166 : vector<2x32xf32>
    %cst_35 = arith.constant 1.000000e+00 : f32
    %168 = vector.broadcast %cst_35 : f32 to vector<2x32xf32>
    %169 = arith.addf %168, %167 : vector<2x32xf32>
    %170 = arith.divf %168, %169 : vector<2x32xf32>
    %171 = vector.extract_strided_slice %164 {offsets = [0, 32], sizes = [2, 32], strides = [1, 1]} : vector<2x128xf32> to vector<2x32xf32>
    %172 = arith.negf %171 : vector<2x32xf32>
    %173 = math.exp %172 : vector<2x32xf32>
    %cst_36 = arith.constant 1.000000e+00 : f32
    %174 = vector.broadcast %cst_36 : f32 to vector<2x32xf32>
    %175 = arith.addf %174, %173 : vector<2x32xf32>
    %176 = arith.divf %174, %175 : vector<2x32xf32>
    %177 = vector.extract_strided_slice %164 {offsets = [0, 64], sizes = [2, 32], strides = [1, 1]} : vector<2x128xf32> to vector<2x32xf32>
    %178 = math.tanh %177 : vector<2x32xf32>
    %179 = vector.extract_strided_slice %164 {offsets = [0, 96], sizes = [2, 32], strides = [1, 1]} : vector<2x128xf32> to vector<2x32xf32>
    %180 = arith.negf %179 : vector<2x32xf32>
    %181 = math.exp %180 : vector<2x32xf32>
    %cst_37 = arith.constant 1.000000e+00 : f32
    %182 = vector.broadcast %cst_37 : f32 to vector<2x32xf32>
    %183 = arith.addf %182, %181 : vector<2x32xf32>
    %184 = arith.divf %182, %183 : vector<2x32xf32>
    %185 = arith.mulf %176, %129 : vector<2x32xf32>
    %186 = arith.mulf %170, %178 : vector<2x32xf32>
    %187 = arith.addf %185, %186 : vector<2x32xf32>
    %188 = math.tanh %187 : vector<2x32xf32>
    %189 = arith.mulf %184, %188 : vector<2x32xf32>
    %190 = vector.extract_strided_slice %10 {offsets = [0, 3, 0], sizes = [2, 1, 128], strides = [1, 1, 1]} : vector<2x8x128xf32> to vector<2x1x128xf32>
    %191 = vector.shape_cast %190 : vector<2x1x128xf32> to vector<2x128xf32>
    %cst_38 = arith.constant dense<0.000000e+00> : vector<2x128xf32>
    %192 = tpu.matmul %160, %3, %cst_38 {dimension_numbers = #tpu.dot_dimension_numbers<[1], [0], [0], [1], [0, 0, 1, 1], [], []>} : vector<2x32xf32>, vector<32x128xf32>, vector<2x128xf32> -> vector<2x128xf32>
    %193 = arith.addf %191, %192 : vector<2x128xf32>
    %194 = vector.extract_strided_slice %193 {offsets = [0, 0], sizes = [2, 32], strides = [1, 1]} : vector<2x128xf32> to vector<2x32xf32>
    %195 = arith.negf %194 : vector<2x32xf32>
    %196 = math.exp %195 : vector<2x32xf32>
    %cst_39 = arith.constant 1.000000e+00 : f32
    %197 = vector.broadcast %cst_39 : f32 to vector<2x32xf32>
    %198 = arith.addf %197, %196 : vector<2x32xf32>
    %199 = arith.divf %197, %198 : vector<2x32xf32>
    %200 = vector.extract_strided_slice %193 {offsets = [0, 32], sizes = [2, 32], strides = [1, 1]} : vector<2x128xf32> to vector<2x32xf32>
    %201 = arith.negf %200 : vector<2x32xf32>
    %202 = math.exp %201 : vector<2x32xf32>
    %cst_40 = arith.constant 1.000000e+00 : f32
    %203 = vector.broadcast %cst_40 : f32 to vector<2x32xf32>
    %204 = arith.addf %203, %202 : vector<2x32xf32>
    %205 = arith.divf %203, %204 : vector<2x32xf32>
    %206 = vector.extract_strided_slice %193 {offsets = [0, 64], sizes = [2, 32], strides = [1, 1]} : vector<2x128xf32> to vector<2x32xf32>
    %207 = math.tanh %206 : vector<2x32xf32>
    %208 = vector.extract_strided_slice %193 {offsets = [0, 96], sizes = [2, 32], strides = [1, 1]} : vector<2x128xf32> to vector<2x32xf32>
    %209 = arith.negf %208 : vector<2x32xf32>
    %210 = math.exp %209 : vector<2x32xf32>
    %cst_41 = arith.constant 1.000000e+00 : f32
    %211 = vector.broadcast %cst_41 : f32 to vector<2x32xf32>
    %212 = arith.addf %211, %210 : vector<2x32xf32>
    %213 = arith.divf %211, %212 : vector<2x32xf32>
    %214 = arith.mulf %205, %158 : vector<2x32xf32>
    %215 = arith.mulf %199, %207 : vector<2x32xf32>
    %216 = arith.addf %214, %215 : vector<2x32xf32>
    %217 = math.tanh %216 : vector<2x32xf32>
    %218 = arith.mulf %213, %217 : vector<2x32xf32>
    %219 = vector.extract_strided_slice %11 {offsets = [0, 4, 0], sizes = [2, 1, 128], strides = [1, 1, 1]} : vector<2x8x128xf32> to vector<2x1x128xf32>
    %220 = vector.shape_cast %219 : vector<2x1x128xf32> to vector<2x128xf32>
    %cst_42 = arith.constant dense<0.000000e+00> : vector<2x128xf32>
    %221 = tpu.matmul %189, %4, %cst_42 {dimension_numbers = #tpu.dot_dimension_numbers<[1], [0], [0], [1], [0, 0, 1, 1], [], []>} : vector<2x32xf32>, vector<32x128xf32>, vector<2x128xf32> -> vector<2x128xf32>
    %222 = arith.addf %220, %221 : vector<2x128xf32>
    %223 = vector.extract_strided_slice %222 {offsets = [0, 0], sizes = [2, 32], strides = [1, 1]} : vector<2x128xf32> to vector<2x32xf32>
    %224 = arith.negf %223 : vector<2x32xf32>
    %225 = math.exp %224 : vector<2x32xf32>
    %cst_43 = arith.constant 1.000000e+00 : f32
    %226 = vector.broadcast %cst_43 : f32 to vector<2x32xf32>
    %227 = arith.addf %226, %225 : vector<2x32xf32>
    %228 = arith.divf %226, %227 : vector<2x32xf32>
    %229 = vector.extract_strided_slice %222 {offsets = [0, 32], sizes = [2, 32], strides = [1, 1]} : vector<2x128xf32> to vector<2x32xf32>
    %230 = arith.negf %229 : vector<2x32xf32>
    %231 = math.exp %230 : vector<2x32xf32>
    %cst_44 = arith.constant 1.000000e+00 : f32
    %232 = vector.broadcast %cst_44 : f32 to vector<2x32xf32>
    %233 = arith.addf %232, %231 : vector<2x32xf32>
    %234 = arith.divf %232, %233 : vector<2x32xf32>
    %235 = vector.extract_strided_slice %222 {offsets = [0, 64], sizes = [2, 32], strides = [1, 1]} : vector<2x128xf32> to vector<2x32xf32>
    %236 = math.tanh %235 : vector<2x32xf32>
    %237 = vector.extract_strided_slice %222 {offsets = [0, 96], sizes = [2, 32], strides = [1, 1]} : vector<2x128xf32> to vector<2x32xf32>
    %238 = arith.negf %237 : vector<2x32xf32>
    %239 = math.exp %238 : vector<2x32xf32>
    %cst_45 = arith.constant 1.000000e+00 : f32
    %240 = vector.broadcast %cst_45 : f32 to vector<2x32xf32>
    %241 = arith.addf %240, %239 : vector<2x32xf32>
    %242 = arith.divf %240, %241 : vector<2x32xf32>
    %243 = arith.mulf %234, %187 : vector<2x32xf32>
    %244 = arith.mulf %228, %236 : vector<2x32xf32>
    %245 = arith.addf %243, %244 : vector<2x32xf32>
    %246 = math.tanh %245 : vector<2x32xf32>
    %247 = arith.mulf %242, %246 : vector<2x32xf32>
    %248 = vector.extract_strided_slice %10 {offsets = [0, 4, 0], sizes = [2, 1, 128], strides = [1, 1, 1]} : vector<2x8x128xf32> to vector<2x1x128xf32>
    %249 = vector.shape_cast %248 : vector<2x1x128xf32> to vector<2x128xf32>
    %cst_46 = arith.constant dense<0.000000e+00> : vector<2x128xf32>
    %250 = tpu.matmul %218, %3, %cst_46 {dimension_numbers = #tpu.dot_dimension_numbers<[1], [0], [0], [1], [0, 0, 1, 1], [], []>} : vector<2x32xf32>, vector<32x128xf32>, vector<2x128xf32> -> vector<2x128xf32>
    %251 = arith.addf %249, %250 : vector<2x128xf32>
    %252 = vector.extract_strided_slice %251 {offsets = [0, 0], sizes = [2, 32], strides = [1, 1]} : vector<2x128xf32> to vector<2x32xf32>
    %253 = arith.negf %252 : vector<2x32xf32>
    %254 = math.exp %253 : vector<2x32xf32>
    %cst_47 = arith.constant 1.000000e+00 : f32
    %255 = vector.broadcast %cst_47 : f32 to vector<2x32xf32>
    %256 = arith.addf %255, %254 : vector<2x32xf32>
    %257 = arith.divf %255, %256 : vector<2x32xf32>
    %258 = vector.extract_strided_slice %251 {offsets = [0, 32], sizes = [2, 32], strides = [1, 1]} : vector<2x128xf32> to vector<2x32xf32>
    %259 = arith.negf %258 : vector<2x32xf32>
    %260 = math.exp %259 : vector<2x32xf32>
    %cst_48 = arith.constant 1.000000e+00 : f32
    %261 = vector.broadcast %cst_48 : f32 to vector<2x32xf32>
    %262 = arith.addf %261, %260 : vector<2x32xf32>
    %263 = arith.divf %261, %262 : vector<2x32xf32>
    %264 = vector.extract_strided_slice %251 {offsets = [0, 64], sizes = [2, 32], strides = [1, 1]} : vector<2x128xf32> to vector<2x32xf32>
    %265 = math.tanh %264 : vector<2x32xf32>
    %266 = vector.extract_strided_slice %251 {offsets = [0, 96], sizes = [2, 32], strides = [1, 1]} : vector<2x128xf32> to vector<2x32xf32>
    %267 = arith.negf %266 : vector<2x32xf32>
    %268 = math.exp %267 : vector<2x32xf32>
    %cst_49 = arith.constant 1.000000e+00 : f32
    %269 = vector.broadcast %cst_49 : f32 to vector<2x32xf32>
    %270 = arith.addf %269, %268 : vector<2x32xf32>
    %271 = arith.divf %269, %270 : vector<2x32xf32>
    %272 = arith.mulf %263, %216 : vector<2x32xf32>
    %273 = arith.mulf %257, %265 : vector<2x32xf32>
    %274 = arith.addf %272, %273 : vector<2x32xf32>
    %275 = math.tanh %274 : vector<2x32xf32>
    %276 = arith.mulf %271, %275 : vector<2x32xf32>
    %277 = vector.extract_strided_slice %11 {offsets = [0, 3, 0], sizes = [2, 1, 128], strides = [1, 1, 1]} : vector<2x8x128xf32> to vector<2x1x128xf32>
    %278 = vector.shape_cast %277 : vector<2x1x128xf32> to vector<2x128xf32>
    %cst_50 = arith.constant dense<0.000000e+00> : vector<2x128xf32>
    %279 = tpu.matmul %247, %4, %cst_50 {dimension_numbers = #tpu.dot_dimension_numbers<[1], [0], [0], [1], [0, 0, 1, 1], [], []>} : vector<2x32xf32>, vector<32x128xf32>, vector<2x128xf32> -> vector<2x128xf32>
    %280 = arith.addf %278, %279 : vector<2x128xf32>
    %281 = vector.extract_strided_slice %280 {offsets = [0, 0], sizes = [2, 32], strides = [1, 1]} : vector<2x128xf32> to vector<2x32xf32>
    %282 = arith.negf %281 : vector<2x32xf32>
    %283 = math.exp %282 : vector<2x32xf32>
    %cst_51 = arith.constant 1.000000e+00 : f32
    %284 = vector.broadcast %cst_51 : f32 to vector<2x32xf32>
    %285 = arith.addf %284, %283 : vector<2x32xf32>
    %286 = arith.divf %284, %285 : vector<2x32xf32>
    %287 = vector.extract_strided_slice %280 {offsets = [0, 32], sizes = [2, 32], strides = [1, 1]} : vector<2x128xf32> to vector<2x32xf32>
    %288 = arith.negf %287 : vector<2x32xf32>
    %289 = math.exp %288 : vector<2x32xf32>
    %cst_52 = arith.constant 1.000000e+00 : f32
    %290 = vector.broadcast %cst_52 : f32 to vector<2x32xf32>
    %291 = arith.addf %290, %289 : vector<2x32xf32>
    %292 = arith.divf %290, %291 : vector<2x32xf32>
    %293 = vector.extract_strided_slice %280 {offsets = [0, 64], sizes = [2, 32], strides = [1, 1]} : vector<2x128xf32> to vector<2x32xf32>
    %294 = math.tanh %293 : vector<2x32xf32>
    %295 = vector.extract_strided_slice %280 {offsets = [0, 96], sizes = [2, 32], strides = [1, 1]} : vector<2x128xf32> to vector<2x32xf32>
    %296 = arith.negf %295 : vector<2x32xf32>
    %297 = math.exp %296 : vector<2x32xf32>
    %cst_53 = arith.constant 1.000000e+00 : f32
    %298 = vector.broadcast %cst_53 : f32 to vector<2x32xf32>
    %299 = arith.addf %298, %297 : vector<2x32xf32>
    %300 = arith.divf %298, %299 : vector<2x32xf32>
    %301 = arith.mulf %292, %245 : vector<2x32xf32>
    %302 = arith.mulf %286, %294 : vector<2x32xf32>
    %303 = arith.addf %301, %302 : vector<2x32xf32>
    %304 = math.tanh %303 : vector<2x32xf32>
    %305 = arith.mulf %300, %304 : vector<2x32xf32>
    %306 = vector.extract_strided_slice %10 {offsets = [0, 5, 0], sizes = [2, 1, 128], strides = [1, 1, 1]} : vector<2x8x128xf32> to vector<2x1x128xf32>
    %307 = vector.shape_cast %306 : vector<2x1x128xf32> to vector<2x128xf32>
    %cst_54 = arith.constant dense<0.000000e+00> : vector<2x128xf32>
    %308 = tpu.matmul %276, %3, %cst_54 {dimension_numbers = #tpu.dot_dimension_numbers<[1], [0], [0], [1], [0, 0, 1, 1], [], []>} : vector<2x32xf32>, vector<32x128xf32>, vector<2x128xf32> -> vector<2x128xf32>
    %309 = arith.addf %307, %308 : vector<2x128xf32>
    %310 = vector.extract_strided_slice %309 {offsets = [0, 0], sizes = [2, 32], strides = [1, 1]} : vector<2x128xf32> to vector<2x32xf32>
    %311 = arith.negf %310 : vector<2x32xf32>
    %312 = math.exp %311 : vector<2x32xf32>
    %cst_55 = arith.constant 1.000000e+00 : f32
    %313 = vector.broadcast %cst_55 : f32 to vector<2x32xf32>
    %314 = arith.addf %313, %312 : vector<2x32xf32>
    %315 = arith.divf %313, %314 : vector<2x32xf32>
    %316 = vector.extract_strided_slice %309 {offsets = [0, 32], sizes = [2, 32], strides = [1, 1]} : vector<2x128xf32> to vector<2x32xf32>
    %317 = arith.negf %316 : vector<2x32xf32>
    %318 = math.exp %317 : vector<2x32xf32>
    %cst_56 = arith.constant 1.000000e+00 : f32
    %319 = vector.broadcast %cst_56 : f32 to vector<2x32xf32>
    %320 = arith.addf %319, %318 : vector<2x32xf32>
    %321 = arith.divf %319, %320 : vector<2x32xf32>
    %322 = vector.extract_strided_slice %309 {offsets = [0, 64], sizes = [2, 32], strides = [1, 1]} : vector<2x128xf32> to vector<2x32xf32>
    %323 = math.tanh %322 : vector<2x32xf32>
    %324 = vector.extract_strided_slice %309 {offsets = [0, 96], sizes = [2, 32], strides = [1, 1]} : vector<2x128xf32> to vector<2x32xf32>
    %325 = arith.negf %324 : vector<2x32xf32>
    %326 = math.exp %325 : vector<2x32xf32>
    %cst_57 = arith.constant 1.000000e+00 : f32
    %327 = vector.broadcast %cst_57 : f32 to vector<2x32xf32>
    %328 = arith.addf %327, %326 : vector<2x32xf32>
    %329 = arith.divf %327, %328 : vector<2x32xf32>
    %330 = arith.mulf %321, %274 : vector<2x32xf32>
    %331 = arith.mulf %315, %323 : vector<2x32xf32>
    %332 = arith.addf %330, %331 : vector<2x32xf32>
    %333 = math.tanh %332 : vector<2x32xf32>
    %334 = arith.mulf %329, %333 : vector<2x32xf32>
    %335 = vector.extract_strided_slice %11 {offsets = [0, 2, 0], sizes = [2, 1, 128], strides = [1, 1, 1]} : vector<2x8x128xf32> to vector<2x1x128xf32>
    %336 = vector.shape_cast %335 : vector<2x1x128xf32> to vector<2x128xf32>
    %cst_58 = arith.constant dense<0.000000e+00> : vector<2x128xf32>
    %337 = tpu.matmul %305, %4, %cst_58 {dimension_numbers = #tpu.dot_dimension_numbers<[1], [0], [0], [1], [0, 0, 1, 1], [], []>} : vector<2x32xf32>, vector<32x128xf32>, vector<2x128xf32> -> vector<2x128xf32>
    %338 = arith.addf %336, %337 : vector<2x128xf32>
    %339 = vector.extract_strided_slice %338 {offsets = [0, 0], sizes = [2, 32], strides = [1, 1]} : vector<2x128xf32> to vector<2x32xf32>
    %340 = arith.negf %339 : vector<2x32xf32>
    %341 = math.exp %340 : vector<2x32xf32>
    %cst_59 = arith.constant 1.000000e+00 : f32
    %342 = vector.broadcast %cst_59 : f32 to vector<2x32xf32>
    %343 = arith.addf %342, %341 : vector<2x32xf32>
    %344 = arith.divf %342, %343 : vector<2x32xf32>
    %345 = vector.extract_strided_slice %338 {offsets = [0, 32], sizes = [2, 32], strides = [1, 1]} : vector<2x128xf32> to vector<2x32xf32>
    %346 = arith.negf %345 : vector<2x32xf32>
    %347 = math.exp %346 : vector<2x32xf32>
    %cst_60 = arith.constant 1.000000e+00 : f32
    %348 = vector.broadcast %cst_60 : f32 to vector<2x32xf32>
    %349 = arith.addf %348, %347 : vector<2x32xf32>
    %350 = arith.divf %348, %349 : vector<2x32xf32>
    %351 = vector.extract_strided_slice %338 {offsets = [0, 64], sizes = [2, 32], strides = [1, 1]} : vector<2x128xf32> to vector<2x32xf32>
    %352 = math.tanh %351 : vector<2x32xf32>
    %353 = vector.extract_strided_slice %338 {offsets = [0, 96], sizes = [2, 32], strides = [1, 1]} : vector<2x128xf32> to vector<2x32xf32>
    %354 = arith.negf %353 : vector<2x32xf32>
    %355 = math.exp %354 : vector<2x32xf32>
    %cst_61 = arith.constant 1.000000e+00 : f32
    %356 = vector.broadcast %cst_61 : f32 to vector<2x32xf32>
    %357 = arith.addf %356, %355 : vector<2x32xf32>
    %358 = arith.divf %356, %357 : vector<2x32xf32>
    %359 = arith.mulf %350, %303 : vector<2x32xf32>
    %360 = arith.mulf %344, %352 : vector<2x32xf32>
    %361 = arith.addf %359, %360 : vector<2x32xf32>
    %362 = math.tanh %361 : vector<2x32xf32>
    %363 = arith.mulf %358, %362 : vector<2x32xf32>
    %364 = vector.extract_strided_slice %10 {offsets = [0, 6, 0], sizes = [2, 1, 128], strides = [1, 1, 1]} : vector<2x8x128xf32> to vector<2x1x128xf32>
    %365 = vector.shape_cast %364 : vector<2x1x128xf32> to vector<2x128xf32>
    %cst_62 = arith.constant dense<0.000000e+00> : vector<2x128xf32>
    %366 = tpu.matmul %334, %3, %cst_62 {dimension_numbers = #tpu.dot_dimension_numbers<[1], [0], [0], [1], [0, 0, 1, 1], [], []>} : vector<2x32xf32>, vector<32x128xf32>, vector<2x128xf32> -> vector<2x128xf32>
    %367 = arith.addf %365, %366 : vector<2x128xf32>
    %368 = vector.extract_strided_slice %367 {offsets = [0, 0], sizes = [2, 32], strides = [1, 1]} : vector<2x128xf32> to vector<2x32xf32>
    %369 = arith.negf %368 : vector<2x32xf32>
    %370 = math.exp %369 : vector<2x32xf32>
    %cst_63 = arith.constant 1.000000e+00 : f32
    %371 = vector.broadcast %cst_63 : f32 to vector<2x32xf32>
    %372 = arith.addf %371, %370 : vector<2x32xf32>
    %373 = arith.divf %371, %372 : vector<2x32xf32>
    %374 = vector.extract_strided_slice %367 {offsets = [0, 32], sizes = [2, 32], strides = [1, 1]} : vector<2x128xf32> to vector<2x32xf32>
    %375 = arith.negf %374 : vector<2x32xf32>
    %376 = math.exp %375 : vector<2x32xf32>
    %cst_64 = arith.constant 1.000000e+00 : f32
    %377 = vector.broadcast %cst_64 : f32 to vector<2x32xf32>
    %378 = arith.addf %377, %376 : vector<2x32xf32>
    %379 = arith.divf %377, %378 : vector<2x32xf32>
    %380 = vector.extract_strided_slice %367 {offsets = [0, 64], sizes = [2, 32], strides = [1, 1]} : vector<2x128xf32> to vector<2x32xf32>
    %381 = math.tanh %380 : vector<2x32xf32>
    %382 = vector.extract_strided_slice %367 {offsets = [0, 96], sizes = [2, 32], strides = [1, 1]} : vector<2x128xf32> to vector<2x32xf32>
    %383 = arith.negf %382 : vector<2x32xf32>
    %384 = math.exp %383 : vector<2x32xf32>
    %cst_65 = arith.constant 1.000000e+00 : f32
    %385 = vector.broadcast %cst_65 : f32 to vector<2x32xf32>
    %386 = arith.addf %385, %384 : vector<2x32xf32>
    %387 = arith.divf %385, %386 : vector<2x32xf32>
    %388 = arith.mulf %379, %332 : vector<2x32xf32>
    %389 = arith.mulf %373, %381 : vector<2x32xf32>
    %390 = arith.addf %388, %389 : vector<2x32xf32>
    %391 = math.tanh %390 : vector<2x32xf32>
    %392 = arith.mulf %387, %391 : vector<2x32xf32>
    %393 = vector.extract_strided_slice %11 {offsets = [0, 1, 0], sizes = [2, 1, 128], strides = [1, 1, 1]} : vector<2x8x128xf32> to vector<2x1x128xf32>
    %394 = vector.shape_cast %393 : vector<2x1x128xf32> to vector<2x128xf32>
    %cst_66 = arith.constant dense<0.000000e+00> : vector<2x128xf32>
    %395 = tpu.matmul %363, %4, %cst_66 {dimension_numbers = #tpu.dot_dimension_numbers<[1], [0], [0], [1], [0, 0, 1, 1], [], []>} : vector<2x32xf32>, vector<32x128xf32>, vector<2x128xf32> -> vector<2x128xf32>
    %396 = arith.addf %394, %395 : vector<2x128xf32>
    %397 = vector.extract_strided_slice %396 {offsets = [0, 0], sizes = [2, 32], strides = [1, 1]} : vector<2x128xf32> to vector<2x32xf32>
    %398 = arith.negf %397 : vector<2x32xf32>
    %399 = math.exp %398 : vector<2x32xf32>
    %cst_67 = arith.constant 1.000000e+00 : f32
    %400 = vector.broadcast %cst_67 : f32 to vector<2x32xf32>
    %401 = arith.addf %400, %399 : vector<2x32xf32>
    %402 = arith.divf %400, %401 : vector<2x32xf32>
    %403 = vector.extract_strided_slice %396 {offsets = [0, 32], sizes = [2, 32], strides = [1, 1]} : vector<2x128xf32> to vector<2x32xf32>
    %404 = arith.negf %403 : vector<2x32xf32>
    %405 = math.exp %404 : vector<2x32xf32>
    %cst_68 = arith.constant 1.000000e+00 : f32
    %406 = vector.broadcast %cst_68 : f32 to vector<2x32xf32>
    %407 = arith.addf %406, %405 : vector<2x32xf32>
    %408 = arith.divf %406, %407 : vector<2x32xf32>
    %409 = vector.extract_strided_slice %396 {offsets = [0, 64], sizes = [2, 32], strides = [1, 1]} : vector<2x128xf32> to vector<2x32xf32>
    %410 = math.tanh %409 : vector<2x32xf32>
    %411 = vector.extract_strided_slice %396 {offsets = [0, 96], sizes = [2, 32], strides = [1, 1]} : vector<2x128xf32> to vector<2x32xf32>
    %412 = arith.negf %411 : vector<2x32xf32>
    %413 = math.exp %412 : vector<2x32xf32>
    %cst_69 = arith.constant 1.000000e+00 : f32
    %414 = vector.broadcast %cst_69 : f32 to vector<2x32xf32>
    %415 = arith.addf %414, %413 : vector<2x32xf32>
    %416 = arith.divf %414, %415 : vector<2x32xf32>
    %417 = arith.mulf %408, %361 : vector<2x32xf32>
    %418 = arith.mulf %402, %410 : vector<2x32xf32>
    %419 = arith.addf %417, %418 : vector<2x32xf32>
    %420 = math.tanh %419 : vector<2x32xf32>
    %421 = arith.mulf %416, %420 : vector<2x32xf32>
    %422 = vector.extract_strided_slice %10 {offsets = [0, 7, 0], sizes = [2, 1, 128], strides = [1, 1, 1]} : vector<2x8x128xf32> to vector<2x1x128xf32>
    %423 = vector.shape_cast %422 : vector<2x1x128xf32> to vector<2x128xf32>
    %cst_70 = arith.constant dense<0.000000e+00> : vector<2x128xf32>
    %424 = tpu.matmul %392, %3, %cst_70 {dimension_numbers = #tpu.dot_dimension_numbers<[1], [0], [0], [1], [0, 0, 1, 1], [], []>} : vector<2x32xf32>, vector<32x128xf32>, vector<2x128xf32> -> vector<2x128xf32>
    %425 = arith.addf %423, %424 : vector<2x128xf32>
    %426 = vector.extract_strided_slice %425 {offsets = [0, 0], sizes = [2, 32], strides = [1, 1]} : vector<2x128xf32> to vector<2x32xf32>
    %427 = arith.negf %426 : vector<2x32xf32>
    %428 = math.exp %427 : vector<2x32xf32>
    %cst_71 = arith.constant 1.000000e+00 : f32
    %429 = vector.broadcast %cst_71 : f32 to vector<2x32xf32>
    %430 = arith.addf %429, %428 : vector<2x32xf32>
    %431 = arith.divf %429, %430 : vector<2x32xf32>
    %432 = vector.extract_strided_slice %425 {offsets = [0, 32], sizes = [2, 32], strides = [1, 1]} : vector<2x128xf32> to vector<2x32xf32>
    %433 = arith.negf %432 : vector<2x32xf32>
    %434 = math.exp %433 : vector<2x32xf32>
    %cst_72 = arith.constant 1.000000e+00 : f32
    %435 = vector.broadcast %cst_72 : f32 to vector<2x32xf32>
    %436 = arith.addf %435, %434 : vector<2x32xf32>
    %437 = arith.divf %435, %436 : vector<2x32xf32>
    %438 = vector.extract_strided_slice %425 {offsets = [0, 64], sizes = [2, 32], strides = [1, 1]} : vector<2x128xf32> to vector<2x32xf32>
    %439 = math.tanh %438 : vector<2x32xf32>
    %440 = vector.extract_strided_slice %425 {offsets = [0, 96], sizes = [2, 32], strides = [1, 1]} : vector<2x128xf32> to vector<2x32xf32>
    %441 = arith.negf %440 : vector<2x32xf32>
    %442 = math.exp %441 : vector<2x32xf32>
    %cst_73 = arith.constant 1.000000e+00 : f32
    %443 = vector.broadcast %cst_73 : f32 to vector<2x32xf32>
    %444 = arith.addf %443, %442 : vector<2x32xf32>
    %445 = arith.divf %443, %444 : vector<2x32xf32>
    %446 = arith.mulf %437, %390 : vector<2x32xf32>
    %447 = arith.mulf %431, %439 : vector<2x32xf32>
    %448 = arith.addf %446, %447 : vector<2x32xf32>
    %449 = math.tanh %448 : vector<2x32xf32>
    %450 = arith.mulf %445, %449 : vector<2x32xf32>
    %451 = vector.extract_strided_slice %11 {offsets = [0, 0, 0], sizes = [2, 1, 128], strides = [1, 1, 1]} : vector<2x8x128xf32> to vector<2x1x128xf32>
    %452 = vector.shape_cast %451 : vector<2x1x128xf32> to vector<2x128xf32>
    %cst_74 = arith.constant dense<0.000000e+00> : vector<2x128xf32>
    %453 = tpu.matmul %421, %4, %cst_74 {dimension_numbers = #tpu.dot_dimension_numbers<[1], [0], [0], [1], [0, 0, 1, 1], [], []>} : vector<2x32xf32>, vector<32x128xf32>, vector<2x128xf32> -> vector<2x128xf32>
    %454 = arith.addf %452, %453 : vector<2x128xf32>
    %455 = vector.extract_strided_slice %454 {offsets = [0, 0], sizes = [2, 32], strides = [1, 1]} : vector<2x128xf32> to vector<2x32xf32>
    %456 = arith.negf %455 : vector<2x32xf32>
    %457 = math.exp %456 : vector<2x32xf32>
    %cst_75 = arith.constant 1.000000e+00 : f32
    %458 = vector.broadcast %cst_75 : f32 to vector<2x32xf32>
    %459 = arith.addf %458, %457 : vector<2x32xf32>
    %460 = arith.divf %458, %459 : vector<2x32xf32>
    %461 = vector.extract_strided_slice %454 {offsets = [0, 32], sizes = [2, 32], strides = [1, 1]} : vector<2x128xf32> to vector<2x32xf32>
    %462 = arith.negf %461 : vector<2x32xf32>
    %463 = math.exp %462 : vector<2x32xf32>
    %cst_76 = arith.constant 1.000000e+00 : f32
    %464 = vector.broadcast %cst_76 : f32 to vector<2x32xf32>
    %465 = arith.addf %464, %463 : vector<2x32xf32>
    %466 = arith.divf %464, %465 : vector<2x32xf32>
    %467 = vector.extract_strided_slice %454 {offsets = [0, 64], sizes = [2, 32], strides = [1, 1]} : vector<2x128xf32> to vector<2x32xf32>
    %468 = math.tanh %467 : vector<2x32xf32>
    %469 = vector.extract_strided_slice %454 {offsets = [0, 96], sizes = [2, 32], strides = [1, 1]} : vector<2x128xf32> to vector<2x32xf32>
    %470 = arith.negf %469 : vector<2x32xf32>
    %471 = math.exp %470 : vector<2x32xf32>
    %cst_77 = arith.constant 1.000000e+00 : f32
    %472 = vector.broadcast %cst_77 : f32 to vector<2x32xf32>
    %473 = arith.addf %472, %471 : vector<2x32xf32>
    %474 = arith.divf %472, %473 : vector<2x32xf32>
    %475 = arith.mulf %466, %419 : vector<2x32xf32>
    %476 = arith.mulf %460, %468 : vector<2x32xf32>
    %477 = arith.addf %475, %476 : vector<2x32xf32>
    %478 = math.tanh %477 : vector<2x32xf32>
    %479 = arith.mulf %474, %478 : vector<2x32xf32>
    %480 = vector.shape_cast %44 : vector<2x32xf32> to vector<2x1x32xf32>
    %481 = vector.shape_cast %102 : vector<2x32xf32> to vector<2x1x32xf32>
    %482 = vector.shape_cast %160 : vector<2x32xf32> to vector<2x1x32xf32>
    %483 = vector.shape_cast %218 : vector<2x32xf32> to vector<2x1x32xf32>
    %484 = vector.shape_cast %276 : vector<2x32xf32> to vector<2x1x32xf32>
    %485 = vector.shape_cast %334 : vector<2x32xf32> to vector<2x1x32xf32>
    %486 = vector.shape_cast %392 : vector<2x32xf32> to vector<2x1x32xf32>
    %487 = vector.shape_cast %450 : vector<2x32xf32> to vector<2x1x32xf32>
    %488 = tpu.concatenate %480, %481, %482, %483, %484, %485, %486, %487 in 1 : vector<2x1x32xf32>, vector<2x1x32xf32>, vector<2x1x32xf32>, vector<2x1x32xf32>, vector<2x1x32xf32>, vector<2x1x32xf32>, vector<2x1x32xf32>, vector<2x1x32xf32> -> vector<2x8x32xf32>
    %489 = vector.shape_cast %479 : vector<2x32xf32> to vector<2x1x32xf32>
    %490 = vector.shape_cast %421 : vector<2x32xf32> to vector<2x1x32xf32>
    %491 = vector.shape_cast %363 : vector<2x32xf32> to vector<2x1x32xf32>
    %492 = vector.shape_cast %305 : vector<2x32xf32> to vector<2x1x32xf32>
    %493 = vector.shape_cast %247 : vector<2x32xf32> to vector<2x1x32xf32>
    %494 = vector.shape_cast %189 : vector<2x32xf32> to vector<2x1x32xf32>
    %495 = vector.shape_cast %131 : vector<2x32xf32> to vector<2x1x32xf32>
    %496 = vector.shape_cast %73 : vector<2x32xf32> to vector<2x1x32xf32>
    %497 = tpu.concatenate %489, %490, %491, %492, %493, %494, %495, %496 in 1 : vector<2x1x32xf32>, vector<2x1x32xf32>, vector<2x1x32xf32>, vector<2x1x32xf32>, vector<2x1x32xf32>, vector<2x1x32xf32>, vector<2x1x32xf32>, vector<2x1x32xf32> -> vector<2x8x32xf32>
    %498 = tpu.concatenate %488, %497 in 2 : vector<2x8x32xf32>, vector<2x8x32xf32> -> vector<2x8x64xf32>
    %c0_78 = arith.constant 0 : index
    %c0_79 = arith.constant 0 : index
    %499 = vector.load %arg5[%c0_78, %c0_79] : memref<64x256xf32, #tpu.memory_space<vmem>>, vector<64x256xf32>
    %c0_80 = arith.constant 0 : index
    %c0_81 = arith.constant 0 : index
    %500 = vector.load %arg6[%c0_80, %c0_81] : memref<1x256xf32, #tpu.memory_space<vmem>>, vector<1x256xf32>
    %c0_82 = arith.constant 0 : index
    %c0_83 = arith.constant 0 : index
    %501 = vector.load %arg7[%c0_82, %c0_83] : memref<32x128xf32, #tpu.memory_space<vmem>>, vector<32x128xf32>
    %c0_84 = arith.constant 0 : index
    %c0_85 = arith.constant 0 : index
    %502 = vector.load %arg8[%c0_84, %c0_85] : memref<32x128xf32, #tpu.memory_space<vmem>>, vector<32x128xf32>
    %503 = vector.shape_cast %498 : vector<2x8x64xf32> to vector<16x64xf32>
    %cst_86 = arith.constant dense<0.000000e+00> : vector<16x256xf32>
    %504 = tpu.matmul %503, %499, %cst_86 {dimension_numbers = #tpu.dot_dimension_numbers<[1], [0], [0], [1], [0, 0, 1, 1], [], []>} : vector<16x64xf32>, vector<64x256xf32>, vector<16x256xf32> -> vector<16x256xf32>
    %505 = vector.broadcast %500 : vector<1x256xf32> to vector<16x256xf32>
    %506 = arith.addf %504, %505 : vector<16x256xf32>
    %507 = vector.shape_cast %506 : vector<16x256xf32> to vector<2x8x256xf32>
    %508 = vector.extract_strided_slice %507 {offsets = [0, 0, 0], sizes = [2, 8, 128], strides = [1, 1, 1]} : vector<2x8x256xf32> to vector<2x8x128xf32>
    %509 = vector.extract_strided_slice %507 {offsets = [0, 0, 128], sizes = [2, 8, 128], strides = [1, 1, 1]} : vector<2x8x256xf32> to vector<2x8x128xf32>
    %cst_87 = arith.constant 0.000000e+00 : f32
    %510 = vector.broadcast %cst_87 : f32 to vector<2x32xf32>
    %cst_88 = arith.constant 0.000000e+00 : f32
    %511 = vector.broadcast %cst_88 : f32 to vector<2x32xf32>
    %cst_89 = arith.constant 0.000000e+00 : f32
    %512 = vector.broadcast %cst_89 : f32 to vector<2x32xf32>
    %cst_90 = arith.constant 0.000000e+00 : f32
    %513 = vector.broadcast %cst_90 : f32 to vector<2x32xf32>
    %514 = vector.extract_strided_slice %508 {offsets = [0, 0, 0], sizes = [2, 1, 128], strides = [1, 1, 1]} : vector<2x8x128xf32> to vector<2x1x128xf32>
    %515 = vector.shape_cast %514 : vector<2x1x128xf32> to vector<2x128xf32>
    %cst_91 = arith.constant dense<0.000000e+00> : vector<2x128xf32>
    %516 = tpu.matmul %510, %501, %cst_91 {dimension_numbers = #tpu.dot_dimension_numbers<[1], [0], [0], [1], [0, 0, 1, 1], [], []>} : vector<2x32xf32>, vector<32x128xf32>, vector<2x128xf32> -> vector<2x128xf32>
    %517 = arith.addf %515, %516 : vector<2x128xf32>
    %518 = vector.extract_strided_slice %517 {offsets = [0, 0], sizes = [2, 32], strides = [1, 1]} : vector<2x128xf32> to vector<2x32xf32>
    %519 = arith.negf %518 : vector<2x32xf32>
    %520 = math.exp %519 : vector<2x32xf32>
    %cst_92 = arith.constant 1.000000e+00 : f32
    %521 = vector.broadcast %cst_92 : f32 to vector<2x32xf32>
    %522 = arith.addf %521, %520 : vector<2x32xf32>
    %523 = arith.divf %521, %522 : vector<2x32xf32>
    %524 = vector.extract_strided_slice %517 {offsets = [0, 32], sizes = [2, 32], strides = [1, 1]} : vector<2x128xf32> to vector<2x32xf32>
    %525 = arith.negf %524 : vector<2x32xf32>
    %526 = math.exp %525 : vector<2x32xf32>
    %cst_93 = arith.constant 1.000000e+00 : f32
    %527 = vector.broadcast %cst_93 : f32 to vector<2x32xf32>
    %528 = arith.addf %527, %526 : vector<2x32xf32>
    %529 = arith.divf %527, %528 : vector<2x32xf32>
    %530 = vector.extract_strided_slice %517 {offsets = [0, 64], sizes = [2, 32], strides = [1, 1]} : vector<2x128xf32> to vector<2x32xf32>
    %531 = math.tanh %530 : vector<2x32xf32>
    %532 = vector.extract_strided_slice %517 {offsets = [0, 96], sizes = [2, 32], strides = [1, 1]} : vector<2x128xf32> to vector<2x32xf32>
    %533 = arith.negf %532 : vector<2x32xf32>
    %534 = math.exp %533 : vector<2x32xf32>
    %cst_94 = arith.constant 1.000000e+00 : f32
    %535 = vector.broadcast %cst_94 : f32 to vector<2x32xf32>
    %536 = arith.addf %535, %534 : vector<2x32xf32>
    %537 = arith.divf %535, %536 : vector<2x32xf32>
    %538 = arith.mulf %529, %511 : vector<2x32xf32>
    %539 = arith.mulf %523, %531 : vector<2x32xf32>
    %540 = arith.addf %538, %539 : vector<2x32xf32>
    %541 = math.tanh %540 : vector<2x32xf32>
    %542 = arith.mulf %537, %541 : vector<2x32xf32>
    %543 = vector.extract_strided_slice %509 {offsets = [0, 7, 0], sizes = [2, 1, 128], strides = [1, 1, 1]} : vector<2x8x128xf32> to vector<2x1x128xf32>
    %544 = vector.shape_cast %543 : vector<2x1x128xf32> to vector<2x128xf32>
    %cst_95 = arith.constant dense<0.000000e+00> : vector<2x128xf32>
    %545 = tpu.matmul %512, %502, %cst_95 {dimension_numbers = #tpu.dot_dimension_numbers<[1], [0], [0], [1], [0, 0, 1, 1], [], []>} : vector<2x32xf32>, vector<32x128xf32>, vector<2x128xf32> -> vector<2x128xf32>
    %546 = arith.addf %544, %545 : vector<2x128xf32>
    %547 = vector.extract_strided_slice %546 {offsets = [0, 0], sizes = [2, 32], strides = [1, 1]} : vector<2x128xf32> to vector<2x32xf32>
    %548 = arith.negf %547 : vector<2x32xf32>
    %549 = math.exp %548 : vector<2x32xf32>
    %cst_96 = arith.constant 1.000000e+00 : f32
    %550 = vector.broadcast %cst_96 : f32 to vector<2x32xf32>
    %551 = arith.addf %550, %549 : vector<2x32xf32>
    %552 = arith.divf %550, %551 : vector<2x32xf32>
    %553 = vector.extract_strided_slice %546 {offsets = [0, 32], sizes = [2, 32], strides = [1, 1]} : vector<2x128xf32> to vector<2x32xf32>
    %554 = arith.negf %553 : vector<2x32xf32>
    %555 = math.exp %554 : vector<2x32xf32>
    %cst_97 = arith.constant 1.000000e+00 : f32
    %556 = vector.broadcast %cst_97 : f32 to vector<2x32xf32>
    %557 = arith.addf %556, %555 : vector<2x32xf32>
    %558 = arith.divf %556, %557 : vector<2x32xf32>
    %559 = vector.extract_strided_slice %546 {offsets = [0, 64], sizes = [2, 32], strides = [1, 1]} : vector<2x128xf32> to vector<2x32xf32>
    %560 = math.tanh %559 : vector<2x32xf32>
    %561 = vector.extract_strided_slice %546 {offsets = [0, 96], sizes = [2, 32], strides = [1, 1]} : vector<2x128xf32> to vector<2x32xf32>
    %562 = arith.negf %561 : vector<2x32xf32>
    %563 = math.exp %562 : vector<2x32xf32>
    %cst_98 = arith.constant 1.000000e+00 : f32
    %564 = vector.broadcast %cst_98 : f32 to vector<2x32xf32>
    %565 = arith.addf %564, %563 : vector<2x32xf32>
    %566 = arith.divf %564, %565 : vector<2x32xf32>
    %567 = arith.mulf %558, %513 : vector<2x32xf32>
    %568 = arith.mulf %552, %560 : vector<2x32xf32>
    %569 = arith.addf %567, %568 : vector<2x32xf32>
    %570 = math.tanh %569 : vector<2x32xf32>
    %571 = arith.mulf %566, %570 : vector<2x32xf32>
    %572 = vector.extract_strided_slice %508 {offsets = [0, 1, 0], sizes = [2, 1, 128], strides = [1, 1, 1]} : vector<2x8x128xf32> to vector<2x1x128xf32>
    %573 = vector.shape_cast %572 : vector<2x1x128xf32> to vector<2x128xf32>
    %cst_99 = arith.constant dense<0.000000e+00> : vector<2x128xf32>
    %574 = tpu.matmul %542, %501, %cst_99 {dimension_numbers = #tpu.dot_dimension_numbers<[1], [0], [0], [1], [0, 0, 1, 1], [], []>} : vector<2x32xf32>, vector<32x128xf32>, vector<2x128xf32> -> vector<2x128xf32>
    %575 = arith.addf %573, %574 : vector<2x128xf32>
    %576 = vector.extract_strided_slice %575 {offsets = [0, 0], sizes = [2, 32], strides = [1, 1]} : vector<2x128xf32> to vector<2x32xf32>
    %577 = arith.negf %576 : vector<2x32xf32>
    %578 = math.exp %577 : vector<2x32xf32>
    %cst_100 = arith.constant 1.000000e+00 : f32
    %579 = vector.broadcast %cst_100 : f32 to vector<2x32xf32>
    %580 = arith.addf %579, %578 : vector<2x32xf32>
    %581 = arith.divf %579, %580 : vector<2x32xf32>
    %582 = vector.extract_strided_slice %575 {offsets = [0, 32], sizes = [2, 32], strides = [1, 1]} : vector<2x128xf32> to vector<2x32xf32>
    %583 = arith.negf %582 : vector<2x32xf32>
    %584 = math.exp %583 : vector<2x32xf32>
    %cst_101 = arith.constant 1.000000e+00 : f32
    %585 = vector.broadcast %cst_101 : f32 to vector<2x32xf32>
    %586 = arith.addf %585, %584 : vector<2x32xf32>
    %587 = arith.divf %585, %586 : vector<2x32xf32>
    %588 = vector.extract_strided_slice %575 {offsets = [0, 64], sizes = [2, 32], strides = [1, 1]} : vector<2x128xf32> to vector<2x32xf32>
    %589 = math.tanh %588 : vector<2x32xf32>
    %590 = vector.extract_strided_slice %575 {offsets = [0, 96], sizes = [2, 32], strides = [1, 1]} : vector<2x128xf32> to vector<2x32xf32>
    %591 = arith.negf %590 : vector<2x32xf32>
    %592 = math.exp %591 : vector<2x32xf32>
    %cst_102 = arith.constant 1.000000e+00 : f32
    %593 = vector.broadcast %cst_102 : f32 to vector<2x32xf32>
    %594 = arith.addf %593, %592 : vector<2x32xf32>
    %595 = arith.divf %593, %594 : vector<2x32xf32>
    %596 = arith.mulf %587, %540 : vector<2x32xf32>
    %597 = arith.mulf %581, %589 : vector<2x32xf32>
    %598 = arith.addf %596, %597 : vector<2x32xf32>
    %599 = math.tanh %598 : vector<2x32xf32>
    %600 = arith.mulf %595, %599 : vector<2x32xf32>
    %601 = vector.extract_strided_slice %509 {offsets = [0, 6, 0], sizes = [2, 1, 128], strides = [1, 1, 1]} : vector<2x8x128xf32> to vector<2x1x128xf32>
    %602 = vector.shape_cast %601 : vector<2x1x128xf32> to vector<2x128xf32>
    %cst_103 = arith.constant dense<0.000000e+00> : vector<2x128xf32>
    %603 = tpu.matmul %571, %502, %cst_103 {dimension_numbers = #tpu.dot_dimension_numbers<[1], [0], [0], [1], [0, 0, 1, 1], [], []>} : vector<2x32xf32>, vector<32x128xf32>, vector<2x128xf32> -> vector<2x128xf32>
    %604 = arith.addf %602, %603 : vector<2x128xf32>
    %605 = vector.extract_strided_slice %604 {offsets = [0, 0], sizes = [2, 32], strides = [1, 1]} : vector<2x128xf32> to vector<2x32xf32>
    %606 = arith.negf %605 : vector<2x32xf32>
    %607 = math.exp %606 : vector<2x32xf32>
    %cst_104 = arith.constant 1.000000e+00 : f32
    %608 = vector.broadcast %cst_104 : f32 to vector<2x32xf32>
    %609 = arith.addf %608, %607 : vector<2x32xf32>
    %610 = arith.divf %608, %609 : vector<2x32xf32>
    %611 = vector.extract_strided_slice %604 {offsets = [0, 32], sizes = [2, 32], strides = [1, 1]} : vector<2x128xf32> to vector<2x32xf32>
    %612 = arith.negf %611 : vector<2x32xf32>
    %613 = math.exp %612 : vector<2x32xf32>
    %cst_105 = arith.constant 1.000000e+00 : f32
    %614 = vector.broadcast %cst_105 : f32 to vector<2x32xf32>
    %615 = arith.addf %614, %613 : vector<2x32xf32>
    %616 = arith.divf %614, %615 : vector<2x32xf32>
    %617 = vector.extract_strided_slice %604 {offsets = [0, 64], sizes = [2, 32], strides = [1, 1]} : vector<2x128xf32> to vector<2x32xf32>
    %618 = math.tanh %617 : vector<2x32xf32>
    %619 = vector.extract_strided_slice %604 {offsets = [0, 96], sizes = [2, 32], strides = [1, 1]} : vector<2x128xf32> to vector<2x32xf32>
    %620 = arith.negf %619 : vector<2x32xf32>
    %621 = math.exp %620 : vector<2x32xf32>
    %cst_106 = arith.constant 1.000000e+00 : f32
    %622 = vector.broadcast %cst_106 : f32 to vector<2x32xf32>
    %623 = arith.addf %622, %621 : vector<2x32xf32>
    %624 = arith.divf %622, %623 : vector<2x32xf32>
    %625 = arith.mulf %616, %569 : vector<2x32xf32>
    %626 = arith.mulf %610, %618 : vector<2x32xf32>
    %627 = arith.addf %625, %626 : vector<2x32xf32>
    %628 = math.tanh %627 : vector<2x32xf32>
    %629 = arith.mulf %624, %628 : vector<2x32xf32>
    %630 = vector.extract_strided_slice %508 {offsets = [0, 2, 0], sizes = [2, 1, 128], strides = [1, 1, 1]} : vector<2x8x128xf32> to vector<2x1x128xf32>
    %631 = vector.shape_cast %630 : vector<2x1x128xf32> to vector<2x128xf32>
    %cst_107 = arith.constant dense<0.000000e+00> : vector<2x128xf32>
    %632 = tpu.matmul %600, %501, %cst_107 {dimension_numbers = #tpu.dot_dimension_numbers<[1], [0], [0], [1], [0, 0, 1, 1], [], []>} : vector<2x32xf32>, vector<32x128xf32>, vector<2x128xf32> -> vector<2x128xf32>
    %633 = arith.addf %631, %632 : vector<2x128xf32>
    %634 = vector.extract_strided_slice %633 {offsets = [0, 0], sizes = [2, 32], strides = [1, 1]} : vector<2x128xf32> to vector<2x32xf32>
    %635 = arith.negf %634 : vector<2x32xf32>
    %636 = math.exp %635 : vector<2x32xf32>
    %cst_108 = arith.constant 1.000000e+00 : f32
    %637 = vector.broadcast %cst_108 : f32 to vector<2x32xf32>
    %638 = arith.addf %637, %636 : vector<2x32xf32>
    %639 = arith.divf %637, %638 : vector<2x32xf32>
    %640 = vector.extract_strided_slice %633 {offsets = [0, 32], sizes = [2, 32], strides = [1, 1]} : vector<2x128xf32> to vector<2x32xf32>
    %641 = arith.negf %640 : vector<2x32xf32>
    %642 = math.exp %641 : vector<2x32xf32>
    %cst_109 = arith.constant 1.000000e+00 : f32
    %643 = vector.broadcast %cst_109 : f32 to vector<2x32xf32>
    %644 = arith.addf %643, %642 : vector<2x32xf32>
    %645 = arith.divf %643, %644 : vector<2x32xf32>
    %646 = vector.extract_strided_slice %633 {offsets = [0, 64], sizes = [2, 32], strides = [1, 1]} : vector<2x128xf32> to vector<2x32xf32>
    %647 = math.tanh %646 : vector<2x32xf32>
    %648 = vector.extract_strided_slice %633 {offsets = [0, 96], sizes = [2, 32], strides = [1, 1]} : vector<2x128xf32> to vector<2x32xf32>
    %649 = arith.negf %648 : vector<2x32xf32>
    %650 = math.exp %649 : vector<2x32xf32>
    %cst_110 = arith.constant 1.000000e+00 : f32
    %651 = vector.broadcast %cst_110 : f32 to vector<2x32xf32>
    %652 = arith.addf %651, %650 : vector<2x32xf32>
    %653 = arith.divf %651, %652 : vector<2x32xf32>
    %654 = arith.mulf %645, %598 : vector<2x32xf32>
    %655 = arith.mulf %639, %647 : vector<2x32xf32>
    %656 = arith.addf %654, %655 : vector<2x32xf32>
    %657 = math.tanh %656 : vector<2x32xf32>
    %658 = arith.mulf %653, %657 : vector<2x32xf32>
    %659 = vector.extract_strided_slice %509 {offsets = [0, 5, 0], sizes = [2, 1, 128], strides = [1, 1, 1]} : vector<2x8x128xf32> to vector<2x1x128xf32>
    %660 = vector.shape_cast %659 : vector<2x1x128xf32> to vector<2x128xf32>
    %cst_111 = arith.constant dense<0.000000e+00> : vector<2x128xf32>
    %661 = tpu.matmul %629, %502, %cst_111 {dimension_numbers = #tpu.dot_dimension_numbers<[1], [0], [0], [1], [0, 0, 1, 1], [], []>} : vector<2x32xf32>, vector<32x128xf32>, vector<2x128xf32> -> vector<2x128xf32>
    %662 = arith.addf %660, %661 : vector<2x128xf32>
    %663 = vector.extract_strided_slice %662 {offsets = [0, 0], sizes = [2, 32], strides = [1, 1]} : vector<2x128xf32> to vector<2x32xf32>
    %664 = arith.negf %663 : vector<2x32xf32>
    %665 = math.exp %664 : vector<2x32xf32>
    %cst_112 = arith.constant 1.000000e+00 : f32
    %666 = vector.broadcast %cst_112 : f32 to vector<2x32xf32>
    %667 = arith.addf %666, %665 : vector<2x32xf32>
    %668 = arith.divf %666, %667 : vector<2x32xf32>
    %669 = vector.extract_strided_slice %662 {offsets = [0, 32], sizes = [2, 32], strides = [1, 1]} : vector<2x128xf32> to vector<2x32xf32>
    %670 = arith.negf %669 : vector<2x32xf32>
    %671 = math.exp %670 : vector<2x32xf32>
    %cst_113 = arith.constant 1.000000e+00 : f32
    %672 = vector.broadcast %cst_113 : f32 to vector<2x32xf32>
    %673 = arith.addf %672, %671 : vector<2x32xf32>
    %674 = arith.divf %672, %673 : vector<2x32xf32>
    %675 = vector.extract_strided_slice %662 {offsets = [0, 64], sizes = [2, 32], strides = [1, 1]} : vector<2x128xf32> to vector<2x32xf32>
    %676 = math.tanh %675 : vector<2x32xf32>
    %677 = vector.extract_strided_slice %662 {offsets = [0, 96], sizes = [2, 32], strides = [1, 1]} : vector<2x128xf32> to vector<2x32xf32>
    %678 = arith.negf %677 : vector<2x32xf32>
    %679 = math.exp %678 : vector<2x32xf32>
    %cst_114 = arith.constant 1.000000e+00 : f32
    %680 = vector.broadcast %cst_114 : f32 to vector<2x32xf32>
    %681 = arith.addf %680, %679 : vector<2x32xf32>
    %682 = arith.divf %680, %681 : vector<2x32xf32>
    %683 = arith.mulf %674, %627 : vector<2x32xf32>
    %684 = arith.mulf %668, %676 : vector<2x32xf32>
    %685 = arith.addf %683, %684 : vector<2x32xf32>
    %686 = math.tanh %685 : vector<2x32xf32>
    %687 = arith.mulf %682, %686 : vector<2x32xf32>
    %688 = vector.extract_strided_slice %508 {offsets = [0, 3, 0], sizes = [2, 1, 128], strides = [1, 1, 1]} : vector<2x8x128xf32> to vector<2x1x128xf32>
    %689 = vector.shape_cast %688 : vector<2x1x128xf32> to vector<2x128xf32>
    %cst_115 = arith.constant dense<0.000000e+00> : vector<2x128xf32>
    %690 = tpu.matmul %658, %501, %cst_115 {dimension_numbers = #tpu.dot_dimension_numbers<[1], [0], [0], [1], [0, 0, 1, 1], [], []>} : vector<2x32xf32>, vector<32x128xf32>, vector<2x128xf32> -> vector<2x128xf32>
    %691 = arith.addf %689, %690 : vector<2x128xf32>
    %692 = vector.extract_strided_slice %691 {offsets = [0, 0], sizes = [2, 32], strides = [1, 1]} : vector<2x128xf32> to vector<2x32xf32>
    %693 = arith.negf %692 : vector<2x32xf32>
    %694 = math.exp %693 : vector<2x32xf32>
    %cst_116 = arith.constant 1.000000e+00 : f32
    %695 = vector.broadcast %cst_116 : f32 to vector<2x32xf32>
    %696 = arith.addf %695, %694 : vector<2x32xf32>
    %697 = arith.divf %695, %696 : vector<2x32xf32>
    %698 = vector.extract_strided_slice %691 {offsets = [0, 32], sizes = [2, 32], strides = [1, 1]} : vector<2x128xf32> to vector<2x32xf32>
    %699 = arith.negf %698 : vector<2x32xf32>
    %700 = math.exp %699 : vector<2x32xf32>
    %cst_117 = arith.constant 1.000000e+00 : f32
    %701 = vector.broadcast %cst_117 : f32 to vector<2x32xf32>
    %702 = arith.addf %701, %700 : vector<2x32xf32>
    %703 = arith.divf %701, %702 : vector<2x32xf32>
    %704 = vector.extract_strided_slice %691 {offsets = [0, 64], sizes = [2, 32], strides = [1, 1]} : vector<2x128xf32> to vector<2x32xf32>
    %705 = math.tanh %704 : vector<2x32xf32>
    %706 = vector.extract_strided_slice %691 {offsets = [0, 96], sizes = [2, 32], strides = [1, 1]} : vector<2x128xf32> to vector<2x32xf32>
    %707 = arith.negf %706 : vector<2x32xf32>
    %708 = math.exp %707 : vector<2x32xf32>
    %cst_118 = arith.constant 1.000000e+00 : f32
    %709 = vector.broadcast %cst_118 : f32 to vector<2x32xf32>
    %710 = arith.addf %709, %708 : vector<2x32xf32>
    %711 = arith.divf %709, %710 : vector<2x32xf32>
    %712 = arith.mulf %703, %656 : vector<2x32xf32>
    %713 = arith.mulf %697, %705 : vector<2x32xf32>
    %714 = arith.addf %712, %713 : vector<2x32xf32>
    %715 = math.tanh %714 : vector<2x32xf32>
    %716 = arith.mulf %711, %715 : vector<2x32xf32>
    %717 = vector.extract_strided_slice %509 {offsets = [0, 4, 0], sizes = [2, 1, 128], strides = [1, 1, 1]} : vector<2x8x128xf32> to vector<2x1x128xf32>
    %718 = vector.shape_cast %717 : vector<2x1x128xf32> to vector<2x128xf32>
    %cst_119 = arith.constant dense<0.000000e+00> : vector<2x128xf32>
    %719 = tpu.matmul %687, %502, %cst_119 {dimension_numbers = #tpu.dot_dimension_numbers<[1], [0], [0], [1], [0, 0, 1, 1], [], []>} : vector<2x32xf32>, vector<32x128xf32>, vector<2x128xf32> -> vector<2x128xf32>
    %720 = arith.addf %718, %719 : vector<2x128xf32>
    %721 = vector.extract_strided_slice %720 {offsets = [0, 0], sizes = [2, 32], strides = [1, 1]} : vector<2x128xf32> to vector<2x32xf32>
    %722 = arith.negf %721 : vector<2x32xf32>
    %723 = math.exp %722 : vector<2x32xf32>
    %cst_120 = arith.constant 1.000000e+00 : f32
    %724 = vector.broadcast %cst_120 : f32 to vector<2x32xf32>
    %725 = arith.addf %724, %723 : vector<2x32xf32>
    %726 = arith.divf %724, %725 : vector<2x32xf32>
    %727 = vector.extract_strided_slice %720 {offsets = [0, 32], sizes = [2, 32], strides = [1, 1]} : vector<2x128xf32> to vector<2x32xf32>
    %728 = arith.negf %727 : vector<2x32xf32>
    %729 = math.exp %728 : vector<2x32xf32>
    %cst_121 = arith.constant 1.000000e+00 : f32
    %730 = vector.broadcast %cst_121 : f32 to vector<2x32xf32>
    %731 = arith.addf %730, %729 : vector<2x32xf32>
    %732 = arith.divf %730, %731 : vector<2x32xf32>
    %733 = vector.extract_strided_slice %720 {offsets = [0, 64], sizes = [2, 32], strides = [1, 1]} : vector<2x128xf32> to vector<2x32xf32>
    %734 = math.tanh %733 : vector<2x32xf32>
    %735 = vector.extract_strided_slice %720 {offsets = [0, 96], sizes = [2, 32], strides = [1, 1]} : vector<2x128xf32> to vector<2x32xf32>
    %736 = arith.negf %735 : vector<2x32xf32>
    %737 = math.exp %736 : vector<2x32xf32>
    %cst_122 = arith.constant 1.000000e+00 : f32
    %738 = vector.broadcast %cst_122 : f32 to vector<2x32xf32>
    %739 = arith.addf %738, %737 : vector<2x32xf32>
    %740 = arith.divf %738, %739 : vector<2x32xf32>
    %741 = arith.mulf %732, %685 : vector<2x32xf32>
    %742 = arith.mulf %726, %734 : vector<2x32xf32>
    %743 = arith.addf %741, %742 : vector<2x32xf32>
    %744 = math.tanh %743 : vector<2x32xf32>
    %745 = arith.mulf %740, %744 : vector<2x32xf32>
    %746 = vector.extract_strided_slice %508 {offsets = [0, 4, 0], sizes = [2, 1, 128], strides = [1, 1, 1]} : vector<2x8x128xf32> to vector<2x1x128xf32>
    %747 = vector.shape_cast %746 : vector<2x1x128xf32> to vector<2x128xf32>
    %cst_123 = arith.constant dense<0.000000e+00> : vector<2x128xf32>
    %748 = tpu.matmul %716, %501, %cst_123 {dimension_numbers = #tpu.dot_dimension_numbers<[1], [0], [0], [1], [0, 0, 1, 1], [], []>} : vector<2x32xf32>, vector<32x128xf32>, vector<2x128xf32> -> vector<2x128xf32>
    %749 = arith.addf %747, %748 : vector<2x128xf32>
    %750 = vector.extract_strided_slice %749 {offsets = [0, 0], sizes = [2, 32], strides = [1, 1]} : vector<2x128xf32> to vector<2x32xf32>
    %751 = arith.negf %750 : vector<2x32xf32>
    %752 = math.exp %751 : vector<2x32xf32>
    %cst_124 = arith.constant 1.000000e+00 : f32
    %753 = vector.broadcast %cst_124 : f32 to vector<2x32xf32>
    %754 = arith.addf %753, %752 : vector<2x32xf32>
    %755 = arith.divf %753, %754 : vector<2x32xf32>
    %756 = vector.extract_strided_slice %749 {offsets = [0, 32], sizes = [2, 32], strides = [1, 1]} : vector<2x128xf32> to vector<2x32xf32>
    %757 = arith.negf %756 : vector<2x32xf32>
    %758 = math.exp %757 : vector<2x32xf32>
    %cst_125 = arith.constant 1.000000e+00 : f32
    %759 = vector.broadcast %cst_125 : f32 to vector<2x32xf32>
    %760 = arith.addf %759, %758 : vector<2x32xf32>
    %761 = arith.divf %759, %760 : vector<2x32xf32>
    %762 = vector.extract_strided_slice %749 {offsets = [0, 64], sizes = [2, 32], strides = [1, 1]} : vector<2x128xf32> to vector<2x32xf32>
    %763 = math.tanh %762 : vector<2x32xf32>
    %764 = vector.extract_strided_slice %749 {offsets = [0, 96], sizes = [2, 32], strides = [1, 1]} : vector<2x128xf32> to vector<2x32xf32>
    %765 = arith.negf %764 : vector<2x32xf32>
    %766 = math.exp %765 : vector<2x32xf32>
    %cst_126 = arith.constant 1.000000e+00 : f32
    %767 = vector.broadcast %cst_126 : f32 to vector<2x32xf32>
    %768 = arith.addf %767, %766 : vector<2x32xf32>
    %769 = arith.divf %767, %768 : vector<2x32xf32>
    %770 = arith.mulf %761, %714 : vector<2x32xf32>
    %771 = arith.mulf %755, %763 : vector<2x32xf32>
    %772 = arith.addf %770, %771 : vector<2x32xf32>
    %773 = math.tanh %772 : vector<2x32xf32>
    %774 = arith.mulf %769, %773 : vector<2x32xf32>
    %775 = vector.extract_strided_slice %509 {offsets = [0, 3, 0], sizes = [2, 1, 128], strides = [1, 1, 1]} : vector<2x8x128xf32> to vector<2x1x128xf32>
    %776 = vector.shape_cast %775 : vector<2x1x128xf32> to vector<2x128xf32>
    %cst_127 = arith.constant dense<0.000000e+00> : vector<2x128xf32>
    %777 = tpu.matmul %745, %502, %cst_127 {dimension_numbers = #tpu.dot_dimension_numbers<[1], [0], [0], [1], [0, 0, 1, 1], [], []>} : vector<2x32xf32>, vector<32x128xf32>, vector<2x128xf32> -> vector<2x128xf32>
    %778 = arith.addf %776, %777 : vector<2x128xf32>
    %779 = vector.extract_strided_slice %778 {offsets = [0, 0], sizes = [2, 32], strides = [1, 1]} : vector<2x128xf32> to vector<2x32xf32>
    %780 = arith.negf %779 : vector<2x32xf32>
    %781 = math.exp %780 : vector<2x32xf32>
    %cst_128 = arith.constant 1.000000e+00 : f32
    %782 = vector.broadcast %cst_128 : f32 to vector<2x32xf32>
    %783 = arith.addf %782, %781 : vector<2x32xf32>
    %784 = arith.divf %782, %783 : vector<2x32xf32>
    %785 = vector.extract_strided_slice %778 {offsets = [0, 32], sizes = [2, 32], strides = [1, 1]} : vector<2x128xf32> to vector<2x32xf32>
    %786 = arith.negf %785 : vector<2x32xf32>
    %787 = math.exp %786 : vector<2x32xf32>
    %cst_129 = arith.constant 1.000000e+00 : f32
    %788 = vector.broadcast %cst_129 : f32 to vector<2x32xf32>
    %789 = arith.addf %788, %787 : vector<2x32xf32>
    %790 = arith.divf %788, %789 : vector<2x32xf32>
    %791 = vector.extract_strided_slice %778 {offsets = [0, 64], sizes = [2, 32], strides = [1, 1]} : vector<2x128xf32> to vector<2x32xf32>
    %792 = math.tanh %791 : vector<2x32xf32>
    %793 = vector.extract_strided_slice %778 {offsets = [0, 96], sizes = [2, 32], strides = [1, 1]} : vector<2x128xf32> to vector<2x32xf32>
    %794 = arith.negf %793 : vector<2x32xf32>
    %795 = math.exp %794 : vector<2x32xf32>
    %cst_130 = arith.constant 1.000000e+00 : f32
    %796 = vector.broadcast %cst_130 : f32 to vector<2x32xf32>
    %797 = arith.addf %796, %795 : vector<2x32xf32>
    %798 = arith.divf %796, %797 : vector<2x32xf32>
    %799 = arith.mulf %790, %743 : vector<2x32xf32>
    %800 = arith.mulf %784, %792 : vector<2x32xf32>
    %801 = arith.addf %799, %800 : vector<2x32xf32>
    %802 = math.tanh %801 : vector<2x32xf32>
    %803 = arith.mulf %798, %802 : vector<2x32xf32>
    %804 = vector.extract_strided_slice %508 {offsets = [0, 5, 0], sizes = [2, 1, 128], strides = [1, 1, 1]} : vector<2x8x128xf32> to vector<2x1x128xf32>
    %805 = vector.shape_cast %804 : vector<2x1x128xf32> to vector<2x128xf32>
    %cst_131 = arith.constant dense<0.000000e+00> : vector<2x128xf32>
    %806 = tpu.matmul %774, %501, %cst_131 {dimension_numbers = #tpu.dot_dimension_numbers<[1], [0], [0], [1], [0, 0, 1, 1], [], []>} : vector<2x32xf32>, vector<32x128xf32>, vector<2x128xf32> -> vector<2x128xf32>
    %807 = arith.addf %805, %806 : vector<2x128xf32>
    %808 = vector.extract_strided_slice %807 {offsets = [0, 0], sizes = [2, 32], strides = [1, 1]} : vector<2x128xf32> to vector<2x32xf32>
    %809 = arith.negf %808 : vector<2x32xf32>
    %810 = math.exp %809 : vector<2x32xf32>
    %cst_132 = arith.constant 1.000000e+00 : f32
    %811 = vector.broadcast %cst_132 : f32 to vector<2x32xf32>
    %812 = arith.addf %811, %810 : vector<2x32xf32>
    %813 = arith.divf %811, %812 : vector<2x32xf32>
    %814 = vector.extract_strided_slice %807 {offsets = [0, 32], sizes = [2, 32], strides = [1, 1]} : vector<2x128xf32> to vector<2x32xf32>
    %815 = arith.negf %814 : vector<2x32xf32>
    %816 = math.exp %815 : vector<2x32xf32>
    %cst_133 = arith.constant 1.000000e+00 : f32
    %817 = vector.broadcast %cst_133 : f32 to vector<2x32xf32>
    %818 = arith.addf %817, %816 : vector<2x32xf32>
    %819 = arith.divf %817, %818 : vector<2x32xf32>
    %820 = vector.extract_strided_slice %807 {offsets = [0, 64], sizes = [2, 32], strides = [1, 1]} : vector<2x128xf32> to vector<2x32xf32>
    %821 = math.tanh %820 : vector<2x32xf32>
    %822 = vector.extract_strided_slice %807 {offsets = [0, 96], sizes = [2, 32], strides = [1, 1]} : vector<2x128xf32> to vector<2x32xf32>
    %823 = arith.negf %822 : vector<2x32xf32>
    %824 = math.exp %823 : vector<2x32xf32>
    %cst_134 = arith.constant 1.000000e+00 : f32
    %825 = vector.broadcast %cst_134 : f32 to vector<2x32xf32>
    %826 = arith.addf %825, %824 : vector<2x32xf32>
    %827 = arith.divf %825, %826 : vector<2x32xf32>
    %828 = arith.mulf %819, %772 : vector<2x32xf32>
    %829 = arith.mulf %813, %821 : vector<2x32xf32>
    %830 = arith.addf %828, %829 : vector<2x32xf32>
    %831 = math.tanh %830 : vector<2x32xf32>
    %832 = arith.mulf %827, %831 : vector<2x32xf32>
    %833 = vector.extract_strided_slice %509 {offsets = [0, 2, 0], sizes = [2, 1, 128], strides = [1, 1, 1]} : vector<2x8x128xf32> to vector<2x1x128xf32>
    %834 = vector.shape_cast %833 : vector<2x1x128xf32> to vector<2x128xf32>
    %cst_135 = arith.constant dense<0.000000e+00> : vector<2x128xf32>
    %835 = tpu.matmul %803, %502, %cst_135 {dimension_numbers = #tpu.dot_dimension_numbers<[1], [0], [0], [1], [0, 0, 1, 1], [], []>} : vector<2x32xf32>, vector<32x128xf32>, vector<2x128xf32> -> vector<2x128xf32>
    %836 = arith.addf %834, %835 : vector<2x128xf32>
    %837 = vector.extract_strided_slice %836 {offsets = [0, 0], sizes = [2, 32], strides = [1, 1]} : vector<2x128xf32> to vector<2x32xf32>
    %838 = arith.negf %837 : vector<2x32xf32>
    %839 = math.exp %838 : vector<2x32xf32>
    %cst_136 = arith.constant 1.000000e+00 : f32
    %840 = vector.broadcast %cst_136 : f32 to vector<2x32xf32>
    %841 = arith.addf %840, %839 : vector<2x32xf32>
    %842 = arith.divf %840, %841 : vector<2x32xf32>
    %843 = vector.extract_strided_slice %836 {offsets = [0, 32], sizes = [2, 32], strides = [1, 1]} : vector<2x128xf32> to vector<2x32xf32>
    %844 = arith.negf %843 : vector<2x32xf32>
    %845 = math.exp %844 : vector<2x32xf32>
    %cst_137 = arith.constant 1.000000e+00 : f32
    %846 = vector.broadcast %cst_137 : f32 to vector<2x32xf32>
    %847 = arith.addf %846, %845 : vector<2x32xf32>
    %848 = arith.divf %846, %847 : vector<2x32xf32>
    %849 = vector.extract_strided_slice %836 {offsets = [0, 64], sizes = [2, 32], strides = [1, 1]} : vector<2x128xf32> to vector<2x32xf32>
    %850 = math.tanh %849 : vector<2x32xf32>
    %851 = vector.extract_strided_slice %836 {offsets = [0, 96], sizes = [2, 32], strides = [1, 1]} : vector<2x128xf32> to vector<2x32xf32>
    %852 = arith.negf %851 : vector<2x32xf32>
    %853 = math.exp %852 : vector<2x32xf32>
    %cst_138 = arith.constant 1.000000e+00 : f32
    %854 = vector.broadcast %cst_138 : f32 to vector<2x32xf32>
    %855 = arith.addf %854, %853 : vector<2x32xf32>
    %856 = arith.divf %854, %855 : vector<2x32xf32>
    %857 = arith.mulf %848, %801 : vector<2x32xf32>
    %858 = arith.mulf %842, %850 : vector<2x32xf32>
    %859 = arith.addf %857, %858 : vector<2x32xf32>
    %860 = math.tanh %859 : vector<2x32xf32>
    %861 = arith.mulf %856, %860 : vector<2x32xf32>
    %862 = vector.extract_strided_slice %508 {offsets = [0, 6, 0], sizes = [2, 1, 128], strides = [1, 1, 1]} : vector<2x8x128xf32> to vector<2x1x128xf32>
    %863 = vector.shape_cast %862 : vector<2x1x128xf32> to vector<2x128xf32>
    %cst_139 = arith.constant dense<0.000000e+00> : vector<2x128xf32>
    %864 = tpu.matmul %832, %501, %cst_139 {dimension_numbers = #tpu.dot_dimension_numbers<[1], [0], [0], [1], [0, 0, 1, 1], [], []>} : vector<2x32xf32>, vector<32x128xf32>, vector<2x128xf32> -> vector<2x128xf32>
    %865 = arith.addf %863, %864 : vector<2x128xf32>
    %866 = vector.extract_strided_slice %865 {offsets = [0, 0], sizes = [2, 32], strides = [1, 1]} : vector<2x128xf32> to vector<2x32xf32>
    %867 = arith.negf %866 : vector<2x32xf32>
    %868 = math.exp %867 : vector<2x32xf32>
    %cst_140 = arith.constant 1.000000e+00 : f32
    %869 = vector.broadcast %cst_140 : f32 to vector<2x32xf32>
    %870 = arith.addf %869, %868 : vector<2x32xf32>
    %871 = arith.divf %869, %870 : vector<2x32xf32>
    %872 = vector.extract_strided_slice %865 {offsets = [0, 32], sizes = [2, 32], strides = [1, 1]} : vector<2x128xf32> to vector<2x32xf32>
    %873 = arith.negf %872 : vector<2x32xf32>
    %874 = math.exp %873 : vector<2x32xf32>
    %cst_141 = arith.constant 1.000000e+00 : f32
    %875 = vector.broadcast %cst_141 : f32 to vector<2x32xf32>
    %876 = arith.addf %875, %874 : vector<2x32xf32>
    %877 = arith.divf %875, %876 : vector<2x32xf32>
    %878 = vector.extract_strided_slice %865 {offsets = [0, 64], sizes = [2, 32], strides = [1, 1]} : vector<2x128xf32> to vector<2x32xf32>
    %879 = math.tanh %878 : vector<2x32xf32>
    %880 = vector.extract_strided_slice %865 {offsets = [0, 96], sizes = [2, 32], strides = [1, 1]} : vector<2x128xf32> to vector<2x32xf32>
    %881 = arith.negf %880 : vector<2x32xf32>
    %882 = math.exp %881 : vector<2x32xf32>
    %cst_142 = arith.constant 1.000000e+00 : f32
    %883 = vector.broadcast %cst_142 : f32 to vector<2x32xf32>
    %884 = arith.addf %883, %882 : vector<2x32xf32>
    %885 = arith.divf %883, %884 : vector<2x32xf32>
    %886 = arith.mulf %877, %830 : vector<2x32xf32>
    %887 = arith.mulf %871, %879 : vector<2x32xf32>
    %888 = arith.addf %886, %887 : vector<2x32xf32>
    %889 = math.tanh %888 : vector<2x32xf32>
    %890 = arith.mulf %885, %889 : vector<2x32xf32>
    %891 = vector.extract_strided_slice %509 {offsets = [0, 1, 0], sizes = [2, 1, 128], strides = [1, 1, 1]} : vector<2x8x128xf32> to vector<2x1x128xf32>
    %892 = vector.shape_cast %891 : vector<2x1x128xf32> to vector<2x128xf32>
    %cst_143 = arith.constant dense<0.000000e+00> : vector<2x128xf32>
    %893 = tpu.matmul %861, %502, %cst_143 {dimension_numbers = #tpu.dot_dimension_numbers<[1], [0], [0], [1], [0, 0, 1, 1], [], []>} : vector<2x32xf32>, vector<32x128xf32>, vector<2x128xf32> -> vector<2x128xf32>
    %894 = arith.addf %892, %893 : vector<2x128xf32>
    %895 = vector.extract_strided_slice %894 {offsets = [0, 0], sizes = [2, 32], strides = [1, 1]} : vector<2x128xf32> to vector<2x32xf32>
    %896 = arith.negf %895 : vector<2x32xf32>
    %897 = math.exp %896 : vector<2x32xf32>
    %cst_144 = arith.constant 1.000000e+00 : f32
    %898 = vector.broadcast %cst_144 : f32 to vector<2x32xf32>
    %899 = arith.addf %898, %897 : vector<2x32xf32>
    %900 = arith.divf %898, %899 : vector<2x32xf32>
    %901 = vector.extract_strided_slice %894 {offsets = [0, 32], sizes = [2, 32], strides = [1, 1]} : vector<2x128xf32> to vector<2x32xf32>
    %902 = arith.negf %901 : vector<2x32xf32>
    %903 = math.exp %902 : vector<2x32xf32>
    %cst_145 = arith.constant 1.000000e+00 : f32
    %904 = vector.broadcast %cst_145 : f32 to vector<2x32xf32>
    %905 = arith.addf %904, %903 : vector<2x32xf32>
    %906 = arith.divf %904, %905 : vector<2x32xf32>
    %907 = vector.extract_strided_slice %894 {offsets = [0, 64], sizes = [2, 32], strides = [1, 1]} : vector<2x128xf32> to vector<2x32xf32>
    %908 = math.tanh %907 : vector<2x32xf32>
    %909 = vector.extract_strided_slice %894 {offsets = [0, 96], sizes = [2, 32], strides = [1, 1]} : vector<2x128xf32> to vector<2x32xf32>
    %910 = arith.negf %909 : vector<2x32xf32>
    %911 = math.exp %910 : vector<2x32xf32>
    %cst_146 = arith.constant 1.000000e+00 : f32
    %912 = vector.broadcast %cst_146 : f32 to vector<2x32xf32>
    %913 = arith.addf %912, %911 : vector<2x32xf32>
    %914 = arith.divf %912, %913 : vector<2x32xf32>
    %915 = arith.mulf %906, %859 : vector<2x32xf32>
    %916 = arith.mulf %900, %908 : vector<2x32xf32>
    %917 = arith.addf %915, %916 : vector<2x32xf32>
    %918 = math.tanh %917 : vector<2x32xf32>
    %919 = arith.mulf %914, %918 : vector<2x32xf32>
    %920 = vector.extract_strided_slice %508 {offsets = [0, 7, 0], sizes = [2, 1, 128], strides = [1, 1, 1]} : vector<2x8x128xf32> to vector<2x1x128xf32>
    %921 = vector.shape_cast %920 : vector<2x1x128xf32> to vector<2x128xf32>
    %cst_147 = arith.constant dense<0.000000e+00> : vector<2x128xf32>
    %922 = tpu.matmul %890, %501, %cst_147 {dimension_numbers = #tpu.dot_dimension_numbers<[1], [0], [0], [1], [0, 0, 1, 1], [], []>} : vector<2x32xf32>, vector<32x128xf32>, vector<2x128xf32> -> vector<2x128xf32>
    %923 = arith.addf %921, %922 : vector<2x128xf32>
    %924 = vector.extract_strided_slice %923 {offsets = [0, 0], sizes = [2, 32], strides = [1, 1]} : vector<2x128xf32> to vector<2x32xf32>
    %925 = arith.negf %924 : vector<2x32xf32>
    %926 = math.exp %925 : vector<2x32xf32>
    %cst_148 = arith.constant 1.000000e+00 : f32
    %927 = vector.broadcast %cst_148 : f32 to vector<2x32xf32>
    %928 = arith.addf %927, %926 : vector<2x32xf32>
    %929 = arith.divf %927, %928 : vector<2x32xf32>
    %930 = vector.extract_strided_slice %923 {offsets = [0, 32], sizes = [2, 32], strides = [1, 1]} : vector<2x128xf32> to vector<2x32xf32>
    %931 = arith.negf %930 : vector<2x32xf32>
    %932 = math.exp %931 : vector<2x32xf32>
    %cst_149 = arith.constant 1.000000e+00 : f32
    %933 = vector.broadcast %cst_149 : f32 to vector<2x32xf32>
    %934 = arith.addf %933, %932 : vector<2x32xf32>
    %935 = arith.divf %933, %934 : vector<2x32xf32>
    %936 = vector.extract_strided_slice %923 {offsets = [0, 64], sizes = [2, 32], strides = [1, 1]} : vector<2x128xf32> to vector<2x32xf32>
    %937 = math.tanh %936 : vector<2x32xf32>
    %938 = vector.extract_strided_slice %923 {offsets = [0, 96], sizes = [2, 32], strides = [1, 1]} : vector<2x128xf32> to vector<2x32xf32>
    %939 = arith.negf %938 : vector<2x32xf32>
    %940 = math.exp %939 : vector<2x32xf32>
    %cst_150 = arith.constant 1.000000e+00 : f32
    %941 = vector.broadcast %cst_150 : f32 to vector<2x32xf32>
    %942 = arith.addf %941, %940 : vector<2x32xf32>
    %943 = arith.divf %941, %942 : vector<2x32xf32>
    %944 = arith.mulf %935, %888 : vector<2x32xf32>
    %945 = arith.mulf %929, %937 : vector<2x32xf32>
    %946 = arith.addf %944, %945 : vector<2x32xf32>
    %947 = math.tanh %946 : vector<2x32xf32>
    %948 = arith.mulf %943, %947 : vector<2x32xf32>
    %949 = vector.extract_strided_slice %509 {offsets = [0, 0, 0], sizes = [2, 1, 128], strides = [1, 1, 1]} : vector<2x8x128xf32> to vector<2x1x128xf32>
    %950 = vector.shape_cast %949 : vector<2x1x128xf32> to vector<2x128xf32>
    %cst_151 = arith.constant dense<0.000000e+00> : vector<2x128xf32>
    %951 = tpu.matmul %919, %502, %cst_151 {dimension_numbers = #tpu.dot_dimension_numbers<[1], [0], [0], [1], [0, 0, 1, 1], [], []>} : vector<2x32xf32>, vector<32x128xf32>, vector<2x128xf32> -> vector<2x128xf32>
    %952 = arith.addf %950, %951 : vector<2x128xf32>
    %953 = vector.extract_strided_slice %952 {offsets = [0, 0], sizes = [2, 32], strides = [1, 1]} : vector<2x128xf32> to vector<2x32xf32>
    %954 = arith.negf %953 : vector<2x32xf32>
    %955 = math.exp %954 : vector<2x32xf32>
    %cst_152 = arith.constant 1.000000e+00 : f32
    %956 = vector.broadcast %cst_152 : f32 to vector<2x32xf32>
    %957 = arith.addf %956, %955 : vector<2x32xf32>
    %958 = arith.divf %956, %957 : vector<2x32xf32>
    %959 = vector.extract_strided_slice %952 {offsets = [0, 32], sizes = [2, 32], strides = [1, 1]} : vector<2x128xf32> to vector<2x32xf32>
    %960 = arith.negf %959 : vector<2x32xf32>
    %961 = math.exp %960 : vector<2x32xf32>
    %cst_153 = arith.constant 1.000000e+00 : f32
    %962 = vector.broadcast %cst_153 : f32 to vector<2x32xf32>
    %963 = arith.addf %962, %961 : vector<2x32xf32>
    %964 = arith.divf %962, %963 : vector<2x32xf32>
    %965 = vector.extract_strided_slice %952 {offsets = [0, 64], sizes = [2, 32], strides = [1, 1]} : vector<2x128xf32> to vector<2x32xf32>
    %966 = math.tanh %965 : vector<2x32xf32>
    %967 = vector.extract_strided_slice %952 {offsets = [0, 96], sizes = [2, 32], strides = [1, 1]} : vector<2x128xf32> to vector<2x32xf32>
    %968 = arith.negf %967 : vector<2x32xf32>
    %969 = math.exp %968 : vector<2x32xf32>
    %cst_154 = arith.constant 1.000000e+00 : f32
    %970 = vector.broadcast %cst_154 : f32 to vector<2x32xf32>
    %971 = arith.addf %970, %969 : vector<2x32xf32>
    %972 = arith.divf %970, %971 : vector<2x32xf32>
    %973 = arith.mulf %964, %917 : vector<2x32xf32>
    %974 = arith.mulf %958, %966 : vector<2x32xf32>
    %975 = arith.addf %973, %974 : vector<2x32xf32>
    %976 = math.tanh %975 : vector<2x32xf32>
    %977 = arith.mulf %972, %976 : vector<2x32xf32>
    %978 = vector.shape_cast %542 : vector<2x32xf32> to vector<2x1x32xf32>
    %979 = vector.shape_cast %600 : vector<2x32xf32> to vector<2x1x32xf32>
    %980 = vector.shape_cast %658 : vector<2x32xf32> to vector<2x1x32xf32>
    %981 = vector.shape_cast %716 : vector<2x32xf32> to vector<2x1x32xf32>
    %982 = vector.shape_cast %774 : vector<2x32xf32> to vector<2x1x32xf32>
    %983 = vector.shape_cast %832 : vector<2x32xf32> to vector<2x1x32xf32>
    %984 = vector.shape_cast %890 : vector<2x32xf32> to vector<2x1x32xf32>
    %985 = vector.shape_cast %948 : vector<2x32xf32> to vector<2x1x32xf32>
    %986 = tpu.concatenate %978, %979, %980, %981, %982, %983, %984, %985 in 1 : vector<2x1x32xf32>, vector<2x1x32xf32>, vector<2x1x32xf32>, vector<2x1x32xf32>, vector<2x1x32xf32>, vector<2x1x32xf32>, vector<2x1x32xf32>, vector<2x1x32xf32> -> vector<2x8x32xf32>
    %987 = vector.shape_cast %977 : vector<2x32xf32> to vector<2x1x32xf32>
    %988 = vector.shape_cast %919 : vector<2x32xf32> to vector<2x1x32xf32>
    %989 = vector.shape_cast %861 : vector<2x32xf32> to vector<2x1x32xf32>
    %990 = vector.shape_cast %803 : vector<2x32xf32> to vector<2x1x32xf32>
    %991 = vector.shape_cast %745 : vector<2x32xf32> to vector<2x1x32xf32>
    %992 = vector.shape_cast %687 : vector<2x32xf32> to vector<2x1x32xf32>
    %993 = vector.shape_cast %629 : vector<2x32xf32> to vector<2x1x32xf32>
    %994 = vector.shape_cast %571 : vector<2x32xf32> to vector<2x1x32xf32>
    %995 = tpu.concatenate %987, %988, %989, %990, %991, %992, %993, %994 in 1 : vector<2x1x32xf32>, vector<2x1x32xf32>, vector<2x1x32xf32>, vector<2x1x32xf32>, vector<2x1x32xf32>, vector<2x1x32xf32>, vector<2x1x32xf32>, vector<2x1x32xf32> -> vector<2x8x32xf32>
    %996 = tpu.concatenate %986, %995 in 2 : vector<2x8x32xf32>, vector<2x8x32xf32> -> vector<2x8x64xf32>
    %c0_155 = arith.constant 0 : index
    %c0_156 = arith.constant 0 : index
    %997 = vector.load %arg9[%c0_155, %c0_156] : memref<64x64xf32, #tpu.memory_space<vmem>>, vector<64x64xf32>
    %c0_157 = arith.constant 0 : index
    %c0_158 = arith.constant 0 : index
    %998 = vector.load %arg10[%c0_157, %c0_158] : memref<64x64xf32, #tpu.memory_space<vmem>>, vector<64x64xf32>
    %c0_159 = arith.constant 0 : index
    %c0_160 = arith.constant 0 : index
    %999 = vector.load %arg11[%c0_159, %c0_160] : memref<64x7xf32, #tpu.memory_space<vmem>>, vector<64x7xf32>
    %c0_161 = arith.constant 0 : index
    %c0_162 = arith.constant 0 : index
    %1000 = vector.load %arg12[%c0_161, %c0_162] : memref<1x7xf32, #tpu.memory_space<vmem>>, vector<1x7xf32>
    %1001 = vector.shape_cast %996 : vector<2x8x64xf32> to vector<16x64xf32>
    %cst_163 = arith.constant dense<0.000000e+00> : vector<16x64xf32>
    %1002 = tpu.matmul %1001, %997, %cst_163 {dimension_numbers = #tpu.dot_dimension_numbers<[1], [0], [0], [1], [0, 0, 1, 1], [], []>} : vector<16x64xf32>, vector<64x64xf32>, vector<16x64xf32> -> vector<16x64xf32>
    %1003 = vector.shape_cast %1002 : vector<16x64xf32> to vector<2x8x64xf32>
    %cst_164 = arith.constant dense<0.000000e+00> : vector<16x64xf32>
    %1004 = tpu.matmul %1001, %998, %cst_164 {dimension_numbers = #tpu.dot_dimension_numbers<[1], [0], [0], [1], [0, 0, 1, 1], [], []>} : vector<16x64xf32>, vector<64x64xf32>, vector<16x64xf32> -> vector<16x64xf32>
    %1005 = vector.shape_cast %1004 : vector<16x64xf32> to vector<2x8x64xf32>
    %cst_165 = arith.constant dense<0.000000e+00> : vector<16x7xf32>
    %1006 = tpu.matmul %1001, %999, %cst_165 {dimension_numbers = #tpu.dot_dimension_numbers<[1], [0], [0], [1], [0, 0, 1, 1], [], []>} : vector<16x64xf32>, vector<64x7xf32>, vector<16x7xf32> -> vector<16x7xf32>
    %1007 = vector.shape_cast %1006 : vector<16x7xf32> to vector<2x8x7xf32>
    "tpu.trace_start"() <{level = 10 : i32, message = "bqd,bkd->bqk"}> : () -> ()
    %cst_166 = arith.constant dense<0.000000e+00> : vector<2x8x8xf32>
    %1008 = tpu.matmul %1003, %1005, %cst_166 {dimension_numbers = #tpu.dot_dimension_numbers<[2], [2], [1], [1], [0, 0, 0, 1, 1, 1], [0], [0]>} : vector<2x8x64xf32>, vector<2x8x64xf32>, vector<2x8x8xf32> -> vector<2x8x8xf32>
    "tpu.trace_stop"() : () -> ()
    %cst_167 = arith.constant dense<0xFF800000> : vector<2x8xf32>
    %1009 = vector.multi_reduction <maximumf>, %1008, %cst_167 [2] : vector<2x8x8xf32> to vector<2x8xf32>
    %1010 = vector.shape_cast %1009 : vector<2x8xf32> to vector<2x8x1xf32>
    %1011 = vector.broadcast %1010 : vector<2x8x1xf32> to vector<2x8x8xf32>
    %1012 = arith.subf %1008, %1011 : vector<2x8x8xf32>
    %1013 = math.exp %1012 : vector<2x8x8xf32>
    %cst_168 = arith.constant dense<0.000000e+00> : vector<2x8xf32>
    %1014 = vector.multi_reduction <add>, %1013, %cst_168 [2] : vector<2x8x8xf32> to vector<2x8xf32>
    %1015 = vector.shape_cast %1014 : vector<2x8xf32> to vector<2x8x1xf32>
    %1016 = tpu.reciprocal %1015 {approx = true} : vector<2x8x1xf32> -> vector<2x8x1xf32>
    %1017 = vector.broadcast %1016 : vector<2x8x1xf32> to vector<2x8x8xf32>
    %1018 = arith.mulf %1013, %1017 : vector<2x8x8xf32>
    "tpu.trace_start"() <{level = 10 : i32, message = "bqk,bkd->bqd"}> : () -> ()
    %cst_169 = arith.constant dense<0.000000e+00> : vector<2x8x7xf32>
    %1019 = tpu.matmul %1018, %1007, %cst_169 {dimension_numbers = #tpu.dot_dimension_numbers<[2], [1], [1], [2], [0, 0, 0, 1, 1, 2], [0], [0]>} : vector<2x8x8xf32>, vector<2x8x7xf32>, vector<2x8x7xf32> -> vector<2x8x7xf32>
    "tpu.trace_stop"() : () -> ()
    %1020 = vector.shape_cast %1000 : vector<1x7xf32> to vector<1x1x7xf32>
    %1021 = vector.broadcast %1020 : vector<1x1x7xf32> to vector<2x8x7xf32>
    %1022 = arith.addf %1019, %1021 : vector<2x8x7xf32>
    %c0_170 = arith.constant 0 : index
    %c0_171 = arith.constant 0 : index
    %c0_172 = arith.constant 0 : index
    %1023 = vector.load %arg13[%c0_170, %c0_171, %c0_172] : memref<2x8x7xf32, #tpu.memory_space<vmem>>, vector<2x8x7xf32>
    tpu.vector_store %arg13[%c0_170, %c0_171, %c0_172], %1022 {strides = array<i32>} : memref<2x8x7xf32, #tpu.memory_space<vmem>>, vector<2x8x7xf32>,
    return
  }
}

</mosaic_0001>

<llo_original>
// kernel: forward.1
$region0: #{forward.1}
  #allocation0 [shape = 'u32[]', space=smem, size = 0x4, offset = 0x4, fixed_abs, tag = 'smem constant byte address 0x4 - core index']
  #allocation1 [shape = 'u32[144,128]{1,0:T(1,128)}', space=vmem, size = 0x12000, scoped, tag = 'internal scratch']
  %s0 = inlined_call_operand.vmem [shape: f32[2,8,32], index: 0, kind: input, shape index: {}]
  %s1 = inlined_call_operand.vmem [shape: f32[32,256], index: 1, kind: input, shape index: {}]
  %s2 = inlined_call_operand.vmem [shape: f32[1,256], index: 2, kind: input, shape index: {}]
  %s3 = inlined_call_operand.vmem [shape: f32[32,128], index: 3, kind: input, shape index: {}]
  %s4 = inlined_call_operand.vmem [shape: f32[32,128], index: 4, kind: input, shape index: {}]
  %s5 = inlined_call_operand.vmem [shape: f32[64,256], index: 5, kind: input, shape index: {}]
  %s6 = inlined_call_operand.vmem [shape: f32[1,256], index: 6, kind: input, shape index: {}]
  %s7 = inlined_call_operand.vmem [shape: f32[32,128], index: 7, kind: input, shape index: {}]
  %s8 = inlined_call_operand.vmem [shape: f32[32,128], index: 8, kind: input, shape index: {}]
  %s9 = inlined_call_operand.vmem [shape: f32[64,64], index: 9, kind: input, shape index: {}]
  %s10 = inlined_call_operand.vmem [shape: f32[64,64], index: 10, kind: input, shape index: {}]
  %s11 = inlined_call_operand.vmem [shape: f32[64,7], index: 11, kind: input, shape index: {}]
  %s12 = inlined_call_operand.vmem [shape: f32[1,7], index: 12, kind: input, shape index: {}]
  %s13 = inlined_call_operand.vmem [shape: f32[2,8,7], index: 13, kind: output, shape index: {}]
  %s14 = sld [smem:[#allocation0]]
  $region62: #{forward.1} parent=0
    _
  %s16 = ssub.s32 1, %s14
  %s17 = scalar_select 0, %s16, %s14
  // Predicated region
  $region2: #{forward.1} parent=0 // pred_check
    _
  $region3: #{forward.1} parent=0 // pred_check_branch
    %19 = sbr.rel (0) target = $region5
  $region4: #{forward.1} parent=0 // pred_region
    _
  $region5: #{forward.1} parent=0 // pred_fallthru
    _
  // Predicated region
  $region6: #{forward.1} parent=0 // pred_check
    _
  $region7: #{forward.1} parent=0 // pred_check_branch
    %21 = sbr.rel (0) target = $region9
  $region8: #{forward.1} parent=0 // pred_region
    _
  $region9: #{forward.1} parent=0 // pred_fallthru
    _
  // Predicated region
  $region10: #{forward.1} parent=0 // pred_check
    _
  $region11: #{forward.1} parent=0 // pred_check_branch
    %23 = sbr.rel (0) target = $region13
  $region12: #{forward.1} parent=0 // pred_region
    _
  $region13: #{forward.1} parent=0 // pred_fallthru
    _
  // Predicated region
  $region14: #{forward.1} parent=0 // pred_check
    _
  $region15: #{forward.1} parent=0 // pred_check_branch
    %25 = sbr.rel (0) target = $region17
  $region16: #{forward.1} parent=0 // pred_region
    _
  $region17: #{forward.1} parent=0 // pred_fallthru
    _
  // Predicated region
  $region18: #{forward.1} parent=0 // pred_check
    _
  $region19: #{forward.1} parent=0 // pred_check_branch
    %27 = sbr.rel (0) target = $region21
  $region20: #{forward.1} parent=0 // pred_region
    _
  $region21: #{forward.1} parent=0 // pred_fallthru
    _
  // Predicated region
  $region22: #{forward.1} parent=0 // pred_check
    _
  $region23: #{forward.1} parent=0 // pred_check_branch
    %29 = sbr.rel (0) target = $region25
  $region24: #{forward.1} parent=0 // pred_region
    _
  $region25: #{forward.1} parent=0 // pred_fallthru
    _
  // Predicated region
  $region26: #{forward.1} parent=0 // pred_check
    _
  $region27: #{forward.1} parent=0 // pred_check_branch
    %31 = sbr.rel (0) target = $region29
  $region28: #{forward.1} parent=0 // pred_region
    _
  $region29: #{forward.1} parent=0 // pred_fallthru
    _
  // Predicated region
  $region30: #{forward.1} parent=0 // pred_check
    _
  $region31: #{forward.1} parent=0 // pred_check_branch
    %33 = sbr.rel (0) target = $region33
  $region32: #{forward.1} parent=0 // pred_region
    _
  $region33: #{forward.1} parent=0 // pred_fallthru
    _
  // Predicated region
  $region34: #{forward.1} parent=0 // pred_check
    _
  $region35: #{forward.1} parent=0 // pred_check_branch
    %35 = sbr.rel (0) target = $region37
  $region36: #{forward.1} parent=0 // pred_region
    _
  $region37: #{forward.1} parent=0 // pred_fallthru
    _
  // Predicated region
  $region38: #{forward.1} parent=0 // pred_check
    _
  $region39: #{forward.1} parent=0 // pred_check_branch
    %37 = sbr.rel (0) target = $region41
  $region40: #{forward.1} parent=0 // pred_region
    _
  $region41: #{forward.1} parent=0 // pred_fallthru
    _
  // Predicated region
  $region42: #{forward.1} parent=0 // pred_check
    _
  $region43: #{forward.1} parent=0 // pred_check_branch
    %39 = sbr.rel (0) target = $region45
  $region44: #{forward.1} parent=0 // pred_region
    _
  $region45: #{forward.1} parent=0 // pred_fallthru
    _
  // Predicated region
  $region46: #{forward.1} parent=0 // pred_check
    _
  $region47: #{forward.1} parent=0 // pred_check_branch
    %41 = sbr.rel (0) target = $region49
  $region48: #{forward.1} parent=0 // pred_region
    _
  $region49: #{forward.1} parent=0 // pred_fallthru
    _
  // Predicated region
  $region50: #{forward.1} parent=0 // pred_check
    _
  $region51: #{forward.1} parent=0 // pred_check_branch
    %43 = sbr.rel (0) target = $region53
  $region52: #{forward.1} parent=0 // pred_region
    _
  $region53: #{forward.1} parent=0 // pred_fallthru
    _
  %v44 = vld [vmem:[%s0] sm:$0xff]
  %v45 = vld [vmem:[%s0 + $0x8] sm:$0xff]
  %v46 = vld [vmem:[%s1] sm:$0xff]
  %v47 = vld [vmem:[%s1 + $0x8] sm:$0xff]
  %v48 = vld [vmem:[%s1 + $0x10] sm:$0xff]
  %v49 = vld [vmem:[%s1 + $0x18] sm:$0xff]
  %v50 = vld [vmem:[%s1 + $0x20] sm:$0xff]
  %v51 = vld [vmem:[%s1 + $0x28] sm:$0xff]
  %v52 = vld [vmem:[%s1 + $0x30] sm:$0xff]
  %v53 = vld [vmem:[%s1 + $0x38] sm:$0xff]
  %v54 = vld [vmem:[%s2] sm:$0x3]
  %v55 = vld [vmem:[%s3] sm:$0xff]
  %v56 = vld [vmem:[%s3 + $0x8] sm:$0xff]
  %v57 = vld [vmem:[%s3 + $0x10] sm:$0xff]
  %v58 = vld [vmem:[%s3 + $0x18] sm:$0xff]
  %v59 = vld [vmem:[%s4] sm:$0xff]
  %v60 = vld [vmem:[%s4 + $0x8] sm:$0xff]
  %v61 = vld [vmem:[%s4 + $0x10] sm:$0xff]
  %v62 = vld [vmem:[%s4 + $0x18] sm:$0xff]
  %v64 = vlaneseq
  %v65 = vshrl.u32 %v64, 7
  %v66 = vsub.s32 0, %v65
  %v67 = vrot.slane %v54, %v66
  %v68 = vlaneseq
  %v69 = vshrl.u32 %v68, 7
  %v70 = vsub.s32 1, %v69
  %v71 = vrot.slane %v54, %v70
  %vm74 = vcmask 261120
  %v76 = vsel %vm74, %v44, 0
  %v79 = vsel %vm74, %v45, 0
  %81 = vmatprep.subr.mxu0 %v47
  %82 = vmatpush1.msra.mxu0 %v46
  %83 = vmatprep.subr.mxu0 %v49
  %84 = vmatpush1.msra.mxu0 %v48
  %85 = vmatprep.subr.mxu0 %v51
  %86 = vmatpush1.msra.mxu0 %v50
  %87 = vmatprep.subr.mxu0 %v53
  %88 = vmatpush1.msra.mxu0 %v52
  %89 = vmatprep.subr.mxu0 0.0
  %90 = vmatpush1.msra.mxu0 0.0
  %91 = vmatprep.subr.mxu0 0.0
  %92 = vmatpush1.msra.mxu0 0.0
  %93 = vmatprep.subr.mxu0 0.0
  %94 = vmatpush1.msra.mxu0 0.0
  %95 = vmatprep.subr.mxu0 0.0
  %96 = vmatpush1.msra.mxu0 0.0
  %97 = vmatprep.subr.mxu0 0.0
  %98 = vmatpush1.msra.mxu0 0.0
  %99 = vmatprep.subr.mxu0 0.0
  %100 = vmatpush1.msra.mxu0 0.0
  %101 = vmatprep.subr.mxu0 0.0
  %102 = vmatpush1.msra.mxu0 0.0
  %103 = vmatprep.subr.mxu0 0.0
  %104 = vmatpush1.msra.mxu0 0.0
  %105 = vmatprep.subr.mxu0 0.0
  %106 = vmatpush1.msra.mxu0 0.0
  %107 = vmatprep.subr.mxu0 0.0
  %108 = vmatpush1.msra.mxu0 0.0
  %109 = vmatprep.subr.mxu0 0.0
  %110 = vmatpush1.msra.mxu0 0.0
  %111 = vmatprep.subr.mxu0 0.0
  %112 = vmatpush1.msra.mxu0 0.0
  %113 = vmatprep.subr.mxu0 0.0
  %114 = vmatpush1.msra.mxu0 0.0
  %115 = vmatprep.subr.mxu0 0.0
  %116 = vmatpush1.msra.mxu0 0.0
  %117 = vmatprep.subr.mxu0 0.0
  %118 = vmatpush1.msra.mxu0 0.0
  %119 = vmatprep.subr.mxu0 0.0
  %120 = vmatpush1.msra.mxu0 0.0
  %121 = vmatprep.subr.mxu0 0.0
  %122 = vmatpush1.msra.mxu0 0.0
  %123 = vmatprep.subr.mxu0 0.0
  %124 = vmatpush1.msra.mxu0 0.0
  %125 = vmatprep.subr.mxu0 0.0
  %126 = vmatpush1.msra.mxu0 0.0
  %127 = vmatprep.subr.mxu0 0.0
  %128 = vmatpush1.msra.mxu0 0.0
  %129 = vmatprep.subr.mxu0 0.0
  %130 = vmatpush1.msra.mxu0 0.0
  %131 = vmatprep.subr.mxu0 0.0
  %132 = vmatpush1.msra.mxu0 0.0
  %133 = vmatprep.subr.mxu0 0.0
  %134 = vmatpush1.msra.mxu0 0.0
  %135 = vmatprep.subr.mxu0 0.0
  %136 = vmatpush1.msra.mxu0 0.0
  %137 = vmatprep.subr.mxu0 0.0
  %138 = vmatpush1.msra.mxu0 0.0
  %139 = vmatprep.subr.mxu0 0.0
  %140 = vmatpush1.msra.mxu0 0.0
  %141 = vmatprep.subr.mxu0 0.0
  %142 = vmatpush1.msra.mxu0 0.0
  %143 = vmatprep.subr.mxu0 0.0
  %144 = vmatpush1.msra.mxu0 0.0
  %145 = vmatprep.mubr.f32.mxu0 0.0
  %146 = vmatmul.mubr.f32.gmra.mrb[0].mxu0 %v76
  %v147 = vpop.f32.mrb[0].mxu0
  %v148 = vadd.f32 %v67, %v147
  %v149 = vpop.f32.mrb[0].mxu0
  %v150 = vadd.f32 %v71, %v149
  %151 = vmatprep.mubr.f32.mxu0 0.0
  %152 = vmatmul.mubr.f32.gmra.mrb[0].mxu0 %v79
  %v153 = vpop.f32.mrb[0].mxu0
  %v154 = vadd.f32 %v67, %v153
  %v155 = vpop.f32.mrb[0].mxu0
  %v156 = vadd.f32 %v71, %v155
  %157 = vdwg.mxu0
  %v159 = vsel %vm74, 0.0, 0
  %161 = vmatprep.subr.mxu0 0.0
  %162 = vmatpush1.msra.mxu0 %v55
  %163 = vmatprep.subr.mxu0 0.0
  %164 = vmatpush1.msra.mxu0 %v56
  %165 = vmatprep.subr.mxu0 0.0
  %166 = vmatpush1.msra.mxu0 %v57
  %167 = vmatprep.subr.mxu0 0.0
  %168 = vmatpush1.msra.mxu0 %v58
  %169 = vmatprep.subr.mxu0 0.0
  %170 = vmatpush1.msra.mxu0 0.0
  %171 = vmatprep.subr.mxu0 0.0
  %172 = vmatpush1.msra.mxu0 0.0
  %173 = vmatprep.subr.mxu0 0.0
  %174 = vmatpush1.msra.mxu0 0.0
  %175 = vmatprep.subr.mxu0 0.0
  %176 = vmatpush1.msra.mxu0 0.0
  %177 = vmatprep.subr.mxu0 0.0
  %178 = vmatpush1.msra.mxu0 0.0
  %179 = vmatprep.subr.mxu0 0.0
  %180 = vmatpush1.msra.mxu0 0.0
  %181 = vmatprep.subr.mxu0 0.0
  %182 = vmatpush1.msra.mxu0 0.0
  %183 = vmatprep.subr.mxu0 0.0
  %184 = vmatpush1.msra.mxu0 0.0
  %185 = vmatprep.subr.mxu0 0.0
  %186 = vmatpush1.msra.mxu0 0.0
  %187 = vmatprep.subr.mxu0 0.0
  %188 = vmatpush1.msra.mxu0 0.0
  %189 = vmatprep.subr.mxu0 0.0
  %190 = vmatpush1.msra.mxu0 0.0
  %191 = vmatprep.subr.mxu0 0.0
  %192 = vmatpush1.msra.mxu0 0.0
  %193 = vmatprep.subr.mxu0 0.0
  %194 = vmatpush1.msra.mxu0 0.0
  %195 = vmatprep.subr.mxu0 0.0
  %196 = vmatpush1.msra.mxu0 0.0
  %197 = vmatprep.subr.mxu0 0.0
  %198 = vmatpush1.msra.mxu0 0.0
  %199 = vmatprep.subr.mxu0 0.0
  %200 = vmatpush1.msra.mxu0 0.0
  %201 = vmatprep.subr.mxu0 0.0
  %202 = vmatpush1.msra.mxu0 0.0
  %203 = vmatprep.subr.mxu0 0.0
  %204 = vmatpush1.msra.mxu0 0.0
  %205 = vmatprep.subr.mxu0 0.0
  %206 = vmatpush1.msra.mxu0 0.0
  %207 = vmatprep.subr.mxu0 0.0
  %208 = vmatpush1.msra.mxu0 0.0
  %209 = vmatprep.subr.mxu0 0.0
  %210 = vmatpush1.msra.mxu0 0.0
  %211 = vmatprep.subr.mxu0 0.0
  %212 = vmatpush1.msra.mxu0 0.0
  %213 = vmatprep.subr.mxu0 0.0
  %214 = vmatpush1.msra.mxu0 0.0
  %215 = vmatprep.subr.mxu0 0.0
  %216 = vmatpush1.msra.mxu0 0.0
  %217 = vmatprep.subr.mxu0 0.0
  %218 = vmatpush1.msra.mxu0 0.0
  %219 = vmatprep.subr.mxu0 0.0
  %220 = vmatpush1.msra.mxu0 0.0
  %221 = vmatprep.subr.mxu0 0.0
  %222 = vmatpush1.msra.mxu0 0.0
  %223 = vmatprep.subr.mxu0 0.0
  %224 = vmatpush1.msra.mxu0 0.0
  %225 = vmatprep.mubr.f32.mxu0 0.0
  %226 = vmatmul.mubr.f32.gmra.mrb[0].mxu0 %v159
  %v227 = vpop.f32.mrb[0].mxu0
  %v228 = vadd.f32 0.0, %v227
  %v229 = vpop.f32.mrb[0].mxu0
  %230 = vdwg.mxu0
  %v232 = vrot.slane %v228, 1
  %v235 = vadd.f32 %v148, %v228
  %v236 = vadd.f32 %v154, %v232
  %v237 = vxor.u32 %v235, 2147483648
  %v238 = vxor.u32 %v236, 2147483648
  %v239 = vmul.f32 %v237, 1.442695
  %v240 = vpow.pop %v239
  %v241 = vmul.f32 %v238, 1.442695
  %v242 = vpow.pop %v241
  %v243 = vadd.f32 %v240, 1.0
  %v244 = vadd.f32 %v242, 1.0
  %v245 = vrcp.pop %v243
  %v246 = vmul.f32 1.0, %v245
  %v247 = vrcp.pop %v244
  %v248 = vmul.f32 1.0, %v247
  %v249 = vtanh.pop %v235
  %v250 = vtanh.pop %v236
  %v251 = vmul.f32 %v246, 0.0
  %v252 = vmul.f32 %v248, 0.0
  %255 = vrot.lane.b32.xlu0 %v249, 64
  %v256 = vpop.permute.xlu0 %255
  %257 = vrot.lane.b32.xlu0 %v250, 64
  %v258 = vpop.permute.xlu0 %257
  %v261 = vmul.f32 %v246, %v256
  %v262 = vmul.f32 %v248, %v258
  %265 = vrot.lane.b32.xlu0 %v261, 32
  %v266 = vpop.permute.xlu0 %265
  %267 = vrot.lane.b32.xlu0 %v262, 32
  %v268 = vpop.permute.xlu0 %267
  %v271 = vadd.f32 %v251, %v266
  %v272 = vadd.f32 %v252, %v268
  %v273 = vtanh.pop %v271
  %v274 = vtanh.pop %v272
  %277 = vrot.lane.b32.xlu0 %v273, 64
  %v278 = vpop.permute.xlu0 %277
  %279 = vrot.lane.b32.xlu0 %v274, 64
  %v280 = vpop.permute.xlu0 %279
  %v283 = vmul.f32 %v246, %v278
  %v284 = vmul.f32 %v248, %v280
  %285 = vmatprep.subr.mxu0 0.0
  %286 = vmatpush1.msra.mxu0 %v59
  %287 = vmatprep.subr.mxu0 0.0
  %288 = vmatpush1.msra.mxu0 %v60
  %289 = vmatprep.subr.mxu0 0.0
  %290 = vmatpush1.msra.mxu0 %v61
  %291 = vmatprep.subr.mxu0 0.0
  %292 = vmatpush1.msra.mxu0 %v62
  %293 = vmatprep.subr.mxu0 0.0
  %294 = vmatpush1.msra.mxu0 0.0
  %295 = vmatprep.subr.mxu0 0.0
  %296 = vmatpush1.msra.mxu0 0.0
  %297 = vmatprep.subr.mxu0 0.0
  %298 = vmatpush1.msra.mxu0 0.0
  %299 = vmatprep.subr.mxu0 0.0
  %300 = vmatpush1.msra.mxu0 0.0
  %301 = vmatprep.subr.mxu0 0.0
  %302 = vmatpush1.msra.mxu0 0.0
  %303 = vmatprep.subr.mxu0 0.0
  %304 = vmatpush1.msra.mxu0 0.0
  %305 = vmatprep.subr.mxu0 0.0
  %306 = vmatpush1.msra.mxu0 0.0
  %307 = vmatprep.subr.mxu0 0.0
  %308 = vmatpush1.msra.mxu0 0.0
  %309 = vmatprep.subr.mxu0 0.0
  %310 = vmatpush1.msra.mxu0 0.0
  %311 = vmatprep.subr.mxu0 0.0
  %312 = vmatpush1.msra.mxu0 0.0
  %313 = vmatprep.subr.mxu0 0.0
  %314 = vmatpush1.msra.mxu0 0.0
  %315 = vmatprep.subr.mxu0 0.0
  %316 = vmatpush1.msra.mxu0 0.0
  %317 = vmatprep.subr.mxu0 0.0
  %318 = vmatpush1.msra.mxu0 0.0
  %319 = vmatprep.subr.mxu0 0.0
  %320 = vmatpush1.msra.mxu0 0.0
  %321 = vmatprep.subr.mxu0 0.0
  %322 = vmatpush1.msra.mxu0 0.0
  %323 = vmatprep.subr.mxu0 0.0
  %324 = vmatpush1.msra.mxu0 0.0
  %325 = vmatprep.subr.mxu0 0.0
  %326 = vmatpush1.msra.mxu0 0.0
  %327 = vmatprep.subr.mxu0 0.0
  %328 = vmatpush1.msra.mxu0 0.0
  %329 = vmatprep.subr.mxu0 0.0
  %330 = vmatpush1.msra.mxu0 0.0
  %331 = vmatprep.subr.mxu0 0.0
  %332 = vmatpush1.msra.mxu0 0.0
  %333 = vmatprep.subr.mxu0 0.0
  %334 = vmatpush1.msra.mxu0 0.0
  %335 = vmatprep.subr.mxu0 0.0
  %336 = vmatpush1.msra.mxu0 0.0
  %337 = vmatprep.subr.mxu0 0.0
  %338 = vmatpush1.msra.mxu0 0.0
  %339 = vmatprep.subr.mxu0 0.0
  %340 = vmatpush1.msra.mxu0 0.0
  %341 = vmatprep.subr.mxu0 0.0
  %342 = vmatpush1.msra.mxu0 0.0
  %343 = vmatprep.subr.mxu0 0.0
  %344 = vmatpush1.msra.mxu0 0.0
  %345 = vmatprep.subr.mxu0 0.0
  %346 = vmatpush1.msra.mxu0 0.0
  %347 = vmatprep.subr.mxu0 0.0
  %348 = vmatpush1.msra.mxu0 0.0
  %349 = vmatprep.mubr.f32.mxu0 0.0
  %350 = vmatmul.mubr.f32.gmra.mrb[0].mxu0 %v159
  %v351 = vpop.f32.mrb[0].mxu0
  %v352 = vadd.f32 0.0, %v351
  %v353 = vpop.f32.mrb[0].mxu0
  %354 = vdwg.mxu0
  %v356 = vrot.slane %v352, 1
  %v357 = vrot.slane %v352, 2
  %v360 = vadd.f32 %v150, %v356
  %v361 = vadd.f32 %v156, %v357
  %v362 = vxor.u32 %v360, 2147483648
  %v363 = vxor.u32 %v361, 2147483648
  %v364 = vmul.f32 %v362, 1.442695
  %v365 = vpow.pop %v364
  %v366 = vmul.f32 %v363, 1.442695
  %v367 = vpow.pop %v366
  %v368 = vadd.f32 %v365, 1.0
  %v369 = vadd.f32 %v367, 1.0
  %v370 = vrcp.pop %v368
  %v371 = vmul.f32 1.0, %v370
  %v372 = vrcp.pop %v369
  %v373 = vmul.f32 1.0, %v372
  %v374 = vtanh.pop %v360
  %v375 = vtanh.pop %v361
  %v376 = vmul.f32 %v371, 0.0
  %v377 = vmul.f32 %v373, 0.0
  %380 = vrot.lane.b32.xlu0 %v374, 64
  %v381 = vpop.permute.xlu0 %380
  %382 = vrot.lane.b32.xlu0 %v375, 64
  %v383 = vpop.permute.xlu0 %382
  %v386 = vmul.f32 %v371, %v381
  %v387 = vmul.f32 %v373, %v383
  %390 = vrot.lane.b32.xlu0 %v386, 32
  %v391 = vpop.permute.xlu0 %390
  %392 = vrot.lane.b32.xlu0 %v387, 32
  %v393 = vpop.permute.xlu0 %392
  %v396 = vadd.f32 %v376, %v391
  %v397 = vadd.f32 %v377, %v393
  %v398 = vtanh.pop %v396
  %v399 = vtanh.pop %v397
  %402 = vrot.lane.b32.xlu0 %v398, 64
  %v403 = vpop.permute.xlu0 %402
  %404 = vrot.lane.b32.xlu0 %v399, 64
  %v405 = vpop.permute.xlu0 %404
  %v408 = vmul.f32 %v371, %v403
  %v409 = vmul.f32 %v373, %v405
  %v412 = vrot.slane %v284, 7
  %vm413 = vcmask 1041409
  %v414 = vsel %vm413, %v412, %v283
  %415 = vrot.lane.b32.xlu0 %v414, 32
  %v416 = vpop.permute.xlu0 %415
  %v417 = vsel %vm74, %v416, 0
  %419 = vmatprep.subr.mxu0 0.0
  %420 = vmatpush1.msra.mxu0 %v55
  %421 = vmatprep.subr.mxu0 0.0
  %422 = vmatpush1.msra.mxu0 %v56
  %423 = vmatprep.subr.mxu0 0.0
  %424 = vmatpush1.msra.mxu0 %v57
  %425 = vmatprep.subr.mxu0 0.0
  %426 = vmatpush1.msra.mxu0 %v58
  %427 = vmatprep.subr.mxu0 0.0
  %428 = vmatpush1.msra.mxu0 0.0
  %429 = vmatprep.subr.mxu0 0.0
  %430 = vmatpush1.msra.mxu0 0.0
  %431 = vmatprep.subr.mxu0 0.0
  %432 = vmatpush1.msra.mxu0 0.0
  %433 = vmatprep.subr.mxu0 0.0
  %434 = vmatpush1.msra.mxu0 0.0
  %435 = vmatprep.subr.mxu0 0.0
  %436 = vmatpush1.msra.mxu0 0.0
  %437 = vmatprep.subr.mxu0 0.0
  %438 = vmatpush1.msra.mxu0 0.0
  %439 = vmatprep.subr.mxu0 0.0
  %440 = vmatpush1.msra.mxu0 0.0
  %441 = vmatprep.subr.mxu0 0.0
  %442 = vmatpush1.msra.mxu0 0.0
  %443 = vmatprep.subr.mxu0 0.0
  %444 = vmatpush1.msra.mxu0 0.0
  %445 = vmatprep.subr.mxu0 0.0
  %446 = vmatpush1.msra.mxu0 0.0
  %447 = vmatprep.subr.mxu0 0.0
  %448 = vmatpush1.msra.mxu0 0.0
  %449 = vmatprep.subr.mxu0 0.0
  %450 = vmatpush1.msra.mxu0 0.0
  %451 = vmatprep.subr.mxu0 0.0
  %452 = vmatpush1.msra.mxu0 0.0
  %453 = vmatprep.subr.mxu0 0.0
  %454 = vmatpush1.msra.mxu0 0.0
  %455 = vmatprep.subr.mxu0 0.0
  %456 = vmatpush1.msra.mxu0 0.0
  %457 = vmatprep.subr.mxu0 0.0
  %458 = vmatpush1.msra.mxu0 0.0
  %459 = vmatprep.subr.mxu0 0.0
  %460 = vmatpush1.msra.mxu0 0.0
  %461 = vmatprep.subr.mxu0 0.0
  %462 = vmatpush1.msra.mxu0 0.0
  %463 = vmatprep.subr.mxu0 0.0
  %464 = vmatpush1.msra.mxu0 0.0
  %465 = vmatprep.subr.mxu0 0.0
  %466 = vmatpush1.msra.mxu0 0.0
  %467 = vmatprep.subr.mxu0 0.0
  %468 = vmatpush1.msra.mxu0 0.0
  %469 = vmatprep.subr.mxu0 0.0
  %470 = vmatpush1.msra.mxu0 0.0
  %471 = vmatprep.subr.mxu0 0.0
  %472 = vmatpush1.msra.mxu0 0.0
  %473 = vmatprep.subr.mxu0 0.0
  %474 = vmatpush1.msra.mxu0 0.0
  %475 = vmatprep.subr.mxu0 0.0
  %476 = vmatpush1.msra.mxu0 0.0
  %477 = vmatprep.subr.mxu0 0.0
  %478 = vmatpush1.msra.mxu0 0.0
  %479 = vmatprep.subr.mxu0 0.0
  %480 = vmatpush1.msra.mxu0 0.0
  %481 = vmatprep.subr.mxu0 0.0
  %482 = vmatpush1.msra.mxu0 0.0
  %483 = vmatprep.mubr.f32.mxu0 0.0
  %484 = vmatmul.mubr.f32.gmra.mrb[0].mxu0 %v417
  %v485 = vpop.f32.mrb[0].mxu0
  %v486 = vadd.f32 0.0, %v485
  %v487 = vpop.f32.mrb[0].mxu0
  %488 = vdwg.mxu0
  %v490 = vrot.slane %v486, 7
  %v493 = vadd.f32 %v148, %v490
  %v494 = vadd.f32 %v154, %v486
  %v495 = vxor.u32 %v493, 2147483648
  %v496 = vxor.u32 %v494, 2147483648
  %v497 = vmul.f32 %v495, 1.442695
  %v498 = vpow.pop %v497
  %v499 = vmul.f32 %v496, 1.442695
  %v500 = vpow.pop %v499
  %v501 = vadd.f32 %v498, 1.0
  %v502 = vadd.f32 %v500, 1.0
  %v503 = vrcp.pop %v501
  %v504 = vmul.f32 1.0, %v503
  %v505 = vrcp.pop %v502
  %v506 = vmul.f32 1.0, %v505
  %v507 = vtanh.pop %v493
  %v508 = vtanh.pop %v494
  %v511 = vrot.slane %v271, 7
  %v512 = vrot.slane %v272, 7
  %v515 = vmul.f32 %v504, %v511
  %v516 = vmul.f32 %v506, %v512
  %519 = vrot.lane.b32.xlu0 %v507, 64
  %v520 = vpop.permute.xlu0 %519
  %521 = vrot.lane.b32.xlu0 %v508, 64
  %v522 = vpop.permute.xlu0 %521
  %v525 = vmul.f32 %v504, %v520
  %v526 = vmul.f32 %v506, %v522
  %529 = vrot.lane.b32.xlu0 %v525, 32
  %v530 = vpop.permute.xlu0 %529
  %531 = vrot.lane.b32.xlu0 %v526, 32
  %v532 = vpop.permute.xlu0 %531
  %v535 = vadd.f32 %v515, %v530
  %v536 = vadd.f32 %v516, %v532
  %v537 = vtanh.pop %v535
  %v538 = vtanh.pop %v536
  %541 = vrot.lane.b32.xlu0 %v537, 64
  %v542 = vpop.permute.xlu0 %541
  %543 = vrot.lane.b32.xlu0 %v538, 64
  %v544 = vpop.permute.xlu0 %543
  %v547 = vmul.f32 %v504, %v542
  %v548 = vmul.f32 %v506, %v544
  %v551 = vrot.slane %v408, 7
  %v552 = vrot.slane %v409, 6
  %v553 = vsel %vm413, %v552, %v551
  %554 = vrot.lane.b32.xlu0 %v553, 32
  %v555 = vpop.permute.xlu0 %554
  %v556 = vsel %vm74, %v555, 0
  %558 = vmatprep.subr.mxu0 0.0
  %559 = vmatpush1.msra.mxu0 %v59
  %560 = vmatprep.subr.mxu0 0.0
  %561 = vmatpush1.msra.mxu0 %v60
  %562 = vmatprep.subr.mxu0 0.0
  %563 = vmatpush1.msra.mxu0 %v61
  %564 = vmatprep.subr.mxu0 0.0
  %565 = vmatpush1.msra.mxu0 %v62
  %566 = vmatprep.subr.mxu0 0.0
  %567 = vmatpush1.msra.mxu0 0.0
  %568 = vmatprep.subr.mxu0 0.0
  %569 = vmatpush1.msra.mxu0 0.0
  %570 = vmatprep.subr.mxu0 0.0
  %571 = vmatpush1.msra.mxu0 0.0
  %572 = vmatprep.subr.mxu0 0.0
  %573 = vmatpush1.msra.mxu0 0.0
  %574 = vmatprep.subr.mxu0 0.0
  %575 = vmatpush1.msra.mxu0 0.0
  %576 = vmatprep.subr.mxu0 0.0
  %577 = vmatpush1.msra.mxu0 0.0
  %578 = vmatprep.subr.mxu0 0.0
  %579 = vmatpush1.msra.mxu0 0.0
  %580 = vmatprep.subr.mxu0 0.0
  %581 = vmatpush1.msra.mxu0 0.0
  %582 = vmatprep.subr.mxu0 0.0
  %583 = vmatpush1.msra.mxu0 0.0
  %584 = vmatprep.subr.mxu0 0.0
  %585 = vmatpush1.msra.mxu0 0.0
  %586 = vmatprep.subr.mxu0 0.0
  %587 = vmatpush1.msra.mxu0 0.0
  %588 = vmatprep.subr.mxu0 0.0
  %589 = vmatpush1.msra.mxu0 0.0
  %590 = vmatprep.subr.mxu0 0.0
  %591 = vmatpush1.msra.mxu0 0.0
  %592 = vmatprep.subr.mxu0 0.0
  %593 = vmatpush1.msra.mxu0 0.0
  %594 = vmatprep.subr.mxu0 0.0
  %595 = vmatpush1.msra.mxu0 0.0
  %596 = vmatprep.subr.mxu0 0.0
  %597 = vmatpush1.msra.mxu0 0.0
  %598 = vmatprep.subr.mxu0 0.0
  %599 = vmatpush1.msra.mxu0 0.0
  %600 = vmatprep.subr.mxu0 0.0
  %601 = vmatpush1.msra.mxu0 0.0
  %602 = vmatprep.subr.mxu0 0.0
  %603 = vmatpush1.msra.mxu0 0.0
  %604 = vmatprep.subr.mxu0 0.0
  %605 = vmatpush1.msra.mxu0 0.0
  %606 = vmatprep.subr.mxu0 0.0
  %607 = vmatpush1.msra.mxu0 0.0
  %608 = vmatprep.subr.mxu0 0.0
  %609 = vmatpush1.msra.mxu0 0.0
  %610 = vmatprep.subr.mxu0 0.0
  %611 = vmatpush1.msra.mxu0 0.0
  %612 = vmatprep.subr.mxu0 0.0
  %613 = vmatpush1.msra.mxu0 0.0
  %614 = vmatprep.subr.mxu0 0.0
  %615 = vmatpush1.msra.mxu0 0.0
  %616 = vmatprep.subr.mxu0 0.0
  %617 = vmatpush1.msra.mxu0 0.0
  %618 = vmatprep.subr.mxu0 0.0
  %619 = vmatpush1.msra.mxu0 0.0
  %620 = vmatprep.subr.mxu0 0.0
  %621 = vmatpush1.msra.mxu0 0.0
  %622 = vmatprep.mubr.f32.mxu0 0.0
  %623 = vmatmul.mubr.f32.gmra.mrb[0].mxu0 %v556
  %v624 = vpop.f32.mrb[0].mxu0
  %v625 = vadd.f32 0.0, %v624
  %v626 = vpop.f32.mrb[0].mxu0
  %627 = vdwg.mxu0
  %v629 = vrot.slane %v625, 2
  %v630 = vrot.slane %v625, 3
  %v633 = vadd.f32 %v150, %v629
  %v634 = vadd.f32 %v156, %v630
  %v635 = vxor.u32 %v633, 2147483648
  %v636 = vxor.u32 %v634, 2147483648
  %v637 = vmul.f32 %v635, 1.442695
  %v638 = vpow.pop %v637
  %v639 = vmul.f32 %v636, 1.442695
  %v640 = vpow.pop %v639
  %v641 = vadd.f32 %v638, 1.0
  %v642 = vadd.f32 %v640, 1.0
  %v643 = vrcp.pop %v641
  %v644 = vmul.f32 1.0, %v643
  %v645 = vrcp.pop %v642
  %v646 = vmul.f32 1.0, %v645
  %v647 = vtanh.pop %v633
  %v648 = vtanh.pop %v634
  %v651 = vrot.slane %v396, 1
  %v652 = vrot.slane %v397, 1
  %v655 = vmul.f32 %v644, %v651
  %v656 = vmul.f32 %v646, %v652
  %659 = vrot.lane.b32.xlu0 %v647, 64
  %v660 = vpop.permute.xlu0 %659
  %661 = vrot.lane.b32.xlu0 %v648, 64
  %v662 = vpop.permute.xlu0 %661
  %v665 = vmul.f32 %v644, %v660
  %v666 = vmul.f32 %v646, %v662
  %669 = vrot.lane.b32.xlu0 %v665, 32
  %v670 = vpop.permute.xlu0 %669
  %671 = vrot.lane.b32.xlu0 %v666, 32
  %v672 = vpop.permute.xlu0 %671
  %v675 = vadd.f32 %v655, %v670
  %v676 = vadd.f32 %v656, %v672
  %v677 = vtanh.pop %v675
  %v678 = vtanh.pop %v676
  %681 = vrot.lane.b32.xlu0 %v677, 64
  %v682 = vpop.permute.xlu0 %681
  %683 = vrot.lane.b32.xlu0 %v678, 64
  %v684 = vpop.permute.xlu0 %683
  %v687 = vmul.f32 %v644, %v682
  %v688 = vmul.f32 %v646, %v684
  %v691 = vrot.slane %v547, 1
  %v692 = vsel %vm413, %v548, %v691
  %693 = vrot.lane.b32.xlu0 %v692, 32
  %v694 = vpop.permute.xlu0 %693
  %v695 = vsel %vm74, %v694, 0
  %697 = vmatprep.subr.mxu0 0.0
  %698 = vmatpush1.msra.mxu0 %v55
  %699 = vmatprep.subr.mxu0 0.0
  %700 = vmatpush1.msra.mxu0 %v56
  %701 = vmatprep.subr.mxu0 0.0
  %702 = vmatpush1.msra.mxu0 %v57
  %703 = vmatprep.subr.mxu0 0.0
  %704 = vmatpush1.msra.mxu0 %v58
  %705 = vmatprep.subr.mxu0 0.0
  %706 = vmatpush1.msra.mxu0 0.0
  %707 = vmatprep.subr.mxu0 0.0
  %708 = vmatpush1.msra.mxu0 0.0
  %709 = vmatprep.subr.mxu0 0.0
  %710 = vmatpush1.msra.mxu0 0.0
  %711 = vmatprep.subr.mxu0 0.0
  %712 = vmatpush1.msra.mxu0 0.0
  %713 = vmatprep.subr.mxu0 0.0
  %714 = vmatpush1.msra.mxu0 0.0
  %715 = vmatprep.subr.mxu0 0.0
  %716 = vmatpush1.msra.mxu0 0.0
  %717 = vmatprep.subr.mxu0 0.0
  %718 = vmatpush1.msra.mxu0 0.0
  %719 = vmatprep.subr.mxu0 0.0
  %720 = vmatpush1.msra.mxu0 0.0
  %721 = vmatprep.subr.mxu0 0.0
  %722 = vmatpush1.msra.mxu0 0.0
  %723 = vmatprep.subr.mxu0 0.0
  %724 = vmatpush1.msra.mxu0 0.0
  %725 = vmatprep.subr.mxu0 0.0
  %726 = vmatpush1.msra.mxu0 0.0
  %727 = vmatprep.subr.mxu0 0.0
  %728 = vmatpush1.msra.mxu0 0.0
  %729 = vmatprep.subr.mxu0 0.0
  %730 = vmatpush1.msra.mxu0 0.0
  %731 = vmatprep.subr.mxu0 0.0
  %732 = vmatpush1.msra.mxu0 0.0
  %733 = vmatprep.subr.mxu0 0.0
  %734 = vmatpush1.msra.mxu0 0.0
  %735 = vmatprep.subr.mxu0 0.0
  %736 = vmatpush1.msra.mxu0 0.0
  %737 = vmatprep.subr.mxu0 0.0
  %738 = vmatpush1.msra.mxu0 0.0
  %739 = vmatprep.subr.mxu0 0.0
  %740 = vmatpush1.msra.mxu0 0.0
  %741 = vmatprep.subr.mxu0 0.0
  %742 = vmatpush1.msra.mxu0 0.0
  %743 = vmatprep.subr.mxu0 0.0
  %744 = vmatpush1.msra.mxu0 0.0
  %745 = vmatprep.subr.mxu0 0.0
  %746 = vmatpush1.msra.mxu0 0.0
  %747 = vmatprep.subr.mxu0 0.0
  %748 = vmatpush1.msra.mxu0 0.0
  %749 = vmatprep.subr.mxu0 0.0
  %750 = vmatpush1.msra.mxu0 0.0
  %751 = vmatprep.subr.mxu0 0.0
  %752 = vmatpush1.msra.mxu0 0.0
  %753 = vmatprep.subr.mxu0 0.0
  %754 = vmatpush1.msra.mxu0 0.0
  %755 = vmatprep.subr.mxu0 0.0
  %756 = vmatpush1.msra.mxu0 0.0
  %757 = vmatprep.subr.mxu0 0.0
  %758 = vmatpush1.msra.mxu0 0.0
  %759 = vmatprep.subr.mxu0 0.0
  %760 = vmatpush1.msra.mxu0 0.0
  %761 = vmatprep.mubr.f32.mxu0 0.0
  %762 = vmatmul.mubr.f32.gmra.mrb[0].mxu0 %v695
  %v763 = vpop.f32.mrb[0].mxu0
  %v764 = vadd.f32 0.0, %v763
  %v765 = vpop.f32.mrb[0].mxu0
  %766 = vdwg.mxu0
  %v768 = vrot.slane %v764, 6
  %v769 = vrot.slane %v764, 7
  %v772 = vadd.f32 %v148, %v768
  %v773 = vadd.f32 %v154, %v769
  %v774 = vxor.u32 %v772, 2147483648
  %v775 = vxor.u32 %v773, 2147483648
  %v776 = vmul.f32 %v774, 1.442695
  %v777 = vpow.pop %v776
  %v778 = vmul.f32 %v775, 1.442695
  %v779 = vpow.pop %v778
  %v780 = vadd.f32 %v777, 1.0
  %v781 = vadd.f32 %v779, 1.0
  %v782 = vrcp.pop %v780
  %v783 = vmul.f32 1.0, %v782
  %v784 = vrcp.pop %v781
  %v785 = vmul.f32 1.0, %v784
  %v786 = vtanh.pop %v772
  %v787 = vtanh.pop %v773
  %v790 = vrot.slane %v535, 7
  %v791 = vrot.slane %v536, 7
  %v794 = vmul.f32 %v783, %v790
  %v795 = vmul.f32 %v785, %v791
  %798 = vrot.lane.b32.xlu0 %v786, 64
  %v799 = vpop.permute.xlu0 %798
  %800 = vrot.lane.b32.xlu0 %v787, 64
  %v801 = vpop.permute.xlu0 %800
  %v804 = vmul.f32 %v783, %v799
  %v805 = vmul.f32 %v785, %v801
  %808 = vrot.lane.b32.xlu0 %v804, 32
  %v809 = vpop.permute.xlu0 %808
  %810 = vrot.lane.b32.xlu0 %v805, 32
  %v811 = vpop.permute.xlu0 %810
  %v814 = vadd.f32 %v794, %v809
  %v815 = vadd.f32 %v795, %v811
  %v816 = vtanh.pop %v814
  %v817 = vtanh.pop %v815
  %820 = vrot.lane.b32.xlu0 %v816, 64
  %v821 = vpop.permute.xlu0 %820
  %822 = vrot.lane.b32.xlu0 %v817, 64
  %v823 = vpop.permute.xlu0 %822
  %v826 = vmul.f32 %v783, %v821
  %v827 = vmul.f32 %v785, %v823
  %v830 = vrot.slane %v687, 6
  %v831 = vrot.slane %v688, 5
  %v832 = vsel %vm413, %v831, %v830
  %833 = vrot.lane.b32.xlu0 %v832, 32
  %v834 = vpop.permute.xlu0 %833
  %v835 = vsel %vm74, %v834, 0
  %837 = vmatprep.subr.mxu0 0.0
  %838 = vmatpush1.msra.mxu0 %v59
  %839 = vmatprep.subr.mxu0 0.0
  %840 = vmatpush1.msra.mxu0 %v60
  %841 = vmatprep.subr.mxu0 0.0
  %842 = vmatpush1.msra.mxu0 %v61
  %843 = vmatprep.subr.mxu0 0.0
  %844 = vmatpush1.msra.mxu0 %v62
  %845 = vmatprep.subr.mxu0 0.0
  %846 = vmatpush1.msra.mxu0 0.0
  %847 = vmatprep.subr.mxu0 0.0
  %848 = vmatpush1.msra.mxu0 0.0
  %849 = vmatprep.subr.mxu0 0.0
  %850 = vmatpush1.msra.mxu0 0.0
  %851 = vmatprep.subr.mxu0 0.0
  %852 = vmatpush1.msra.mxu0 0.0
  %853 = vmatprep.subr.mxu0 0.0
  %854 = vmatpush1.msra.mxu0 0.0
  %855 = vmatprep.subr.mxu0 0.0
  %856 = vmatpush1.msra.mxu0 0.0
  %857 = vmatprep.subr.mxu0 0.0
  %858 = vmatpush1.msra.mxu0 0.0
  %859 = vmatprep.subr.mxu0 0.0
  %860 = vmatpush1.msra.mxu0 0.0
  %861 = vmatprep.subr.mxu0 0.0
  %862 = vmatpush1.msra.mxu0 0.0
  %863 = vmatprep.subr.mxu0 0.0
  %864 = vmatpush1.msra.mxu0 0.0
  %865 = vmatprep.subr.mxu0 0.0
  %866 = vmatpush1.msra.mxu0 0.0
  %867 = vmatprep.subr.mxu0 0.0
  %868 = vmatpush1.msra.mxu0 0.0
  %869 = vmatprep.subr.mxu0 0.0
  %870 = vmatpush1.msra.mxu0 0.0
  %871 = vmatprep.subr.mxu0 0.0
  %872 = vmatpush1.msra.mxu0 0.0
  %873 = vmatprep.subr.mxu0 0.0
  %874 = vmatpush1.msra.mxu0 0.0
  %875 = vmatprep.subr.mxu0 0.0
  %876 = vmatpush1.msra.mxu0 0.0
  %877 = vmatprep.subr.mxu0 0.0
  %878 = vmatpush1.msra.mxu0 0.0
  %879 = vmatprep.subr.mxu0 0.0
  %880 = vmatpush1.msra.mxu0 0.0
  %881 = vmatprep.subr.mxu0 0.0
  %882 = vmatpush1.msra.mxu0 0.0
  %883 = vmatprep.subr.mxu0 0.0
  %884 = vmatpush1.msra.mxu0 0.0
  %885 = vmatprep.subr.mxu0 0.0
  %886 = vmatpush1.msra.mxu0 0.0
  %887 = vmatprep.subr.mxu0 0.0
  %888 = vmatpush1.msra.mxu0 0.0
  %889 = vmatprep.subr.mxu0 0.0
  %890 = vmatpush1.msra.mxu0 0.0
  %891 = vmatprep.subr.mxu0 0.0
  %892 = vmatpush1.msra.mxu0 0.0
  %893 = vmatprep.subr.mxu0 0.0
  %894 = vmatpush1.msra.mxu0 0.0
  %895 = vmatprep.subr.mxu0 0.0
  %896 = vmatpush1.msra.mxu0 0.0
  %897 = vmatprep.subr.mxu0 0.0
  %898 = vmatpush1.msra.mxu0 0.0
  %899 = vmatprep.subr.mxu0 0.0
  %900 = vmatpush1.msra.mxu0 0.0
  %901 = vmatprep.mubr.f32.mxu0 0.0
  %902 = vmatmul.mubr.f32.gmra.mrb[0].mxu0 %v835
  %v903 = vpop.f32.mrb[0].mxu0
  %v904 = vadd.f32 0.0, %v903
  %v905 = vpop.f32.mrb[0].mxu0
  %906 = vdwg.mxu0
  %v908 = vrot.slane %v904, 3
  %v909 = vrot.slane %v904, 4
  %v912 = vadd.f32 %v150, %v908
  %v913 = vadd.f32 %v156, %v909
  %v914 = vxor.u32 %v912, 2147483648
  %v915 = vxor.u32 %v913, 2147483648
  %v916 = vmul.f32 %v914, 1.442695
  %v917 = vpow.pop %v916
  %v918 = vmul.f32 %v915, 1.442695
  %v919 = vpow.pop %v918
  %v920 = vadd.f32 %v917, 1.0
  %v921 = vadd.f32 %v919, 1.0
  %v922 = vrcp.pop %v920
  %v923 = vmul.f32 1.0, %v922
  %v924 = vrcp.pop %v921
  %v925 = vmul.f32 1.0, %v924
  %v926 = vtanh.pop %v912
  %v927 = vtanh.pop %v913
  %v930 = vrot.slane %v675, 1
  %v931 = vrot.slane %v676, 1
  %v934 = vmul.f32 %v923, %v930
  %v935 = vmul.f32 %v925, %v931
  %938 = vrot.lane.b32.xlu0 %v926, 64
  %v939 = vpop.permute.xlu0 %938
  %940 = vrot.lane.b32.xlu0 %v927, 64
  %v941 = vpop.permute.xlu0 %940
  %v944 = vmul.f32 %v923, %v939
  %v945 = vmul.f32 %v925, %v941
  %948 = vrot.lane.b32.xlu0 %v944, 32
  %v949 = vpop.permute.xlu0 %948
  %950 = vrot.lane.b32.xlu0 %v945, 32
  %v951 = vpop.permute.xlu0 %950
  %v954 = vadd.f32 %v934, %v949
  %v955 = vadd.f32 %v935, %v951
  %v956 = vtanh.pop %v954
  %v957 = vtanh.pop %v955
  %960 = vrot.lane.b32.xlu0 %v956, 64
  %v961 = vpop.permute.xlu0 %960
  %962 = vrot.lane.b32.xlu0 %v957, 64
  %v963 = vpop.permute.xlu0 %962
  %v966 = vmul.f32 %v923, %v961
  %v967 = vmul.f32 %v925, %v963
  %v970 = vrot.slane %v826, 2
  %v971 = vrot.slane %v827, 1
  %v972 = vsel %vm413, %v971, %v970
  %973 = vrot.lane.b32.xlu0 %v972, 32
  %v974 = vpop.permute.xlu0 %973
  %v975 = vsel %vm74, %v974, 0
  %977 = vmatprep.subr.mxu0 0.0
  %978 = vmatpush1.msra.mxu0 %v55
  %979 = vmatprep.subr.mxu0 0.0
  %980 = vmatpush1.msra.mxu0 %v56
  %981 = vmatprep.subr.mxu0 0.0
  %982 = vmatpush1.msra.mxu0 %v57
  %983 = vmatprep.subr.mxu0 0.0
  %984 = vmatpush1.msra.mxu0 %v58
  %985 = vmatprep.subr.mxu0 0.0
  %986 = vmatpush1.msra.mxu0 0.0
  %987 = vmatprep.subr.mxu0 0.0
  %988 = vmatpush1.msra.mxu0 0.0
  %989 = vmatprep.subr.mxu0 0.0
  %990 = vmatpush1.msra.mxu0 0.0
  %991 = vmatprep.subr.mxu0 0.0
  %992 = vmatpush1.msra.mxu0 0.0
  %993 = vmatprep.subr.mxu0 0.0
  %994 = vmatpush1.msra.mxu0 0.0
  %995 = vmatprep.subr.mxu0 0.0
  %996 = vmatpush1.msra.mxu0 0.0
  %997 = vmatprep.subr.mxu0 0.0
  %998 = vmatpush1.msra.mxu0 0.0
  %999 = vmatprep.subr.mxu0 0.0
  %1000 = vmatpush1.msra.mxu0 0.0
  %1001 = vmatprep.subr.mxu0 0.0
  %1002 = vmatpush1.msra.mxu0 0.0
  %1003 = vmatprep.subr.mxu0 0.0
  %1004 = vmatpush1.msra.mxu0 0.0
  %1005 = vmatprep.subr.mxu0 0.0
  %1006 = vmatpush1.msra.mxu0 0.0
  %1007 = vmatprep.subr.mxu0 0.0
  %1008 = vmatpush1.msra.mxu0 0.0
  %1009 = vmatprep.subr.mxu0 0.0
  %1010 = vmatpush1.msra.mxu0 0.0
  %1011 = vmatprep.subr.mxu0 0.0
  %1012 = vmatpush1.msra.mxu0 0.0
  %1013 = vmatprep.subr.mxu0 0.0
  %1014 = vmatpush1.msra.mxu0 0.0
  %1015 = vmatprep.subr.mxu0 0.0
  %1016 = vmatpush1.msra.mxu0 0.0
  %1017 = vmatprep.subr.mxu0 0.0
  %1018 = vmatpush1.msra.mxu0 0.0
  %1019 = vmatprep.subr.mxu0 0.0
  %1020 = vmatpush1.msra.mxu0 0.0
  %1021 = vmatprep.subr.mxu0 0.0
  %1022 = vmatpush1.msra.mxu0 0.0
  %1023 = vmatprep.subr.mxu0 0.0
  %1024 = vmatpush1.msra.mxu0 0.0
  %1025 = vmatprep.subr.mxu0 0.0
  %1026 = vmatpush1.msra.mxu0 0.0
  %1027 = vmatprep.subr.mxu0 0.0
  %1028 = vmatpush1.msra.mxu0 0.0
  %1029 = vmatprep.subr.mxu0 0.0
  %1030 = vmatpush1.msra.mxu0 0.0
  %1031 = vmatprep.subr.mxu0 0.0
  %1032 = vmatpush1.msra.mxu0 0.0
  %1033 = vmatprep.subr.mxu0 0.0
  %1034 = vmatpush1.msra.mxu0 0.0
  %1035 = vmatprep.subr.mxu0 0.0
  %1036 = vmatpush1.msra.mxu0 0.0
  %1037 = vmatprep.subr.mxu0 0.0
  %1038 = vmatpush1.msra.mxu0 0.0
  %1039 = vmatprep.subr.mxu0 0.0
  %1040 = vmatpush1.msra.mxu0 0.0
  %1041 = vmatprep.mubr.f32.mxu0 0.0
  %1042 = vmatmul.mubr.f32.gmra.mrb[0].mxu0 %v975
  %v1043 = vpop.f32.mrb[0].mxu0
  %v1044 = vadd.f32 0.0, %v1043
  %v1045 = vpop.f32.mrb[0].mxu0
  %1046 = vdwg.mxu0
  %v1048 = vrot.slane %v1044, 5
  %v1049 = vrot.slane %v1044, 6
  %v1052 = vadd.f32 %v148, %v1048
  %v1053 = vadd.f32 %v154, %v1049
  %v1054 = vxor.u32 %v1052, 2147483648
  %v1055 = vxor.u32 %v1053, 2147483648
  %v1056 = vmul.f32 %v1054, 1.442695
  %v1057 = vpow.pop %v1056
  %v1058 = vmul.f32 %v1055, 1.442695
  %v1059 = vpow.pop %v1058
  %v1060 = vadd.f32 %v1057, 1.0
  %v1061 = vadd.f32 %v1059, 1.0
  %v1062 = vrcp.pop %v1060
  %v1063 = vmul.f32 1.0, %v1062
  %v1064 = vrcp.pop %v1061
  %v1065 = vmul.f32 1.0, %v1064
  %v1066 = vtanh.pop %v1052
  %v1067 = vtanh.pop %v1053
  %v1070 = vrot.slane %v814, 7
  %v1071 = vrot.slane %v815, 7
  %v1074 = vmul.f32 %v1063, %v1070
  %v1075 = vmul.f32 %v1065, %v1071
  %1078 = vrot.lane.b32.xlu0 %v1066, 64
  %v1079 = vpop.permute.xlu0 %1078
  %1080 = vrot.lane.b32.xlu0 %v1067, 64
  %v1081 = vpop.permute.xlu0 %1080
  %v1084 = vmul.f32 %v1063, %v1079
  %v1085 = vmul.f32 %v1065, %v1081
  %1088 = vrot.lane.b32.xlu0 %v1084, 32
  %v1089 = vpop.permute.xlu0 %1088
  %1090 = vrot.lane.b32.xlu0 %v1085, 32
  %v1091 = vpop.permute.xlu0 %1090
  %v1094 = vadd.f32 %v1074, %v1089
  %v1095 = vadd.f32 %v1075, %v1091
  %v1096 = vtanh.pop %v1094
  %v1097 = vtanh.pop %v1095
  %1100 = vrot.lane.b32.xlu0 %v1096, 64
  %v1101 = vpop.permute.xlu0 %1100
  %1102 = vrot.lane.b32.xlu0 %v1097, 64
  %v1103 = vpop.permute.xlu0 %1102
  %v1106 = vmul.f32 %v1063, %v1101
  %v1107 = vmul.f32 %v1065, %v1103
  %v1110 = vrot.slane %v966, 5
  %v1111 = vrot.slane %v967, 4
  %v1112 = vsel %vm413, %v1111, %v1110
  %1113 = vrot.lane.b32.xlu0 %v1112, 32
  %v1114 = vpop.permute.xlu0 %1113
  %v1115 = vsel %vm74, %v1114, 0
  %1117 = vmatprep.subr.mxu0 0.0
  %1118 = vmatpush1.msra.mxu0 %v59
  %1119 = vmatprep.subr.mxu0 0.0
  %1120 = vmatpush1.msra.mxu0 %v60
  %1121 = vmatprep.subr.mxu0 0.0
  %1122 = vmatpush1.msra.mxu0 %v61
  %1123 = vmatprep.subr.mxu0 0.0
  %1124 = vmatpush1.msra.mxu0 %v62
  %1125 = vmatprep.subr.mxu0 0.0
  %1126 = vmatpush1.msra.mxu0 0.0
  %1127 = vmatprep.subr.mxu0 0.0
  %1128 = vmatpush1.msra.mxu0 0.0
  %1129 = vmatprep.subr.mxu0 0.0
  %1130 = vmatpush1.msra.mxu0 0.0
  %1131 = vmatprep.subr.mxu0 0.0
  %1132 = vmatpush1.msra.mxu0 0.0
  %1133 = vmatprep.subr.mxu0 0.0
  %1134 = vmatpush1.msra.mxu0 0.0
  %1135 = vmatprep.subr.mxu0 0.0
  %1136 = vmatpush1.msra.mxu0 0.0
  %1137 = vmatprep.subr.mxu0 0.0
  %1138 = vmatpush1.msra.mxu0 0.0
  %1139 = vmatprep.subr.mxu0 0.0
  %1140 = vmatpush1.msra.mxu0 0.0
  %1141 = vmatprep.subr.mxu0 0.0
  %1142 = vmatpush1.msra.mxu0 0.0
  %1143 = vmatprep.subr.mxu0 0.0
  %1144 = vmatpush1.msra.mxu0 0.0
  %1145 = vmatprep.subr.mxu0 0.0
  %1146 = vmatpush1.msra.mxu0 0.0
  %1147 = vmatprep.subr.mxu0 0.0
  %1148 = vmatpush1.msra.mxu0 0.0
  %1149 = vmatprep.subr.mxu0 0.0
  %1150 = vmatpush1.msra.mxu0 0.0
  %1151 = vmatprep.subr.mxu0 0.0
  %1152 = vmatpush1.msra.mxu0 0.0
  %1153 = vmatprep.subr.mxu0 0.0
  %1154 = vmatpush1.msra.mxu0 0.0
  %1155 = vmatprep.subr.mxu0 0.0
  %1156 = vmatpush1.msra.mxu0 0.0
  %1157 = vmatprep.subr.mxu0 0.0
  %1158 = vmatpush1.msra.mxu0 0.0
  %1159 = vmatprep.subr.mxu0 0.0
  %1160 = vmatpush1.msra.mxu0 0.0
  %1161 = vmatprep.subr.mxu0 0.0
  %1162 = vmatpush1.msra.mxu0 0.0
  %1163 = vmatprep.subr.mxu0 0.0
  %1164 = vmatpush1.msra.mxu0 0.0
  %1165 = vmatprep.subr.mxu0 0.0
  %1166 = vmatpush1.msra.mxu0 0.0
  %1167 = vmatprep.subr.mxu0 0.0
  %1168 = vmatpush1.msra.mxu0 0.0
  %1169 = vmatprep.subr.mxu0 0.0
  %1170 = vmatpush1.msra.mxu0 0.0
  %1171 = vmatprep.subr.mxu0 0.0
  %1172 = vmatpush1.msra.mxu0 0.0
  %1173 = vmatprep.subr.mxu0 0.0
  %1174 = vmatpush1.msra.mxu0 0.0
  %1175 = vmatprep.subr.mxu0 0.0
  %1176 = vmatpush1.msra.mxu0 0.0
  %1177 = vmatprep.subr.mxu0 0.0
  %1178 = vmatpush1.msra.mxu0 0.0
  %1179 = vmatprep.subr.mxu0 0.0
  %1180 = vmatpush1.msra.mxu0 0.0
  %1181 = vmatprep.mubr.f32.mxu0 0.0
  %1182 = vmatmul.mubr.f32.gmra.mrb[0].mxu0 %v1115
  %v1183 = vpop.f32.mrb[0].mxu0
  %v1184 = vadd.f32 0.0, %v1183
  %v1185 = vpop.f32.mrb[0].mxu0
  %1186 = vdwg.mxu0
  %v1188 = vrot.slane %v1184, 4
  %v1189 = vrot.slane %v1184, 5
  %v1192 = vadd.f32 %v150, %v1188
  %v1193 = vadd.f32 %v156, %v1189
  %v1194 = vxor.u32 %v1192, 2147483648
  %v1195 = vxor.u32 %v1193, 2147483648
  %v1196 = vmul.f32 %v1194, 1.442695
  %v1197 = vpow.pop %v1196
  %v1198 = vmul.f32 %v1195, 1.442695
  %v1199 = vpow.pop %v1198
  %v1200 = vadd.f32 %v1197, 1.0
  %v1201 = vadd.f32 %v1199, 1.0
  %v1202 = vrcp.pop %v1200
  %v1203 = vmul.f32 1.0, %v1202
  %v1204 = vrcp.pop %v1201
  %v1205 = vmul.f32 1.0, %v1204
  %v1206 = vtanh.pop %v1192
  %v1207 = vtanh.pop %v1193
  %v1210 = vrot.slane %v954, 1
  %v1211 = vrot.slane %v955, 1
  %v1214 = vmul.f32 %v1203, %v1210
  %v1215 = vmul.f32 %v1205, %v1211
  %1218 = vrot.lane.b32.xlu0 %v1206, 64
  %v1219 = vpop.permute.xlu0 %1218
  %1220 = vrot.lane.b32.xlu0 %v1207, 64
  %v1221 = vpop.permute.xlu0 %1220
  %v1224 = vmul.f32 %v1203, %v1219
  %v1225 = vmul.f32 %v1205, %v1221
  %1228 = vrot.lane.b32.xlu0 %v1224, 32
  %v1229 = vpop.permute.xlu0 %1228
  %1230 = vrot.lane.b32.xlu0 %v1225, 32
  %v1231 = vpop.permute.xlu0 %1230
  %v1234 = vadd.f32 %v1214, %v1229
  %v1235 = vadd.f32 %v1215, %v1231
  %v1236 = vtanh.pop %v1234
  %v1237 = vtanh.pop %v1235
  %1240 = vrot.lane.b32.xlu0 %v1236, 64
  %v1241 = vpop.permute.xlu0 %1240
  %1242 = vrot.lane.b32.xlu0 %v1237, 64
  %v1243 = vpop.permute.xlu0 %1242
  %v1246 = vmul.f32 %v1203, %v1241
  %v1247 = vmul.f32 %v1205, %v1243
  %v1250 = vrot.slane %v1106, 3
  %v1251 = vrot.slane %v1107, 2
  %v1252 = vsel %vm413, %v1251, %v1250
  %1253 = vrot.lane.b32.xlu0 %v1252, 32
  %v1254 = vpop.permute.xlu0 %1253
  %v1255 = vsel %vm74, %v1254, 0
  %1257 = vmatprep.subr.mxu0 0.0
  %1258 = vmatpush1.msra.mxu0 %v55
  %1259 = vmatprep.subr.mxu0 0.0
  %1260 = vmatpush1.msra.mxu0 %v56
  %1261 = vmatprep.subr.mxu0 0.0
  %1262 = vmatpush1.msra.mxu0 %v57
  %1263 = vmatprep.subr.mxu0 0.0
  %1264 = vmatpush1.msra.mxu0 %v58
  %1265 = vmatprep.subr.mxu0 0.0
  %1266 = vmatpush1.msra.mxu0 0.0
  %1267 = vmatprep.subr.mxu0 0.0
  %1268 = vmatpush1.msra.mxu0 0.0
  %1269 = vmatprep.subr.mxu0 0.0
  %1270 = vmatpush1.msra.mxu0 0.0
  %1271 = vmatprep.subr.mxu0 0.0
  %1272 = vmatpush1.msra.mxu0 0.0
  %1273 = vmatprep.subr.mxu0 0.0
  %1274 = vmatpush1.msra.mxu0 0.0
  %1275 = vmatprep.subr.mxu0 0.0
  %1276 = vmatpush1.msra.mxu0 0.0
  %1277 = vmatprep.subr.mxu0 0.0
  %1278 = vmatpush1.msra.mxu0 0.0
  %1279 = vmatprep.subr.mxu0 0.0
  %1280 = vmatpush1.msra.mxu0 0.0
  %1281 = vmatprep.subr.mxu0 0.0
  %1282 = vmatpush1.msra.mxu0 0.0
  %1283 = vmatprep.subr.mxu0 0.0
  %1284 = vmatpush1.msra.mxu0 0.0
  %1285 = vmatprep.subr.mxu0 0.0
  %1286 = vmatpush1.msra.mxu0 0.0
  %1287 = vmatprep.subr.mxu0 0.0
  %1288 = vmatpush1.msra.mxu0 0.0
  %1289 = vmatprep.subr.mxu0 0.0
  %1290 = vmatpush1.msra.mxu0 0.0
  %1291 = vmatprep.subr.mxu0 0.0
  %1292 = vmatpush1.msra.mxu0 0.0
  %1293 = vmatprep.subr.mxu0 0.0
  %1294 = vmatpush1.msra.mxu0 0.0
  %1295 = vmatprep.subr.mxu0 0.0
  %1296 = vmatpush1.msra.mxu0 0.0
  %1297 = vmatprep.subr.mxu0 0.0
  %1298 = vmatpush1.msra.mxu0 0.0
  %1299 = vmatprep.subr.mxu0 0.0
  %1300 = vmatpush1.msra.mxu0 0.0
  %1301 = vmatprep.subr.mxu0 0.0
  %1302 = vmatpush1.msra.mxu0 0.0
  %1303 = vmatprep.subr.mxu0 0.0
  %1304 = vmatpush1.msra.mxu0 0.0
  %1305 = vmatprep.subr.mxu0 0.0
  %1306 = vmatpush1.msra.mxu0 0.0
  %1307 = vmatprep.subr.mxu0 0.0
  %1308 = vmatpush1.msra.mxu0 0.0
  %1309 = vmatprep.subr.mxu0 0.0
  %1310 = vmatpush1.msra.mxu0 0.0
  %1311 = vmatprep.subr.mxu0 0.0
  %1312 = vmatpush1.msra.mxu0 0.0
  %1313 = vmatprep.subr.mxu0 0.0
  %1314 = vmatpush1.msra.mxu0 0.0
  %1315 = vmatprep.subr.mxu0 0.0
  %1316 = vmatpush1.msra.mxu0 0.0
  %1317 = vmatprep.subr.mxu0 0.0
  %1318 = vmatpush1.msra.mxu0 0.0
  %1319 = vmatprep.subr.mxu0 0.0
  %1320 = vmatpush1.msra.mxu0 0.0
  %1321 = vmatprep.mubr.f32.mxu0 0.0
  %1322 = vmatmul.mubr.f32.gmra.mrb[0].mxu0 %v1255
  %v1323 = vpop.f32.mrb[0].mxu0
  %v1324 = vadd.f32 0.0, %v1323
  %v1325 = vpop.f32.mrb[0].mxu0
  %1326 = vdwg.mxu0
  %v1328 = vrot.slane %v1324, 4
  %v1329 = vrot.slane %v1324, 5
  %v1332 = vadd.f32 %v148, %v1328
  %v1333 = vadd.f32 %v154, %v1329
  %v1334 = vxor.u32 %v1332, 2147483648
  %v1335 = vxor.u32 %v1333, 2147483648
  %v1336 = vmul.f32 %v1334, 1.442695
  %v1337 = vpow.pop %v1336
  %v1338 = vmul.f32 %v1335, 1.442695
  %v1339 = vpow.pop %v1338
  %v1340 = vadd.f32 %v1337, 1.0
  %v1341 = vadd.f32 %v1339, 1.0
  %v1342 = vrcp.pop %v1340
  %v1343 = vmul.f32 1.0, %v1342
  %v1344 = vrcp.pop %v1341
  %v1345 = vmul.f32 1.0, %v1344
  %v1346 = vtanh.pop %v1332
  %v1347 = vtanh.pop %v1333
  %v1350 = vrot.slane %v1094, 7
  %v1351 = vrot.slane %v1095, 7
  %v1354 = vmul.f32 %v1343, %v1350
  %v1355 = vmul.f32 %v1345, %v1351
  %1358 = vrot.lane.b32.xlu0 %v1346, 64
  %v1359 = vpop.permute.xlu0 %1358
  %1360 = vrot.lane.b32.xlu0 %v1347, 64
  %v1361 = vpop.permute.xlu0 %1360
  %v1364 = vmul.f32 %v1343, %v1359
  %v1365 = vmul.f32 %v1345, %v1361
  %1368 = vrot.lane.b32.xlu0 %v1364, 32
  %v1369 = vpop.permute.xlu0 %1368
  %1370 = vrot.lane.b32.xlu0 %v1365, 32
  %v1371 = vpop.permute.xlu0 %1370
  %v1374 = vadd.f32 %v1354, %v1369
  %v1375 = vadd.f32 %v1355, %v1371
  %v1376 = vtanh.pop %v1374
  %v1377 = vtanh.pop %v1375
  %1380 = vrot.lane.b32.xlu0 %v1376, 64
  %v1381 = vpop.permute.xlu0 %1380
  %1382 = vrot.lane.b32.xlu0 %v1377, 64
  %v1383 = vpop.permute.xlu0 %1382
  %v1386 = vmul.f32 %v1343, %v1381
  %v1387 = vmul.f32 %v1345, %v1383
  %v1390 = vrot.slane %v1246, 4
  %v1391 = vrot.slane %v1247, 3
  %v1392 = vsel %vm413, %v1391, %v1390
  %1393 = vrot.lane.b32.xlu0 %v1392, 32
  %v1394 = vpop.permute.xlu0 %1393
  %v1395 = vsel %vm74, %v1394, 0
  %1397 = vmatprep.subr.mxu0 0.0
  %1398 = vmatpush1.msra.mxu0 %v59
  %1399 = vmatprep.subr.mxu0 0.0
  %1400 = vmatpush1.msra.mxu0 %v60
  %1401 = vmatprep.subr.mxu0 0.0
  %1402 = vmatpush1.msra.mxu0 %v61
  %1403 = vmatprep.subr.mxu0 0.0
  %1404 = vmatpush1.msra.mxu0 %v62
  %1405 = vmatprep.subr.mxu0 0.0
  %1406 = vmatpush1.msra.mxu0 0.0
  %1407 = vmatprep.subr.mxu0 0.0
  %1408 = vmatpush1.msra.mxu0 0.0
  %1409 = vmatprep.subr.mxu0 0.0
  %1410 = vmatpush1.msra.mxu0 0.0
  %1411 = vmatprep.subr.mxu0 0.0
  %1412 = vmatpush1.msra.mxu0 0.0
  %1413 = vmatprep.subr.mxu0 0.0
  %1414 = vmatpush1.msra.mxu0 0.0
  %1415 = vmatprep.subr.mxu0 0.0
  %1416 = vmatpush1.msra.mxu0 0.0
  %1417 = vmatprep.subr.mxu0 0.0
  %1418 = vmatpush1.msra.mxu0 0.0
  %1419 = vmatprep.subr.mxu0 0.0
  %1420 = vmatpush1.msra.mxu0 0.0
  %1421 = vmatprep.subr.mxu0 0.0
  %1422 = vmatpush1.msra.mxu0 0.0
  %1423 = vmatprep.subr.mxu0 0.0
  %1424 = vmatpush1.msra.mxu0 0.0
  %1425 = vmatprep.subr.mxu0 0.0
  %1426 = vmatpush1.msra.mxu0 0.0
  %1427 = vmatprep.subr.mxu0 0.0
  %1428 = vmatpush1.msra.mxu0 0.0
  %1429 = vmatprep.subr.mxu0 0.0
  %1430 = vmatpush1.msra.mxu0 0.0
  %1431 = vmatprep.subr.mxu0 0.0
  %1432 = vmatpush1.msra.mxu0 0.0
  %1433 = vmatprep.subr.mxu0 0.0
  %1434 = vmatpush1.msra.mxu0 0.0
  %1435 = vmatprep.subr.mxu0 0.0
  %1436 = vmatpush1.msra.mxu0 0.0
  %1437 = vmatprep.subr.mxu0 0.0
  %1438 = vmatpush1.msra.mxu0 0.0
  %1439 = vmatprep.subr.mxu0 0.0
  %1440 = vmatpush1.msra.mxu0 0.0
  %1441 = vmatprep.subr.mxu0 0.0
  %1442 = vmatpush1.msra.mxu0 0.0
  %1443 = vmatprep.subr.mxu0 0.0
  %1444 = vmatpush1.msra.mxu0 0.0
  %1445 = vmatprep.subr.mxu0 0.0
  %1446 = vmatpush1.msra.mxu0 0.0
  %1447 = vmatprep.subr.mxu0 0.0
  %1448 = vmatpush1.msra.mxu0 0.0
  %1449 = vmatprep.subr.mxu0 0.0
  %1450 = vmatpush1.msra.mxu0 0.0
  %1451 = vmatprep.subr.mxu0 0.0
  %1452 = vmatpush1.msra.mxu0 0.0
  %1453 = vmatprep.subr.mxu0 0.0
  %1454 = vmatpush1.msra.mxu0 0.0
  %1455 = vmatprep.subr.mxu0 0.0
  %1456 = vmatpush1.msra.mxu0 0.0
  %1457 = vmatprep.subr.mxu0 0.0
  %1458 = vmatpush1.msra.mxu0 0.0
  %1459 = vmatprep.subr.mxu0 0.0
  %1460 = vmatpush1.msra.mxu0 0.0
  %1461 = vmatprep.mubr.f32.mxu0 0.0
  %1462 = vmatmul.mubr.f32.gmra.mrb[0].mxu0 %v1395
  %v1463 = vpop.f32.mrb[0].mxu0
  %v1464 = vadd.f32 0.0, %v1463
  %v1465 = vpop.f32.mrb[0].mxu0
  %1466 = vdwg.mxu0
  %v1468 = vrot.slane %v1464, 5
  %v1469 = vrot.slane %v1464, 6
  %v1472 = vadd.f32 %v150, %v1468
  %v1473 = vadd.f32 %v156, %v1469
  %v1474 = vxor.u32 %v1472, 2147483648
  %v1475 = vxor.u32 %v1473, 2147483648
  %v1476 = vmul.f32 %v1474, 1.442695
  %v1477 = vpow.pop %v1476
  %v1478 = vmul.f32 %v1475, 1.442695
  %v1479 = vpow.pop %v1478
  %v1480 = vadd.f32 %v1477, 1.0
  %v1481 = vadd.f32 %v1479, 1.0
  %v1482 = vrcp.pop %v1480
  %v1483 = vmul.f32 1.0, %v1482
  %v1484 = vrcp.pop %v1481
  %v1485 = vmul.f32 1.0, %v1484
  %v1486 = vtanh.pop %v1472
  %v1487 = vtanh.pop %v1473
  %v1490 = vrot.slane %v1234, 1
  %v1491 = vrot.slane %v1235, 1
  %v1494 = vmul.f32 %v1483, %v1490
  %v1495 = vmul.f32 %v1485, %v1491
  %1498 = vrot.lane.b32.xlu0 %v1486, 64
  %v1499 = vpop.permute.xlu0 %1498
  %1500 = vrot.lane.b32.xlu0 %v1487, 64
  %v1501 = vpop.permute.xlu0 %1500
  %v1504 = vmul.f32 %v1483, %v1499
  %v1505 = vmul.f32 %v1485, %v1501
  %1508 = vrot.lane.b32.xlu0 %v1504, 32
  %v1509 = vpop.permute.xlu0 %1508
  %1510 = vrot.lane.b32.xlu0 %v1505, 32
  %v1511 = vpop.permute.xlu0 %1510
  %v1514 = vadd.f32 %v1494, %v1509
  %v1515 = vadd.f32 %v1495, %v1511
  %v1516 = vtanh.pop %v1514
  %v1517 = vtanh.pop %v1515
  %1520 = vrot.lane.b32.xlu0 %v1516, 64
  %v1521 = vpop.permute.xlu0 %1520
  %1522 = vrot.lane.b32.xlu0 %v1517, 64
  %v1523 = vpop.permute.xlu0 %1522
  %v1526 = vmul.f32 %v1483, %v1521
  %v1527 = vmul.f32 %v1485, %v1523
  %v1530 = vrot.slane %v1386, 4
  %v1531 = vrot.slane %v1387, 3
  %v1532 = vsel %vm413, %v1531, %v1530
  %1533 = vrot.lane.b32.xlu0 %v1532, 32
  %v1534 = vpop.permute.xlu0 %1533
  %v1535 = vsel %vm74, %v1534, 0
  %1537 = vmatprep.subr.mxu0 0.0
  %1538 = vmatpush1.msra.mxu0 %v55
  %1539 = vmatprep.subr.mxu0 0.0
  %1540 = vmatpush1.msra.mxu0 %v56
  %1541 = vmatprep.subr.mxu0 0.0
  %1542 = vmatpush1.msra.mxu0 %v57
  %1543 = vmatprep.subr.mxu0 0.0
  %1544 = vmatpush1.msra.mxu0 %v58
  %1545 = vmatprep.subr.mxu0 0.0
  %1546 = vmatpush1.msra.mxu0 0.0
  %1547 = vmatprep.subr.mxu0 0.0
  %1548 = vmatpush1.msra.mxu0 0.0
  %1549 = vmatprep.subr.mxu0 0.0
  %1550 = vmatpush1.msra.mxu0 0.0
  %1551 = vmatprep.subr.mxu0 0.0
  %1552 = vmatpush1.msra.mxu0 0.0
  %1553 = vmatprep.subr.mxu0 0.0
  %1554 = vmatpush1.msra.mxu0 0.0
  %1555 = vmatprep.subr.mxu0 0.0
  %1556 = vmatpush1.msra.mxu0 0.0
  %1557 = vmatprep.subr.mxu0 0.0
  %1558 = vmatpush1.msra.mxu0 0.0
  %1559 = vmatprep.subr.mxu0 0.0
  %1560 = vmatpush1.msra.mxu0 0.0
  %1561 = vmatprep.subr.mxu0 0.0
  %1562 = vmatpush1.msra.mxu0 0.0
  %1563 = vmatprep.subr.mxu0 0.0
  %1564 = vmatpush1.msra.mxu0 0.0
  %1565 = vmatprep.subr.mxu0 0.0
  %1566 = vmatpush1.msra.mxu0 0.0
  %1567 = vmatprep.subr.mxu0 0.0
  %1568 = vmatpush1.msra.mxu0 0.0
  %1569 = vmatprep.subr.mxu0 0.0
  %1570 = vmatpush1.msra.mxu0 0.0
  %1571 = vmatprep.subr.mxu0 0.0
  %1572 = vmatpush1.msra.mxu0 0.0
  %1573 = vmatprep.subr.mxu0 0.0
  %1574 = vmatpush1.msra.mxu0 0.0
  %1575 = vmatprep.subr.mxu0 0.0
  %1576 = vmatpush1.msra.mxu0 0.0
  %1577 = vmatprep.subr.mxu0 0.0
  %1578 = vmatpush1.msra.mxu0 0.0
  %1579 = vmatprep.subr.mxu0 0.0
  %1580 = vmatpush1.msra.mxu0 0.0
  %1581 = vmatprep.subr.mxu0 0.0
  %1582 = vmatpush1.msra.mxu0 0.0
  %1583 = vmatprep.subr.mxu0 0.0
  %1584 = vmatpush1.msra.mxu0 0.0
  %1585 = vmatprep.subr.mxu0 0.0
  %1586 = vmatpush1.msra.mxu0 0.0
  %1587 = vmatprep.subr.mxu0 0.0
  %1588 = vmatpush1.msra.mxu0 0.0
  %1589 = vmatprep.subr.mxu0 0.0
  %1590 = vmatpush1.msra.mxu0 0.0
  %1591 = vmatprep.subr.mxu0 0.0
  %1592 = vmatpush1.msra.mxu0 0.0
  %1593 = vmatprep.subr.mxu0 0.0
  %1594 = vmatpush1.msra.mxu0 0.0
  %1595 = vmatprep.subr.mxu0 0.0
  %1596 = vmatpush1.msra.mxu0 0.0
  %1597 = vmatprep.subr.mxu0 0.0
  %1598 = vmatpush1.msra.mxu0 0.0
  %1599 = vmatprep.subr.mxu0 0.0
  %1600 = vmatpush1.msra.mxu0 0.0
  %1601 = vmatprep.mubr.f32.mxu0 0.0
  %1602 = vmatmul.mubr.f32.gmra.mrb[0].mxu0 %v1535
  %v1603 = vpop.f32.mrb[0].mxu0
  %v1604 = vadd.f32 0.0, %v1603
  %v1605 = vpop.f32.mrb[0].mxu0
  %1606 = vdwg.mxu0
  %v1608 = vrot.slane %v1604, 3
  %v1609 = vrot.slane %v1604, 4
  %v1612 = vadd.f32 %v148, %v1608
  %v1613 = vadd.f32 %v154, %v1609
  %v1614 = vxor.u32 %v1612, 2147483648
  %v1615 = vxor.u32 %v1613, 2147483648
  %v1616 = vmul.f32 %v1614, 1.442695
  %v1617 = vpow.pop %v1616
  %v1618 = vmul.f32 %v1615, 1.442695
  %v1619 = vpow.pop %v1618
  %v1620 = vadd.f32 %v1617, 1.0
  %v1621 = vadd.f32 %v1619, 1.0
  %v1622 = vrcp.pop %v1620
  %v1623 = vmul.f32 1.0, %v1622
  %v1624 = vrcp.pop %v1621
  %v1625 = vmul.f32 1.0, %v1624
  %v1626 = vtanh.pop %v1612
  %v1627 = vtanh.pop %v1613
  %v1630 = vrot.slane %v1374, 7
  %v1631 = vrot.slane %v1375, 7
  %v1634 = vmul.f32 %v1623, %v1630
  %v1635 = vmul.f32 %v1625, %v1631
  %1638 = vrot.lane.b32.xlu0 %v1626, 64
  %v1639 = vpop.permute.xlu0 %1638
  %1640 = vrot.lane.b32.xlu0 %v1627, 64
  %v1641 = vpop.permute.xlu0 %1640
  %v1644 = vmul.f32 %v1623, %v1639
  %v1645 = vmul.f32 %v1625, %v1641
  %1648 = vrot.lane.b32.xlu0 %v1644, 32
  %v1649 = vpop.permute.xlu0 %1648
  %1650 = vrot.lane.b32.xlu0 %v1645, 32
  %v1651 = vpop.permute.xlu0 %1650
  %v1654 = vadd.f32 %v1634, %v1649
  %v1655 = vadd.f32 %v1635, %v1651
  %v1656 = vtanh.pop %v1654
  %v1657 = vtanh.pop %v1655
  %1660 = vrot.lane.b32.xlu0 %v1656, 64
  %v1661 = vpop.permute.xlu0 %1660
  %1662 = vrot.lane.b32.xlu0 %v1657, 64
  %v1663 = vpop.permute.xlu0 %1662
  %v1666 = vmul.f32 %v1623, %v1661
  %v1667 = vmul.f32 %v1625, %v1663
  %v1670 = vrot.slane %v1526, 3
  %v1671 = vrot.slane %v1527, 2
  %v1672 = vsel %vm413, %v1671, %v1670
  %1673 = vrot.lane.b32.xlu0 %v1672, 32
  %v1674 = vpop.permute.xlu0 %1673
  %v1675 = vsel %vm74, %v1674, 0
  %1677 = vmatprep.subr.mxu0 0.0
  %1678 = vmatpush1.msra.mxu0 %v59
  %1679 = vmatprep.subr.mxu0 0.0
  %1680 = vmatpush1.msra.mxu0 %v60
  %1681 = vmatprep.subr.mxu0 0.0
  %1682 = vmatpush1.msra.mxu0 %v61
  %1683 = vmatprep.subr.mxu0 0.0
  %1684 = vmatpush1.msra.mxu0 %v62
  %1685 = vmatprep.subr.mxu0 0.0
  %1686 = vmatpush1.msra.mxu0 0.0
  %1687 = vmatprep.subr.mxu0 0.0
  %1688 = vmatpush1.msra.mxu0 0.0
  %1689 = vmatprep.subr.mxu0 0.0
  %1690 = vmatpush1.msra.mxu0 0.0
  %1691 = vmatprep.subr.mxu0 0.0
  %1692 = vmatpush1.msra.mxu0 0.0
  %1693 = vmatprep.subr.mxu0 0.0
  %1694 = vmatpush1.msra.mxu0 0.0
  %1695 = vmatprep.subr.mxu0 0.0
  %1696 = vmatpush1.msra.mxu0 0.0
  %1697 = vmatprep.subr.mxu0 0.0
  %1698 = vmatpush1.msra.mxu0 0.0
  %1699 = vmatprep.subr.mxu0 0.0
  %1700 = vmatpush1.msra.mxu0 0.0
  %1701 = vmatprep.subr.mxu0 0.0
  %1702 = vmatpush1.msra.mxu0 0.0
  %1703 = vmatprep.subr.mxu0 0.0
  %1704 = vmatpush1.msra.mxu0 0.0
  %1705 = vmatprep.subr.mxu0 0.0
  %1706 = vmatpush1.msra.mxu0 0.0
  %1707 = vmatprep.subr.mxu0 0.0
  %1708 = vmatpush1.msra.mxu0 0.0
  %1709 = vmatprep.subr.mxu0 0.0
  %1710 = vmatpush1.msra.mxu0 0.0
  %1711 = vmatprep.subr.mxu0 0.0
  %1712 = vmatpush1.msra.mxu0 0.0
  %1713 = vmatprep.subr.mxu0 0.0
  %1714 = vmatpush1.msra.mxu0 0.0
  %1715 = vmatprep.subr.mxu0 0.0
  %1716 = vmatpush1.msra.mxu0 0.0
  %1717 = vmatprep.subr.mxu0 0.0
  %1718 = vmatpush1.msra.mxu0 0.0
  %1719 = vmatprep.subr.mxu0 0.0
  %1720 = vmatpush1.msra.mxu0 0.0
  %1721 = vmatprep.subr.mxu0 0.0
  %1722 = vmatpush1.msra.mxu0 0.0
  %1723 = vmatprep.subr.mxu0 0.0
  %1724 = vmatpush1.msra.mxu0 0.0
  %1725 = vmatprep.subr.mxu0 0.0
  %1726 = vmatpush1.msra.mxu0 0.0
  %1727 = vmatprep.subr.mxu0 0.0
  %1728 = vmatpush1.msra.mxu0 0.0
  %1729 = vmatprep.subr.mxu0 0.0
  %1730 = vmatpush1.msra.mxu0 0.0
  %1731 = vmatprep.subr.mxu0 0.0
  %1732 = vmatpush1.msra.mxu0 0.0
  %1733 = vmatprep.subr.mxu0 0.0
  %1734 = vmatpush1.msra.mxu0 0.0
  %1735 = vmatprep.subr.mxu0 0.0
  %1736 = vmatpush1.msra.mxu0 0.0
  %1737 = vmatprep.subr.mxu0 0.0
  %1738 = vmatpush1.msra.mxu0 0.0
  %1739 = vmatprep.subr.mxu0 0.0
  %1740 = vmatpush1.msra.mxu0 0.0
  %1741 = vmatprep.mubr.f32.mxu0 0.0
  %1742 = vmatmul.mubr.f32.gmra.mrb[0].mxu0 %v1675
  %v1743 = vpop.f32.mrb[0].mxu0
  %v1744 = vadd.f32 0.0, %v1743
  %v1745 = vpop.f32.mrb[0].mxu0
  %1746 = vdwg.mxu0
  %v1748 = vrot.slane %v1744, 6
  %v1749 = vrot.slane %v1744, 7
  %v1752 = vadd.f32 %v150, %v1748
  %v1753 = vadd.f32 %v156, %v1749
  %v1754 = vxor.u32 %v1752, 2147483648
  %v1755 = vxor.u32 %v1753, 2147483648
  %v1756 = vmul.f32 %v1754, 1.442695
  %v1757 = vpow.pop %v1756
  %v1758 = vmul.f32 %v1755, 1.442695
  %v1759 = vpow.pop %v1758
  %v1760 = vadd.f32 %v1757, 1.0
  %v1761 = vadd.f32 %v1759, 1.0
  %v1762 = vrcp.pop %v1760
  %v1763 = vmul.f32 1.0, %v1762
  %v1764 = vrcp.pop %v1761
  %v1765 = vmul.f32 1.0, %v1764
  %v1766 = vtanh.pop %v1752
  %v1767 = vtanh.pop %v1753
  %v1770 = vrot.slane %v1514, 1
  %v1771 = vrot.slane %v1515, 1
  %v1774 = vmul.f32 %v1763, %v1770
  %v1775 = vmul.f32 %v1765, %v1771
  %1778 = vrot.lane.b32.xlu0 %v1766, 64
  %v1779 = vpop.permute.xlu0 %1778
  %1780 = vrot.lane.b32.xlu0 %v1767, 64
  %v1781 = vpop.permute.xlu0 %1780
  %v1784 = vmul.f32 %v1763, %v1779
  %v1785 = vmul.f32 %v1765, %v1781
  %1788 = vrot.lane.b32.xlu0 %v1784, 32
  %v1789 = vpop.permute.xlu0 %1788
  %1790 = vrot.lane.b32.xlu0 %v1785, 32
  %v1791 = vpop.permute.xlu0 %1790
  %v1794 = vadd.f32 %v1774, %v1789
  %v1795 = vadd.f32 %v1775, %v1791
  %v1796 = vtanh.pop %v1794
  %v1797 = vtanh.pop %v1795
  %1800 = vrot.lane.b32.xlu0 %v1796, 64
  %v1801 = vpop.permute.xlu0 %1800
  %1802 = vrot.lane.b32.xlu0 %v1797, 64
  %v1803 = vpop.permute.xlu0 %1802
  %v1806 = vmul.f32 %v1763, %v1801
  %v1807 = vmul.f32 %v1765, %v1803
  %v1810 = vrot.slane %v1666, 5
  %v1811 = vrot.slane %v1667, 4
  %v1812 = vsel %vm413, %v1811, %v1810
  %1813 = vrot.lane.b32.xlu0 %v1812, 32
  %v1814 = vpop.permute.xlu0 %1813
  %v1815 = vsel %vm74, %v1814, 0
  %1817 = vmatprep.subr.mxu0 0.0
  %1818 = vmatpush1.msra.mxu0 %v55
  %1819 = vmatprep.subr.mxu0 0.0
  %1820 = vmatpush1.msra.mxu0 %v56
  %1821 = vmatprep.subr.mxu0 0.0
  %1822 = vmatpush1.msra.mxu0 %v57
  %1823 = vmatprep.subr.mxu0 0.0
  %1824 = vmatpush1.msra.mxu0 %v58
  %1825 = vmatprep.subr.mxu0 0.0
  %1826 = vmatpush1.msra.mxu0 0.0
  %1827 = vmatprep.subr.mxu0 0.0
  %1828 = vmatpush1.msra.mxu0 0.0
  %1829 = vmatprep.subr.mxu0 0.0
  %1830 = vmatpush1.msra.mxu0 0.0
  %1831 = vmatprep.subr.mxu0 0.0
  %1832 = vmatpush1.msra.mxu0 0.0
  %1833 = vmatprep.subr.mxu0 0.0
  %1834 = vmatpush1.msra.mxu0 0.0
  %1835 = vmatprep.subr.mxu0 0.0
  %1836 = vmatpush1.msra.mxu0 0.0
  %1837 = vmatprep.subr.mxu0 0.0
  %1838 = vmatpush1.msra.mxu0 0.0
  %1839 = vmatprep.subr.mxu0 0.0
  %1840 = vmatpush1.msra.mxu0 0.0
  %1841 = vmatprep.subr.mxu0 0.0
  %1842 = vmatpush1.msra.mxu0 0.0
  %1843 = vmatprep.subr.mxu0 0.0
  %1844 = vmatpush1.msra.mxu0 0.0
  %1845 = vmatprep.subr.mxu0 0.0
  %1846 = vmatpush1.msra.mxu0 0.0
  %1847 = vmatprep.subr.mxu0 0.0
  %1848 = vmatpush1.msra.mxu0 0.0
  %1849 = vmatprep.subr.mxu0 0.0
  %1850 = vmatpush1.msra.mxu0 0.0
  %1851 = vmatprep.subr.mxu0 0.0
  %1852 = vmatpush1.msra.mxu0 0.0
  %1853 = vmatprep.subr.mxu0 0.0
  %1854 = vmatpush1.msra.mxu0 0.0
  %1855 = vmatprep.subr.mxu0 0.0
  %1856 = vmatpush1.msra.mxu0 0.0
  %1857 = vmatprep.subr.mxu0 0.0
  %1858 = vmatpush1.msra.mxu0 0.0
  %1859 = vmatprep.subr.mxu0 0.0
  %1860 = vmatpush1.msra.mxu0 0.0
  %1861 = vmatprep.subr.mxu0 0.0
  %1862 = vmatpush1.msra.mxu0 0.0
  %1863 = vmatprep.subr.mxu0 0.0
  %1864 = vmatpush1.msra.mxu0 0.0
  %1865 = vmatprep.subr.mxu0 0.0
  %1866 = vmatpush1.msra.mxu0 0.0
  %1867 = vmatprep.subr.mxu0 0.0
  %1868 = vmatpush1.msra.mxu0 0.0
  %1869 = vmatprep.subr.mxu0 0.0
  %1870 = vmatpush1.msra.mxu0 0.0
  %1871 = vmatprep.subr.mxu0 0.0
  %1872 = vmatpush1.msra.mxu0 0.0
  %1873 = vmatprep.subr.mxu0 0.0
  %1874 = vmatpush1.msra.mxu0 0.0
  %1875 = vmatprep.subr.mxu0 0.0
  %1876 = vmatpush1.msra.mxu0 0.0
  %1877 = vmatprep.subr.mxu0 0.0
  %1878 = vmatpush1.msra.mxu0 0.0
  %1879 = vmatprep.subr.mxu0 0.0
  %1880 = vmatpush1.msra.mxu0 0.0
  %1881 = vmatprep.mubr.f32.mxu0 0.0
  %1882 = vmatmul.mubr.f32.gmra.mrb[0].mxu0 %v1815
  %v1883 = vpop.f32.mrb[0].mxu0
  %v1884 = vadd.f32 0.0, %v1883
  %v1885 = vpop.f32.mrb[0].mxu0
  %1886 = vdwg.mxu0
  %v1888 = vrot.slane %v1884, 2
  %v1889 = vrot.slane %v1884, 3
  %v1892 = vadd.f32 %v148, %v1888
  %v1893 = vadd.f32 %v154, %v1889
  %v1894 = vxor.u32 %v1892, 2147483648
  %v1895 = vxor.u32 %v1893, 2147483648
  %v1896 = vmul.f32 %v1894, 1.442695
  %v1897 = vpow.pop %v1896
  %v1898 = vmul.f32 %v1895, 1.442695
  %v1899 = vpow.pop %v1898
  %v1900 = vadd.f32 %v1897, 1.0
  %v1901 = vadd.f32 %v1899, 1.0
  %v1902 = vrcp.pop %v1900
  %v1903 = vmul.f32 1.0, %v1902
  %v1904 = vrcp.pop %v1901
  %v1905 = vmul.f32 1.0, %v1904
  %v1906 = vtanh.pop %v1892
  %v1907 = vtanh.pop %v1893
  %v1910 = vrot.slane %v1654, 7
  %v1911 = vrot.slane %v1655, 7
  %v1914 = vmul.f32 %v1903, %v1910
  %v1915 = vmul.f32 %v1905, %v1911
  %1918 = vrot.lane.b32.xlu0 %v1906, 64
  %v1919 = vpop.permute.xlu0 %1918
  %1920 = vrot.lane.b32.xlu0 %v1907, 64
  %v1921 = vpop.permute.xlu0 %1920
  %v1924 = vmul.f32 %v1903, %v1919
  %v1925 = vmul.f32 %v1905, %v1921
  %1928 = vrot.lane.b32.xlu0 %v1924, 32
  %v1929 = vpop.permute.xlu0 %1928
  %1930 = vrot.lane.b32.xlu0 %v1925, 32
  %v1931 = vpop.permute.xlu0 %1930
  %v1934 = vadd.f32 %v1914, %v1929
  %v1935 = vadd.f32 %v1915, %v1931
  %v1936 = vtanh.pop %v1934
  %v1937 = vtanh.pop %v1935
  %1940 = vrot.lane.b32.xlu0 %v1936, 64
  %v1941 = vpop.permute.xlu0 %1940
  %1942 = vrot.lane.b32.xlu0 %v1937, 64
  %v1943 = vpop.permute.xlu0 %1942
  %v1946 = vmul.f32 %v1903, %v1941
  %v1947 = vmul.f32 %v1905, %v1943
  %v1950 = vrot.slane %v1806, 2
  %v1951 = vrot.slane %v1807, 1
  %v1952 = vsel %vm413, %v1951, %v1950
  %1953 = vrot.lane.b32.xlu0 %v1952, 32
  %v1954 = vpop.permute.xlu0 %1953
  %v1955 = vsel %vm74, %v1954, 0
  %1957 = vmatprep.subr.mxu0 0.0
  %1958 = vmatpush1.msra.mxu0 %v59
  %1959 = vmatprep.subr.mxu0 0.0
  %1960 = vmatpush1.msra.mxu0 %v60
  %1961 = vmatprep.subr.mxu0 0.0
  %1962 = vmatpush1.msra.mxu0 %v61
  %1963 = vmatprep.subr.mxu0 0.0
  %1964 = vmatpush1.msra.mxu0 %v62
  %1965 = vmatprep.subr.mxu0 0.0
  %1966 = vmatpush1.msra.mxu0 0.0
  %1967 = vmatprep.subr.mxu0 0.0
  %1968 = vmatpush1.msra.mxu0 0.0
  %1969 = vmatprep.subr.mxu0 0.0
  %1970 = vmatpush1.msra.mxu0 0.0
  %1971 = vmatprep.subr.mxu0 0.0
  %1972 = vmatpush1.msra.mxu0 0.0
  %1973 = vmatprep.subr.mxu0 0.0
  %1974 = vmatpush1.msra.mxu0 0.0
  %1975 = vmatprep.subr.mxu0 0.0
  %1976 = vmatpush1.msra.mxu0 0.0
  %1977 = vmatprep.subr.mxu0 0.0
  %1978 = vmatpush1.msra.mxu0 0.0
  %1979 = vmatprep.subr.mxu0 0.0
  %1980 = vmatpush1.msra.mxu0 0.0
  %1981 = vmatprep.subr.mxu0 0.0
  %1982 = vmatpush1.msra.mxu0 0.0
  %1983 = vmatprep.subr.mxu0 0.0
  %1984 = vmatpush1.msra.mxu0 0.0
  %1985 = vmatprep.subr.mxu0 0.0
  %1986 = vmatpush1.msra.mxu0 0.0
  %1987 = vmatprep.subr.mxu0 0.0
  %1988 = vmatpush1.msra.mxu0 0.0
  %1989 = vmatprep.subr.mxu0 0.0
  %1990 = vmatpush1.msra.mxu0 0.0
  %1991 = vmatprep.subr.mxu0 0.0
  %1992 = vmatpush1.msra.mxu0 0.0
  %1993 = vmatprep.subr.mxu0 0.0
  %1994 = vmatpush1.msra.mxu0 0.0
  %1995 = vmatprep.subr.mxu0 0.0
  %1996 = vmatpush1.msra.mxu0 0.0
  %1997 = vmatprep.subr.mxu0 0.0
  %1998 = vmatpush1.msra.mxu0 0.0
  %1999 = vmatprep.subr.mxu0 0.0
  %2000 = vmatpush1.msra.mxu0 0.0
  %2001 = vmatprep.subr.mxu0 0.0
  %2002 = vmatpush1.msra.mxu0 0.0
  %2003 = vmatprep.subr.mxu0 0.0
  %2004 = vmatpush1.msra.mxu0 0.0
  %2005 = vmatprep.subr.mxu0 0.0
  %2006 = vmatpush1.msra.mxu0 0.0
  %2007 = vmatprep.subr.mxu0 0.0
  %2008 = vmatpush1.msra.mxu0 0.0
  %2009 = vmatprep.subr.mxu0 0.0
  %2010 = vmatpush1.msra.mxu0 0.0
  %2011 = vmatprep.subr.mxu0 0.0
  %2012 = vmatpush1.msra.mxu0 0.0
  %2013 = vmatprep.subr.mxu0 0.0
  %2014 = vmatpush1.msra.mxu0 0.0
  %2015 = vmatprep.subr.mxu0 0.0
  %2016 = vmatpush1.msra.mxu0 0.0
  %2017 = vmatprep.subr.mxu0 0.0
  %2018 = vmatpush1.msra.mxu0 0.0
  %2019 = vmatprep.subr.mxu0 0.0
  %2020 = vmatpush1.msra.mxu0 0.0
  %2021 = vmatprep.mubr.f32.mxu0 0.0
  %2022 = vmatmul.mubr.f32.gmra.mrb[0].mxu0 %v1955
  %v2023 = vpop.f32.mrb[0].mxu0
  %v2024 = vadd.f32 0.0, %v2023
  %v2025 = vpop.f32.mrb[0].mxu0
  %2026 = vdwg.mxu0
  %v2028 = vrot.slane %v2024, 7
  %v2031 = vadd.f32 %v150, %v2028
  %v2032 = vadd.f32 %v156, %v2024
  %v2033 = vxor.u32 %v2031, 2147483648
  %v2034 = vxor.u32 %v2032, 2147483648
  %v2035 = vmul.f32 %v2033, 1.442695
  %v2036 = vpow.pop %v2035
  %v2037 = vmul.f32 %v2034, 1.442695
  %v2038 = vpow.pop %v2037
  %v2039 = vadd.f32 %v2036, 1.0
  %v2040 = vadd.f32 %v2038, 1.0
  %v2041 = vrcp.pop %v2039
  %v2042 = vmul.f32 1.0, %v2041
  %v2043 = vrcp.pop %v2040
  %v2044 = vmul.f32 1.0, %v2043
  %v2045 = vtanh.pop %v2031
  %v2046 = vtanh.pop %v2032
  %v2049 = vrot.slane %v1794, 1
  %v2050 = vrot.slane %v1795, 1
  %v2053 = vmul.f32 %v2042, %v2049
  %v2054 = vmul.f32 %v2044, %v2050
  %2057 = vrot.lane.b32.xlu0 %v2045, 64
  %v2058 = vpop.permute.xlu0 %2057
  %2059 = vrot.lane.b32.xlu0 %v2046, 64
  %v2060 = vpop.permute.xlu0 %2059
  %v2063 = vmul.f32 %v2042, %v2058
  %v2064 = vmul.f32 %v2044, %v2060
  %2067 = vrot.lane.b32.xlu0 %v2063, 32
  %v2068 = vpop.permute.xlu0 %2067
  %2069 = vrot.lane.b32.xlu0 %v2064, 32
  %v2070 = vpop.permute.xlu0 %2069
  %v2073 = vadd.f32 %v2053, %v2068
  %v2074 = vadd.f32 %v2054, %v2070
  %v2075 = vtanh.pop %v2073
  %v2076 = vtanh.pop %v2074
  %2079 = vrot.lane.b32.xlu0 %v2075, 64
  %v2080 = vpop.permute.xlu0 %2079
  %2081 = vrot.lane.b32.xlu0 %v2076, 64
  %v2082 = vpop.permute.xlu0 %2081
  %v2085 = vmul.f32 %v2042, %v2080
  %v2086 = vmul.f32 %v2044, %v2082
  %v2089 = vrot.slane %v1946, 6
  %v2090 = vrot.slane %v1947, 5
  %v2091 = vsel %vm413, %v2090, %v2089
  %2092 = vrot.lane.b32.xlu0 %v2091, 32
  %v2093 = vpop.permute.xlu0 %2092
  %v2094 = vsel %vm74, %v2093, 0
  %2096 = vmatprep.subr.mxu0 0.0
  %2097 = vmatpush1.msra.mxu0 %v55
  %2098 = vmatprep.subr.mxu0 0.0
  %2099 = vmatpush1.msra.mxu0 %v56
  %2100 = vmatprep.subr.mxu0 0.0
  %2101 = vmatpush1.msra.mxu0 %v57
  %2102 = vmatprep.subr.mxu0 0.0
  %2103 = vmatpush1.msra.mxu0 %v58
  %2104 = vmatprep.subr.mxu0 0.0
  %2105 = vmatpush1.msra.mxu0 0.0
  %2106 = vmatprep.subr.mxu0 0.0
  %2107 = vmatpush1.msra.mxu0 0.0
  %2108 = vmatprep.subr.mxu0 0.0
  %2109 = vmatpush1.msra.mxu0 0.0
  %2110 = vmatprep.subr.mxu0 0.0
  %2111 = vmatpush1.msra.mxu0 0.0
  %2112 = vmatprep.subr.mxu0 0.0
  %2113 = vmatpush1.msra.mxu0 0.0
  %2114 = vmatprep.subr.mxu0 0.0
  %2115 = vmatpush1.msra.mxu0 0.0
  %2116 = vmatprep.subr.mxu0 0.0
  %2117 = vmatpush1.msra.mxu0 0.0
  %2118 = vmatprep.subr.mxu0 0.0
  %2119 = vmatpush1.msra.mxu0 0.0
  %2120 = vmatprep.subr.mxu0 0.0
  %2121 = vmatpush1.msra.mxu0 0.0
  %2122 = vmatprep.subr.mxu0 0.0
  %2123 = vmatpush1.msra.mxu0 0.0
  %2124 = vmatprep.subr.mxu0 0.0
  %2125 = vmatpush1.msra.mxu0 0.0
  %2126 = vmatprep.subr.mxu0 0.0
  %2127 = vmatpush1.msra.mxu0 0.0
  %2128 = vmatprep.subr.mxu0 0.0
  %2129 = vmatpush1.msra.mxu0 0.0
  %2130 = vmatprep.subr.mxu0 0.0
  %2131 = vmatpush1.msra.mxu0 0.0
  %2132 = vmatprep.subr.mxu0 0.0
  %2133 = vmatpush1.msra.mxu0 0.0
  %2134 = vmatprep.subr.mxu0 0.0
  %2135 = vmatpush1.msra.mxu0 0.0
  %2136 = vmatprep.subr.mxu0 0.0
  %2137 = vmatpush1.msra.mxu0 0.0
  %2138 = vmatprep.subr.mxu0 0.0
  %2139 = vmatpush1.msra.mxu0 0.0
  %2140 = vmatprep.subr.mxu0 0.0
  %2141 = vmatpush1.msra.mxu0 0.0
  %2142 = vmatprep.subr.mxu0 0.0
  %2143 = vmatpush1.msra.mxu0 0.0
  %2144 = vmatprep.subr.mxu0 0.0
  %2145 = vmatpush1.msra.mxu0 0.0
  %2146 = vmatprep.subr.mxu0 0.0
  %2147 = vmatpush1.msra.mxu0 0.0
  %2148 = vmatprep.subr.mxu0 0.0
  %2149 = vmatpush1.msra.mxu0 0.0
  %2150 = vmatprep.subr.mxu0 0.0
  %2151 = vmatpush1.msra.mxu0 0.0
  %2152 = vmatprep.subr.mxu0 0.0
  %2153 = vmatpush1.msra.mxu0 0.0
  %2154 = vmatprep.subr.mxu0 0.0
  %2155 = vmatpush1.msra.mxu0 0.0
  %2156 = vmatprep.subr.mxu0 0.0
  %2157 = vmatpush1.msra.mxu0 0.0
  %2158 = vmatprep.subr.mxu0 0.0
  %2159 = vmatpush1.msra.mxu0 0.0
  %2160 = vmatprep.mubr.f32.mxu0 0.0
  %2161 = vmatmul.mubr.f32.gmra.mrb[0].mxu0 %v2094
  %v2162 = vpop.f32.mrb[0].mxu0
  %v2163 = vadd.f32 0.0, %v2162
  %v2164 = vpop.f32.mrb[0].mxu0
  %2165 = vdwg.mxu0
  %v2167 = vrot.slane %v2163, 1
  %v2168 = vrot.slane %v2163, 2
  %v2171 = vadd.f32 %v148, %v2167
  %v2172 = vadd.f32 %v154, %v2168
  %v2173 = vxor.u32 %v2171, 2147483648
  %v2174 = vxor.u32 %v2172, 2147483648
  %v2175 = vmul.f32 %v2173, 1.442695
  %v2176 = vpow.pop %v2175
  %v2177 = vmul.f32 %v2174, 1.442695
  %v2178 = vpow.pop %v2177
  %v2179 = vadd.f32 %v2176, 1.0
  %v2180 = vadd.f32 %v2178, 1.0
  %v2181 = vrcp.pop %v2179
  %v2182 = vmul.f32 1.0, %v2181
  %v2183 = vrcp.pop %v2180
  %v2184 = vmul.f32 1.0, %v2183
  %v2185 = vtanh.pop %v2171
  %v2186 = vtanh.pop %v2172
  %v2189 = vrot.slane %v1934, 7
  %v2190 = vrot.slane %v1935, 7
  %v2193 = vmul.f32 %v2182, %v2189
  %v2194 = vmul.f32 %v2184, %v2190
  %2197 = vrot.lane.b32.xlu0 %v2185, 64
  %v2198 = vpop.permute.xlu0 %2197
  %2199 = vrot.lane.b32.xlu0 %v2186, 64
  %v2200 = vpop.permute.xlu0 %2199
  %v2203 = vmul.f32 %v2182, %v2198
  %v2204 = vmul.f32 %v2184, %v2200
  %2207 = vrot.lane.b32.xlu0 %v2203, 32
  %v2208 = vpop.permute.xlu0 %2207
  %2209 = vrot.lane.b32.xlu0 %v2204, 32
  %v2210 = vpop.permute.xlu0 %2209
  %v2213 = vadd.f32 %v2193, %v2208
  %v2214 = vadd.f32 %v2194, %v2210
  %v2215 = vtanh.pop %v2213
  %v2216 = vtanh.pop %v2214
  %2219 = vrot.lane.b32.xlu0 %v2215, 64
  %v2220 = vpop.permute.xlu0 %2219
  %2221 = vrot.lane.b32.xlu0 %v2216, 64
  %v2222 = vpop.permute.xlu0 %2221
  %v2225 = vmul.f32 %v2182, %v2220
  %v2226 = vmul.f32 %v2184, %v2222
  %v2229 = vrot.slane %v2085, 1
  %v2230 = vsel %vm413, %v2086, %v2229
  %2231 = vrot.lane.b32.xlu0 %v2230, 32
  %v2232 = vpop.permute.xlu0 %2231
  %v2233 = vsel %vm74, %v2232, 0
  %2235 = vmatprep.subr.mxu0 0.0
  %2236 = vmatpush1.msra.mxu0 %v59
  %2237 = vmatprep.subr.mxu0 0.0
  %2238 = vmatpush1.msra.mxu0 %v60
  %2239 = vmatprep.subr.mxu0 0.0
  %2240 = vmatpush1.msra.mxu0 %v61
  %2241 = vmatprep.subr.mxu0 0.0
  %2242 = vmatpush1.msra.mxu0 %v62
  %2243 = vmatprep.subr.mxu0 0.0
  %2244 = vmatpush1.msra.mxu0 0.0
  %2245 = vmatprep.subr.mxu0 0.0
  %2246 = vmatpush1.msra.mxu0 0.0
  %2247 = vmatprep.subr.mxu0 0.0
  %2248 = vmatpush1.msra.mxu0 0.0
  %2249 = vmatprep.subr.mxu0 0.0
  %2250 = vmatpush1.msra.mxu0 0.0
  %2251 = vmatprep.subr.mxu0 0.0
  %2252 = vmatpush1.msra.mxu0 0.0
  %2253 = vmatprep.subr.mxu0 0.0
  %2254 = vmatpush1.msra.mxu0 0.0
  %2255 = vmatprep.subr.mxu0 0.0
  %2256 = vmatpush1.msra.mxu0 0.0
  %2257 = vmatprep.subr.mxu0 0.0
  %2258 = vmatpush1.msra.mxu0 0.0
  %2259 = vmatprep.subr.mxu0 0.0
  %2260 = vmatpush1.msra.mxu0 0.0
  %2261 = vmatprep.subr.mxu0 0.0
  %2262 = vmatpush1.msra.mxu0 0.0
  %2263 = vmatprep.subr.mxu0 0.0
  %2264 = vmatpush1.msra.mxu0 0.0
  %2265 = vmatprep.subr.mxu0 0.0
  %2266 = vmatpush1.msra.mxu0 0.0
  %2267 = vmatprep.subr.mxu0 0.0
  %2268 = vmatpush1.msra.mxu0 0.0
  %2269 = vmatprep.subr.mxu0 0.0
  %2270 = vmatpush1.msra.mxu0 0.0
  %2271 = vmatprep.subr.mxu0 0.0
  %2272 = vmatpush1.msra.mxu0 0.0
  %2273 = vmatprep.subr.mxu0 0.0
  %2274 = vmatpush1.msra.mxu0 0.0
  %2275 = vmatprep.subr.mxu0 0.0
  %2276 = vmatpush1.msra.mxu0 0.0
  %2277 = vmatprep.subr.mxu0 0.0
  %2278 = vmatpush1.msra.mxu0 0.0
  %2279 = vmatprep.subr.mxu0 0.0
  %2280 = vmatpush1.msra.mxu0 0.0
  %2281 = vmatprep.subr.mxu0 0.0
  %2282 = vmatpush1.msra.mxu0 0.0
  %2283 = vmatprep.subr.mxu0 0.0
  %2284 = vmatpush1.msra.mxu0 0.0
  %2285 = vmatprep.subr.mxu0 0.0
  %2286 = vmatpush1.msra.mxu0 0.0
  %2287 = vmatprep.subr.mxu0 0.0
  %2288 = vmatpush1.msra.mxu0 0.0
  %2289 = vmatprep.subr.mxu0 0.0
  %2290 = vmatpush1.msra.mxu0 0.0
  %2291 = vmatprep.subr.mxu0 0.0
  %2292 = vmatpush1.msra.mxu0 0.0
  %2293 = vmatprep.subr.mxu0 0.0
  %2294 = vmatpush1.msra.mxu0 0.0
  %2295 = vmatprep.subr.mxu0 0.0
  %2296 = vmatpush1.msra.mxu0 0.0
  %2297 = vmatprep.subr.mxu0 0.0
  %2298 = vmatpush1.msra.mxu0 0.0
  %2299 = vmatprep.mubr.f32.mxu0 0.0
  %2300 = vmatmul.mubr.f32.gmra.mrb[0].mxu0 %v2233
  %v2301 = vpop.f32.mrb[0].mxu0
  %v2302 = vadd.f32 0.0, %v2301
  %v2303 = vpop.f32.mrb[0].mxu0
  %2304 = vdwg.mxu0
  %v2306 = vrot.slane %v2302, 1
  %v2309 = vadd.f32 %v150, %v2302
  %v2310 = vadd.f32 %v156, %v2306
  %v2311 = vxor.u32 %v2309, 2147483648
  %v2312 = vxor.u32 %v2310, 2147483648
  %v2313 = vmul.f32 %v2311, 1.442695
  %v2314 = vpow.pop %v2313
  %v2315 = vmul.f32 %v2312, 1.442695
  %v2316 = vpow.pop %v2315
  %v2317 = vadd.f32 %v2314, 1.0
  %v2318 = vadd.f32 %v2316, 1.0
  %v2319 = vrcp.pop %v2317
  %v2320 = vmul.f32 1.0, %v2319
  %v2321 = vrcp.pop %v2318
  %v2322 = vmul.f32 1.0, %v2321
  %v2323 = vtanh.pop %v2309
  %v2324 = vtanh.pop %v2310
  %v2327 = vrot.slane %v2073, 1
  %v2328 = vrot.slane %v2074, 1
  %v2331 = vmul.f32 %v2320, %v2327
  %v2332 = vmul.f32 %v2322, %v2328
  %2335 = vrot.lane.b32.xlu0 %v2323, 64
  %v2336 = vpop.permute.xlu0 %2335
  %2337 = vrot.lane.b32.xlu0 %v2324, 64
  %v2338 = vpop.permute.xlu0 %2337
  %v2341 = vmul.f32 %v2320, %v2336
  %v2342 = vmul.f32 %v2322, %v2338
  %2345 = vrot.lane.b32.xlu0 %v2341, 32
  %v2346 = vpop.permute.xlu0 %2345
  %2347 = vrot.lane.b32.xlu0 %v2342, 32
  %v2348 = vpop.permute.xlu0 %2347
  %v2351 = vadd.f32 %v2331, %v2346
  %v2352 = vadd.f32 %v2332, %v2348
  %v2353 = vtanh.pop %v2351
  %v2354 = vtanh.pop %v2352
  %2357 = vrot.lane.b32.xlu0 %v2353, 64
  %v2358 = vpop.permute.xlu0 %2357
  %2359 = vrot.lane.b32.xlu0 %v2354, 64
  %v2360 = vpop.permute.xlu0 %2359
  %v2363 = vmul.f32 %v2320, %v2358
  %v2364 = vmul.f32 %v2322, %v2360
  %vm2365 = vcmask 1040384
  %v2366 = vsel %vm2365, %v283, %v547
  %v2367 = vsel %vm2365, %v284, %v548
  %vm2368 = vcmask 1041408
  %v2369 = vsel %vm2368, %v2366, %v826
  %v2370 = vsel %vm2368, %v2367, %v827
  %vm2371 = vcmask 1042432
  %v2372 = vsel %vm2371, %v2369, %v1106
  %v2373 = vsel %vm2371, %v2370, %v1107
  %vm2374 = vcmask 1043456
  %v2375 = vsel %vm2374, %v2372, %v1386
  %v2376 = vsel %vm2374, %v2373, %v1387
  %vm2377 = vcmask 1044480
  %v2378 = vsel %vm2377, %v2375, %v1666
  %v2379 = vsel %vm2377, %v2376, %v1667
  %vm2380 = vcmask 1045504
  %v2381 = vsel %vm2380, %v2378, %v1946
  %v2382 = vsel %vm2380, %v2379, %v1947
  %vm2383 = vcmask 1046528
  %v2384 = vsel %vm2383, %v2381, %v2225
  %v2385 = vsel %vm2383, %v2382, %v2226
  %v2386 = vsel %vm2365, %v2363, %v2085
  %v2387 = vsel %vm2365, %v2364, %v2086
  %v2388 = vsel %vm2368, %v2386, %v1806
  %v2389 = vsel %vm2368, %v2387, %v1807
  %v2390 = vsel %vm2371, %v2388, %v1526
  %v2391 = vsel %vm2371, %v2389, %v1527
  %v2392 = vsel %vm2374, %v2390, %v1246
  %v2393 = vsel %vm2374, %v2391, %v1247
  %v2394 = vsel %vm2377, %v2392, %v966
  %v2395 = vsel %vm2377, %v2393, %v967
  %v2396 = vsel %vm2380, %v2394, %v687
  %v2397 = vsel %vm2380, %v2395, %v688
  %v2398 = vsel %vm2383, %v2396, %v408
  %v2399 = vsel %vm2383, %v2397, %v409
  %2402 = vrot.lane.b32.xlu0 %v2384, 32
  %v2403 = vpop.permute.xlu0 %2402
  %2404 = vrot.lane.b32.xlu0 %v2385, 32
  %v2405 = vpop.permute.xlu0 %2404
  %2410 = vrot.lane.b32.xlu0 %v2398, 64
  %v2411 = vpop.permute.xlu0 %2410
  %2412 = vrot.lane.b32.xlu0 %v2399, 64
  %v2413 = vpop.permute.xlu0 %2412
  %v2416 = vsel %vm74, %v2403, %v2411
  %v2417 = vsel %vm74, %v2405, %v2413
  %v2418 = vld [vmem:[%s5] sm:$0xff]
  %v2419 = vld [vmem:[%s5 + $0x8] sm:$0xff]
  %v2420 = vld [vmem:[%s5 + $0x10] sm:$0xff]
  %v2421 = vld [vmem:[%s5 + $0x18] sm:$0xff]
  %v2422 = vld [vmem:[%s5 + $0x20] sm:$0xff]
  %v2423 = vld [vmem:[%s5 + $0x28] sm:$0xff]
  %v2424 = vld [vmem:[%s5 + $0x30] sm:$0xff]
  %v2425 = vld [vmem:[%s5 + $0x38] sm:$0xff]
  %v2426 = vld [vmem:[%s5 + $0x40] sm:$0xff]
  %v2427 = vld [vmem:[%s5 + $0x48] sm:$0xff]
  %v2428 = vld [vmem:[%s5 + $0x50] sm:$0xff]
  %v2429 = vld [vmem:[%s5 + $0x58] sm:$0xff]
  %v2430 = vld [vmem:[%s5 + $0x60] sm:$0xff]
  %v2431 = vld [vmem:[%s5 + $0x68] sm:$0xff]
  %v2432 = vld [vmem:[%s5 + $0x70] sm:$0xff]
  %v2433 = vld [vmem:[%s5 + $0x78] sm:$0xff]
  %v2434 = vld [vmem:[%s6] sm:$0x3]
  %v2435 = vld [vmem:[%s7] sm:$0xff]
  %v2436 = vld [vmem:[%s7 + $0x8] sm:$0xff]
  %v2437 = vld [vmem:[%s7 + $0x10] sm:$0xff]
  %v2438 = vld [vmem:[%s7 + $0x18] sm:$0xff]
  %v2439 = vld [vmem:[%s8] sm:$0xff]
  %v2440 = vld [vmem:[%s8 + $0x8] sm:$0xff]
  %v2441 = vld [vmem:[%s8 + $0x10] sm:$0xff]
  %v2442 = vld [vmem:[%s8 + $0x18] sm:$0xff]
  %v2444 = vlaneseq
  %v2445 = vshrl.u32 %v2444, 7
  %v2446 = vsub.s32 0, %v2445
  %v2447 = vrot.slane %v2434, %v2446
  %v2448 = vlaneseq
  %v2449 = vshrl.u32 %v2448, 7
  %v2450 = vsub.s32 1, %v2449
  %v2451 = vrot.slane %v2434, %v2450
  %vm2454 = vcmask 523264
  %v2456 = vsel %vm2454, %v2416, 0
  %v2459 = vsel %vm2454, %v2417, 0
  %2461 = vmatprep.subr.mxu0 %v2419
  %2462 = vmatpush1.msra.mxu0 %v2418
  %2463 = vmatprep.subr.mxu0 %v2421
  %2464 = vmatpush1.msra.mxu0 %v2420
  %2465 = vmatprep.subr.mxu0 %v2423
  %2466 = vmatpush1.msra.mxu0 %v2422
  %2467 = vmatprep.subr.mxu0 %v2425
  %2468 = vmatpush1.msra.mxu0 %v2424
  %2469 = vmatprep.subr.mxu0 %v2427
  %2470 = vmatpush1.msra.mxu0 %v2426
  %2471 = vmatprep.subr.mxu0 %v2429
  %2472 = vmatpush1.msra.mxu0 %v2428
  %2473 = vmatprep.subr.mxu0 %v2431
  %2474 = vmatpush1.msra.mxu0 %v2430
  %2475 = vmatprep.subr.mxu0 %v2433
  %2476 = vmatpush1.msra.mxu0 %v2432
  %2477 = vmatprep.subr.mxu0 0.0
  %2478 = vmatpush1.msra.mxu0 0.0
  %2479 = vmatprep.subr.mxu0 0.0
  %2480 = vmatpush1.msra.mxu0 0.0
  %2481 = vmatprep.subr.mxu0 0.0
  %2482 = vmatpush1.msra.mxu0 0.0
  %2483 = vmatprep.subr.mxu0 0.0
  %2484 = vmatpush1.msra.mxu0 0.0
  %2485 = vmatprep.subr.mxu0 0.0
  %2486 = vmatpush1.msra.mxu0 0.0
  %2487 = vmatprep.subr.mxu0 0.0
  %2488 = vmatpush1.msra.mxu0 0.0
  %2489 = vmatprep.subr.mxu0 0.0
  %2490 = vmatpush1.msra.mxu0 0.0
  %2491 = vmatprep.subr.mxu0 0.0
  %2492 = vmatpush1.msra.mxu0 0.0
  %2493 = vmatprep.subr.mxu0 0.0
  %2494 = vmatpush1.msra.mxu0 0.0
  %2495 = vmatprep.subr.mxu0 0.0
  %2496 = vmatpush1.msra.mxu0 0.0
  %2497 = vmatprep.subr.mxu0 0.0
  %2498 = vmatpush1.msra.mxu0 0.0
  %2499 = vmatprep.subr.mxu0 0.0
  %2500 = vmatpush1.msra.mxu0 0.0
  %2501 = vmatprep.subr.mxu0 0.0
  %2502 = vmatpush1.msra.mxu0 0.0
  %2503 = vmatprep.subr.mxu0 0.0
  %2504 = vmatpush1.msra.mxu0 0.0
  %2505 = vmatprep.subr.mxu0 0.0
  %2506 = vmatpush1.msra.mxu0 0.0
  %2507 = vmatprep.subr.mxu0 0.0
  %2508 = vmatpush1.msra.mxu0 0.0
  %2509 = vmatprep.subr.mxu0 0.0
  %2510 = vmatpush1.msra.mxu0 0.0
  %2511 = vmatprep.subr.mxu0 0.0
  %2512 = vmatpush1.msra.mxu0 0.0
  %2513 = vmatprep.subr.mxu0 0.0
  %2514 = vmatpush1.msra.mxu0 0.0
  %2515 = vmatprep.subr.mxu0 0.0
  %2516 = vmatpush1.msra.mxu0 0.0
  %2517 = vmatprep.subr.mxu0 0.0
  %2518 = vmatpush1.msra.mxu0 0.0
  %2519 = vmatprep.subr.mxu0 0.0
  %2520 = vmatpush1.msra.mxu0 0.0
  %2521 = vmatprep.subr.mxu0 0.0
  %2522 = vmatpush1.msra.mxu0 0.0
  %2523 = vmatprep.subr.mxu0 0.0
  %2524 = vmatpush1.msra.mxu0 0.0
  %2525 = vmatprep.mubr.f32.mxu0 0.0
  %2526 = vmatmul.mubr.f32.gmra.mrb[0].mxu0 %v2456
  %v2527 = vpop.f32.mrb[0].mxu0
  %v2528 = vadd.f32 %v2447, %v2527
  %v2529 = vpop.f32.mrb[0].mxu0
  %v2530 = vadd.f32 %v2451, %v2529
  %2531 = vmatprep.mubr.f32.mxu0 0.0
  %2532 = vmatmul.mubr.f32.gmra.mrb[0].mxu0 %v2459
  %v2533 = vpop.f32.mrb[0].mxu0
  %v2534 = vadd.f32 %v2447, %v2533
  %v2535 = vpop.f32.mrb[0].mxu0
  %v2536 = vadd.f32 %v2451, %v2535
  %2537 = vdwg.mxu0
  %2538 = vmatprep.subr.mxu0 0.0
  %2539 = vmatpush1.msra.mxu0 %v2435
  %2540 = vmatprep.subr.mxu0 0.0
  %2541 = vmatpush1.msra.mxu0 %v2436
  %2542 = vmatprep.subr.mxu0 0.0
  %2543 = vmatpush1.msra.mxu0 %v2437
  %2544 = vmatprep.subr.mxu0 0.0
  %2545 = vmatpush1.msra.mxu0 %v2438
  %2546 = vmatprep.subr.mxu0 0.0
  %2547 = vmatpush1.msra.mxu0 0.0
  %2548 = vmatprep.subr.mxu0 0.0
  %2549 = vmatpush1.msra.mxu0 0.0
  %2550 = vmatprep.subr.mxu0 0.0
  %2551 = vmatpush1.msra.mxu0 0.0
  %2552 = vmatprep.subr.mxu0 0.0
  %2553 = vmatpush1.msra.mxu0 0.0
  %2554 = vmatprep.subr.mxu0 0.0
  %2555 = vmatpush1.msra.mxu0 0.0
  %2556 = vmatprep.subr.mxu0 0.0
  %2557 = vmatpush1.msra.mxu0 0.0
  %2558 = vmatprep.subr.mxu0 0.0
  %2559 = vmatpush1.msra.mxu0 0.0
  %2560 = vmatprep.subr.mxu0 0.0
  %2561 = vmatpush1.msra.mxu0 0.0
  %2562 = vmatprep.subr.mxu0 0.0
  %2563 = vmatpush1.msra.mxu0 0.0
  %2564 = vmatprep.subr.mxu0 0.0
  %2565 = vmatpush1.msra.mxu0 0.0
  %2566 = vmatprep.subr.mxu0 0.0
  %2567 = vmatpush1.msra.mxu0 0.0
  %2568 = vmatprep.subr.mxu0 0.0
  %2569 = vmatpush1.msra.mxu0 0.0
  %2570 = vmatprep.subr.mxu0 0.0
  %2571 = vmatpush1.msra.mxu0 0.0
  %2572 = vmatprep.subr.mxu0 0.0
  %2573 = vmatpush1.msra.mxu0 0.0
  %2574 = vmatprep.subr.mxu0 0.0
  %2575 = vmatpush1.msra.mxu0 0.0
  %2576 = vmatprep.subr.mxu0 0.0
  %2577 = vmatpush1.msra.mxu0 0.0
  %2578 = vmatprep.subr.mxu0 0.0
  %2579 = vmatpush1.msra.mxu0 0.0
  %2580 = vmatprep.subr.mxu0 0.0
  %2581 = vmatpush1.msra.mxu0 0.0
  %2582 = vmatprep.subr.mxu0 0.0
  %2583 = vmatpush1.msra.mxu0 0.0
  %2584 = vmatprep.subr.mxu0 0.0
  %2585 = vmatpush1.msra.mxu0 0.0
  %2586 = vmatprep.subr.mxu0 0.0
  %2587 = vmatpush1.msra.mxu0 0.0
  %2588 = vmatprep.subr.mxu0 0.0
  %2589 = vmatpush1.msra.mxu0 0.0
  %2590 = vmatprep.subr.mxu0 0.0
  %2591 = vmatpush1.msra.mxu0 0.0
  %2592 = vmatprep.subr.mxu0 0.0
  %2593 = vmatpush1.msra.mxu0 0.0
  %2594 = vmatprep.subr.mxu0 0.0
  %2595 = vmatpush1.msra.mxu0 0.0
  %2596 = vmatprep.subr.mxu0 0.0
  %2597 = vmatpush1.msra.mxu0 0.0
  %2598 = vmatprep.subr.mxu0 0.0
  %2599 = vmatpush1.msra.mxu0 0.0
  %2600 = vmatprep.subr.mxu0 0.0
  %2601 = vmatpush1.msra.mxu0 0.0
  %2602 = vmatprep.mubr.f32.mxu0 0.0
  %2603 = vmatmul.mubr.f32.gmra.mrb[0].mxu0 %v159
  %v2604 = vpop.f32.mrb[0].mxu0
  %v2605 = vadd.f32 0.0, %v2604
  %v2606 = vpop.f32.mrb[0].mxu0
  %2607 = vdwg.mxu0
  %v2609 = vrot.slane %v2605, 1
  %v2612 = vadd.f32 %v2528, %v2605
  %v2613 = vadd.f32 %v2534, %v2609
  %v2614 = vxor.u32 %v2612, 2147483648
  %v2615 = vxor.u32 %v2613, 2147483648
  %v2616 = vmul.f32 %v2614, 1.442695
  %v2617 = vpow.pop %v2616
  %v2618 = vmul.f32 %v2615, 1.442695
  %v2619 = vpow.pop %v2618
  %v2620 = vadd.f32 %v2617, 1.0
  %v2621 = vadd.f32 %v2619, 1.0
  %v2622 = vrcp.pop %v2620
  %v2623 = vmul.f32 1.0, %v2622
  %v2624 = vrcp.pop %v2621
  %v2625 = vmul.f32 1.0, %v2624
  %v2626 = vtanh.pop %v2612
  %v2627 = vtanh.pop %v2613
  %v2628 = vmul.f32 %v2623, 0.0
  %v2629 = vmul.f32 %v2625, 0.0
  %2632 = vrot.lane.b32.xlu0 %v2626, 64
  %v2633 = vpop.permute.xlu0 %2632
  %2634 = vrot.lane.b32.xlu0 %v2627, 64
  %v2635 = vpop.permute.xlu0 %2634
  %v2638 = vmul.f32 %v2623, %v2633
  %v2639 = vmul.f32 %v2625, %v2635
  %2642 = vrot.lane.b32.xlu0 %v2638, 32
  %v2643 = vpop.permute.xlu0 %2642
  %2644 = vrot.lane.b32.xlu0 %v2639, 32
  %v2645 = vpop.permute.xlu0 %2644
  %v2648 = vadd.f32 %v2628, %v2643
  %v2649 = vadd.f32 %v2629, %v2645
  %v2650 = vtanh.pop %v2648
  %v2651 = vtanh.pop %v2649
  %2654 = vrot.lane.b32.xlu0 %v2650, 64
  %v2655 = vpop.permute.xlu0 %2654
  %2656 = vrot.lane.b32.xlu0 %v2651, 64
  %v2657 = vpop.permute.xlu0 %2656
  %v2660 = vmul.f32 %v2623, %v2655
  %v2661 = vmul.f32 %v2625, %v2657
  %2662 = vmatprep.subr.mxu0 0.0
  %2663 = vmatpush1.msra.mxu0 %v2439
  %2664 = vmatprep.subr.mxu0 0.0
  %2665 = vmatpush1.msra.mxu0 %v2440
  %2666 = vmatprep.subr.mxu0 0.0
  %2667 = vmatpush1.msra.mxu0 %v2441
  %2668 = vmatprep.subr.mxu0 0.0
  %2669 = vmatpush1.msra.mxu0 %v2442
  %2670 = vmatprep.subr.mxu0 0.0
  %2671 = vmatpush1.msra.mxu0 0.0
  %2672 = vmatprep.subr.mxu0 0.0
  %2673 = vmatpush1.msra.mxu0 0.0
  %2674 = vmatprep.subr.mxu0 0.0
  %2675 = vmatpush1.msra.mxu0 0.0
  %2676 = vmatprep.subr.mxu0 0.0
  %2677 = vmatpush1.msra.mxu0 0.0
  %2678 = vmatprep.subr.mxu0 0.0
  %2679 = vmatpush1.msra.mxu0 0.0
  %2680 = vmatprep.subr.mxu0 0.0
  %2681 = vmatpush1.msra.mxu0 0.0
  %2682 = vmatprep.subr.mxu0 0.0
  %2683 = vmatpush1.msra.mxu0 0.0
  %2684 = vmatprep.subr.mxu0 0.0
  %2685 = vmatpush1.msra.mxu0 0.0
  %2686 = vmatprep.subr.mxu0 0.0
  %2687 = vmatpush1.msra.mxu0 0.0
  %2688 = vmatprep.subr.mxu0 0.0
  %2689 = vmatpush1.msra.mxu0 0.0
  %2690 = vmatprep.subr.mxu0 0.0
  %2691 = vmatpush1.msra.mxu0 0.0
  %2692 = vmatprep.subr.mxu0 0.0
  %2693 = vmatpush1.msra.mxu0 0.0
  %2694 = vmatprep.subr.mxu0 0.0
  %2695 = vmatpush1.msra.mxu0 0.0
  %2696 = vmatprep.subr.mxu0 0.0
  %2697 = vmatpush1.msra.mxu0 0.0
  %2698 = vmatprep.subr.mxu0 0.0
  %2699 = vmatpush1.msra.mxu0 0.0
  %2700 = vmatprep.subr.mxu0 0.0
  %2701 = vmatpush1.msra.mxu0 0.0
  %2702 = vmatprep.subr.mxu0 0.0
  %2703 = vmatpush1.msra.mxu0 0.0
  %2704 = vmatprep.subr.mxu0 0.0
  %2705 = vmatpush1.msra.mxu0 0.0
  %2706 = vmatprep.subr.mxu0 0.0
  %2707 = vmatpush1.msra.mxu0 0.0
  %2708 = vmatprep.subr.mxu0 0.0
  %2709 = vmatpush1.msra.mxu0 0.0
  %2710 = vmatprep.subr.mxu0 0.0
  %2711 = vmatpush1.msra.mxu0 0.0
  %2712 = vmatprep.subr.mxu0 0.0
  %2713 = vmatpush1.msra.mxu0 0.0
  %2714 = vmatprep.subr.mxu0 0.0
  %2715 = vmatpush1.msra.mxu0 0.0
  %2716 = vmatprep.subr.mxu0 0.0
  %2717 = vmatpush1.msra.mxu0 0.0
  %2718 = vmatprep.subr.mxu0 0.0
  %2719 = vmatpush1.msra.mxu0 0.0
  %2720 = vmatprep.subr.mxu0 0.0
  %2721 = vmatpush1.msra.mxu0 0.0
  %2722 = vmatprep.subr.mxu0 0.0
  %2723 = vmatpush1.msra.mxu0 0.0
  %2724 = vmatprep.subr.mxu0 0.0
  %2725 = vmatpush1.msra.mxu0 0.0
  %2726 = vmatprep.mubr.f32.mxu0 0.0
  %2727 = vmatmul.mubr.f32.gmra.mrb[0].mxu0 %v159
  %v2728 = vpop.f32.mrb[0].mxu0
  %v2729 = vadd.f32 0.0, %v2728
  %v2730 = vpop.f32.mrb[0].mxu0
  %2731 = vdwg.mxu0
  %v2733 = vrot.slane %v2729, 1
  %v2734 = vrot.slane %v2729, 2
  %v2737 = vadd.f32 %v2530, %v2733
  %v2738 = vadd.f32 %v2536, %v2734
  %v2739 = vxor.u32 %v2737, 2147483648
  %v2740 = vxor.u32 %v2738, 2147483648
  %v2741 = vmul.f32 %v2739, 1.442695
  %v2742 = vpow.pop %v2741
  %v2743 = vmul.f32 %v2740, 1.442695
  %v2744 = vpow.pop %v2743
  %v2745 = vadd.f32 %v2742, 1.0
  %v2746 = vadd.f32 %v2744, 1.0
  %v2747 = vrcp.pop %v2745
  %v2748 = vmul.f32 1.0, %v2747
  %v2749 = vrcp.pop %v2746
  %v2750 = vmul.f32 1.0, %v2749
  %v2751 = vtanh.pop %v2737
  %v2752 = vtanh.pop %v2738
  %v2753 = vmul.f32 %v2748, 0.0
  %v2754 = vmul.f32 %v2750, 0.0
  %2757 = vrot.lane.b32.xlu0 %v2751, 64
  %v2758 = vpop.permute.xlu0 %2757
  %2759 = vrot.lane.b32.xlu0 %v2752, 64
  %v2760 = vpop.permute.xlu0 %2759
  %v2763 = vmul.f32 %v2748, %v2758
  %v2764 = vmul.f32 %v2750, %v2760
  %2767 = vrot.lane.b32.xlu0 %v2763, 32
  %v2768 = vpop.permute.xlu0 %2767
  %2769 = vrot.lane.b32.xlu0 %v2764, 32
  %v2770 = vpop.permute.xlu0 %2769
  %v2773 = vadd.f32 %v2753, %v2768
  %v2774 = vadd.f32 %v2754, %v2770
  %v2775 = vtanh.pop %v2773
  %v2776 = vtanh.pop %v2774
  %2779 = vrot.lane.b32.xlu0 %v2775, 64
  %v2780 = vpop.permute.xlu0 %2779
  %2781 = vrot.lane.b32.xlu0 %v2776, 64
  %v2782 = vpop.permute.xlu0 %2781
  %v2785 = vmul.f32 %v2748, %v2780
  %v2786 = vmul.f32 %v2750, %v2782
  %v2789 = vrot.slane %v2661, 7
  %v2790 = vsel %vm413, %v2789, %v2660
  %2791 = vrot.lane.b32.xlu0 %v2790, 32
  %v2792 = vpop.permute.xlu0 %2791
  %v2793 = vsel %vm74, %v2792, 0
  %2795 = vmatprep.subr.mxu0 0.0
  %2796 = vmatpush1.msra.mxu0 %v2435
  %2797 = vmatprep.subr.mxu0 0.0
  %2798 = vmatpush1.msra.mxu0 %v2436
  %2799 = vmatprep.subr.mxu0 0.0
  %2800 = vmatpush1.msra.mxu0 %v2437
  %2801 = vmatprep.subr.mxu0 0.0
  %2802 = vmatpush1.msra.mxu0 %v2438
  %2803 = vmatprep.subr.mxu0 0.0
  %2804 = vmatpush1.msra.mxu0 0.0
  %2805 = vmatprep.subr.mxu0 0.0
  %2806 = vmatpush1.msra.mxu0 0.0
  %2807 = vmatprep.subr.mxu0 0.0
  %2808 = vmatpush1.msra.mxu0 0.0
  %2809 = vmatprep.subr.mxu0 0.0
  %2810 = vmatpush1.msra.mxu0 0.0
  %2811 = vmatprep.subr.mxu0 0.0
  %2812 = vmatpush1.msra.mxu0 0.0
  %2813 = vmatprep.subr.mxu0 0.0
  %2814 = vmatpush1.msra.mxu0 0.0
  %2815 = vmatprep.subr.mxu0 0.0
  %2816 = vmatpush1.msra.mxu0 0.0
  %2817 = vmatprep.subr.mxu0 0.0
  %2818 = vmatpush1.msra.mxu0 0.0
  %2819 = vmatprep.subr.mxu0 0.0
  %2820 = vmatpush1.msra.mxu0 0.0
  %2821 = vmatprep.subr.mxu0 0.0
  %2822 = vmatpush1.msra.mxu0 0.0
  %2823 = vmatprep.subr.mxu0 0.0
  %2824 = vmatpush1.msra.mxu0 0.0
  %2825 = vmatprep.subr.mxu0 0.0
  %2826 = vmatpush1.msra.mxu0 0.0
  %2827 = vmatprep.subr.mxu0 0.0
  %2828 = vmatpush1.msra.mxu0 0.0
  %2829 = vmatprep.subr.mxu0 0.0
  %2830 = vmatpush1.msra.mxu0 0.0
  %2831 = vmatprep.subr.mxu0 0.0
  %2832 = vmatpush1.msra.mxu0 0.0
  %2833 = vmatprep.subr.mxu0 0.0
  %2834 = vmatpush1.msra.mxu0 0.0
  %2835 = vmatprep.subr.mxu0 0.0
  %2836 = vmatpush1.msra.mxu0 0.0
  %2837 = vmatprep.subr.mxu0 0.0
  %2838 = vmatpush1.msra.mxu0 0.0
  %2839 = vmatprep.subr.mxu0 0.0
  %2840 = vmatpush1.msra.mxu0 0.0
  %2841 = vmatprep.subr.mxu0 0.0
  %2842 = vmatpush1.msra.mxu0 0.0
  %2843 = vmatprep.subr.mxu0 0.0
  %2844 = vmatpush1.msra.mxu0 0.0
  %2845 = vmatprep.subr.mxu0 0.0
  %2846 = vmatpush1.msra.mxu0 0.0
  %2847 = vmatprep.subr.mxu0 0.0
  %2848 = vmatpush1.msra.mxu0 0.0
  %2849 = vmatprep.subr.mxu0 0.0
  %2850 = vmatpush1.msra.mxu0 0.0
  %2851 = vmatprep.subr.mxu0 0.0
  %2852 = vmatpush1.msra.mxu0 0.0
  %2853 = vmatprep.subr.mxu0 0.0
  %2854 = vmatpush1.msra.mxu0 0.0
  %2855 = vmatprep.subr.mxu0 0.0
  %2856 = vmatpush1.msra.mxu0 0.0
  %2857 = vmatprep.subr.mxu0 0.0
  %2858 = vmatpush1.msra.mxu0 0.0
  %2859 = vmatprep.mubr.f32.mxu0 0.0
  %2860 = vmatmul.mubr.f32.gmra.mrb[0].mxu0 %v2793
  %v2861 = vpop.f32.mrb[0].mxu0
  %v2862 = vadd.f32 0.0, %v2861
  %v2863 = vpop.f32.mrb[0].mxu0
  %2864 = vdwg.mxu0
  %v2866 = vrot.slane %v2862, 7
  %v2869 = vadd.f32 %v2528, %v2866
  %v2870 = vadd.f32 %v2534, %v2862
  %v2871 = vxor.u32 %v2869, 2147483648
  %v2872 = vxor.u32 %v2870, 2147483648
  %v2873 = vmul.f32 %v2871, 1.442695
  %v2874 = vpow.pop %v2873
  %v2875 = vmul.f32 %v2872, 1.442695
  %v2876 = vpow.pop %v2875
  %v2877 = vadd.f32 %v2874, 1.0
  %v2878 = vadd.f32 %v2876, 1.0
  %v2879 = vrcp.pop %v2877
  %v2880 = vmul.f32 1.0, %v2879
  %v2881 = vrcp.pop %v2878
  %v2882 = vmul.f32 1.0, %v2881
  %v2883 = vtanh.pop %v2869
  %v2884 = vtanh.pop %v2870
  %v2887 = vrot.slane %v2648, 7
  %v2888 = vrot.slane %v2649, 7
  %v2891 = vmul.f32 %v2880, %v2887
  %v2892 = vmul.f32 %v2882, %v2888
  %2895 = vrot.lane.b32.xlu0 %v2883, 64
  %v2896 = vpop.permute.xlu0 %2895
  %2897 = vrot.lane.b32.xlu0 %v2884, 64
  %v2898 = vpop.permute.xlu0 %2897
  %v2901 = vmul.f32 %v2880, %v2896
  %v2902 = vmul.f32 %v2882, %v2898
  %2905 = vrot.lane.b32.xlu0 %v2901, 32
  %v2906 = vpop.permute.xlu0 %2905
  %2907 = vrot.lane.b32.xlu0 %v2902, 32
  %v2908 = vpop.permute.xlu0 %2907
  %v2911 = vadd.f32 %v2891, %v2906
  %v2912 = vadd.f32 %v2892, %v2908
  %v2913 = vtanh.pop %v2911
  %v2914 = vtanh.pop %v2912
  %2917 = vrot.lane.b32.xlu0 %v2913, 64
  %v2918 = vpop.permute.xlu0 %2917
  %2919 = vrot.lane.b32.xlu0 %v2914, 64
  %v2920 = vpop.permute.xlu0 %2919
  %v2923 = vmul.f32 %v2880, %v2918
  %v2924 = vmul.f32 %v2882, %v2920
  %v2927 = vrot.slane %v2785, 7
  %v2928 = vrot.slane %v2786, 6
  %v2929 = vsel %vm413, %v2928, %v2927
  %2930 = vrot.lane.b32.xlu0 %v2929, 32
  %v2931 = vpop.permute.xlu0 %2930
  %v2932 = vsel %vm74, %v2931, 0
  %2934 = vmatprep.subr.mxu0 0.0
  %2935 = vmatpush1.msra.mxu0 %v2439
  %2936 = vmatprep.subr.mxu0 0.0
  %2937 = vmatpush1.msra.mxu0 %v2440
  %2938 = vmatprep.subr.mxu0 0.0
  %2939 = vmatpush1.msra.mxu0 %v2441
  %2940 = vmatprep.subr.mxu0 0.0
  %2941 = vmatpush1.msra.mxu0 %v2442
  %2942 = vmatprep.subr.mxu0 0.0
  %2943 = vmatpush1.msra.mxu0 0.0
  %2944 = vmatprep.subr.mxu0 0.0
  %2945 = vmatpush1.msra.mxu0 0.0
  %2946 = vmatprep.subr.mxu0 0.0
  %2947 = vmatpush1.msra.mxu0 0.0
  %2948 = vmatprep.subr.mxu0 0.0
  %2949 = vmatpush1.msra.mxu0 0.0
  %2950 = vmatprep.subr.mxu0 0.0
  %2951 = vmatpush1.msra.mxu0 0.0
  %2952 = vmatprep.subr.mxu0 0.0
  %2953 = vmatpush1.msra.mxu0 0.0
  %2954 = vmatprep.subr.mxu0 0.0
  %2955 = vmatpush1.msra.mxu0 0.0
  %2956 = vmatprep.subr.mxu0 0.0
  %2957 = vmatpush1.msra.mxu0 0.0
  %2958 = vmatprep.subr.mxu0 0.0
  %2959 = vmatpush1.msra.mxu0 0.0
  %2960 = vmatprep.subr.mxu0 0.0
  %2961 = vmatpush1.msra.mxu0 0.0
  %2962 = vmatprep.subr.mxu0 0.0
  %2963 = vmatpush1.msra.mxu0 0.0
  %2964 = vmatprep.subr.mxu0 0.0
  %2965 = vmatpush1.msra.mxu0 0.0
  %2966 = vmatprep.subr.mxu0 0.0
  %2967 = vmatpush1.msra.mxu0 0.0
  %2968 = vmatprep.subr.mxu0 0.0
  %2969 = vmatpush1.msra.mxu0 0.0
  %2970 = vmatprep.subr.mxu0 0.0
  %2971 = vmatpush1.msra.mxu0 0.0
  %2972 = vmatprep.subr.mxu0 0.0
  %2973 = vmatpush1.msra.mxu0 0.0
  %2974 = vmatprep.subr.mxu0 0.0
  %2975 = vmatpush1.msra.mxu0 0.0
  %2976 = vmatprep.subr.mxu0 0.0
  %2977 = vmatpush1.msra.mxu0 0.0
  %2978 = vmatprep.subr.mxu0 0.0
  %2979 = vmatpush1.msra.mxu0 0.0
  %2980 = vmatprep.subr.mxu0 0.0
  %2981 = vmatpush1.msra.mxu0 0.0
  %2982 = vmatprep.subr.mxu0 0.0
  %2983 = vmatpush1.msra.mxu0 0.0
  %2984 = vmatprep.subr.mxu0 0.0
  %2985 = vmatpush1.msra.mxu0 0.0
  %2986 = vmatprep.subr.mxu0 0.0
  %2987 = vmatpush1.msra.mxu0 0.0
  %2988 = vmatprep.subr.mxu0 0.0
  %2989 = vmatpush1.msra.mxu0 0.0
  %2990 = vmatprep.subr.mxu0 0.0
  %2991 = vmatpush1.msra.mxu0 0.0
  %2992 = vmatprep.subr.mxu0 0.0
  %2993 = vmatpush1.msra.mxu0 0.0
  %2994 = vmatprep.subr.mxu0 0.0
  %2995 = vmatpush1.msra.mxu0 0.0
  %2996 = vmatprep.subr.mxu0 0.0
  %2997 = vmatpush1.msra.mxu0 0.0
  %2998 = vmatprep.mubr.f32.mxu0 0.0
  %2999 = vmatmul.mubr.f32.gmra.mrb[0].mxu0 %v2932
  %v3000 = vpop.f32.mrb[0].mxu0
  %v3001 = vadd.f32 0.0, %v3000
  %v3002 = vpop.f32.mrb[0].mxu0
  %3003 = vdwg.mxu0
  %v3005 = vrot.slane %v3001, 2
  %v3006 = vrot.slane %v3001, 3
  %v3009 = vadd.f32 %v2530, %v3005
  %v3010 = vadd.f32 %v2536, %v3006
  %v3011 = vxor.u32 %v3009, 2147483648
  %v3012 = vxor.u32 %v3010, 2147483648
  %v3013 = vmul.f32 %v3011, 1.442695
  %v3014 = vpow.pop %v3013
  %v3015 = vmul.f32 %v3012, 1.442695
  %v3016 = vpow.pop %v3015
  %v3017 = vadd.f32 %v3014, 1.0
  %v3018 = vadd.f32 %v3016, 1.0
  %v3019 = vrcp.pop %v3017
  %v3020 = vmul.f32 1.0, %v3019
  %v3021 = vrcp.pop %v3018
  %v3022 = vmul.f32 1.0, %v3021
  %v3023 = vtanh.pop %v3009
  %v3024 = vtanh.pop %v3010
  %v3027 = vrot.slane %v2773, 1
  %v3028 = vrot.slane %v2774, 1
  %v3031 = vmul.f32 %v3020, %v3027
  %v3032 = vmul.f32 %v3022, %v3028
  %3035 = vrot.lane.b32.xlu0 %v3023, 64
  %v3036 = vpop.permute.xlu0 %3035
  %3037 = vrot.lane.b32.xlu0 %v3024, 64
  %v3038 = vpop.permute.xlu0 %3037
  %v3041 = vmul.f32 %v3020, %v3036
  %v3042 = vmul.f32 %v3022, %v3038
  %3045 = vrot.lane.b32.xlu0 %v3041, 32
  %v3046 = vpop.permute.xlu0 %3045
  %3047 = vrot.lane.b32.xlu0 %v3042, 32
  %v3048 = vpop.permute.xlu0 %3047
  %v3051 = vadd.f32 %v3031, %v3046
  %v3052 = vadd.f32 %v3032, %v3048
  %v3053 = vtanh.pop %v3051
  %v3054 = vtanh.pop %v3052
  %3057 = vrot.lane.b32.xlu0 %v3053, 64
  %v3058 = vpop.permute.xlu0 %3057
  %3059 = vrot.lane.b32.xlu0 %v3054, 64
  %v3060 = vpop.permute.xlu0 %3059
  %v3063 = vmul.f32 %v3020, %v3058
  %v3064 = vmul.f32 %v3022, %v3060
  %v3067 = vrot.slane %v2923, 1
  %v3068 = vsel %vm413, %v2924, %v3067
  %3069 = vrot.lane.b32.xlu0 %v3068, 32
  %v3070 = vpop.permute.xlu0 %3069
  %v3071 = vsel %vm74, %v3070, 0
  %3073 = vmatprep.subr.mxu0 0.0
  %3074 = vmatpush1.msra.mxu0 %v2435
  %3075 = vmatprep.subr.mxu0 0.0
  %3076 = vmatpush1.msra.mxu0 %v2436
  %3077 = vmatprep.subr.mxu0 0.0
  %3078 = vmatpush1.msra.mxu0 %v2437
  %3079 = vmatprep.subr.mxu0 0.0
  %3080 = vmatpush1.msra.mxu0 %v2438
  %3081 = vmatprep.subr.mxu0 0.0
  %3082 = vmatpush1.msra.mxu0 0.0
  %3083 = vmatprep.subr.mxu0 0.0
  %3084 = vmatpush1.msra.mxu0 0.0
  %3085 = vmatprep.subr.mxu0 0.0
  %3086 = vmatpush1.msra.mxu0 0.0
  %3087 = vmatprep.subr.mxu0 0.0
  %3088 = vmatpush1.msra.mxu0 0.0
  %3089 = vmatprep.subr.mxu0 0.0
  %3090 = vmatpush1.msra.mxu0 0.0
  %3091 = vmatprep.subr.mxu0 0.0
  %3092 = vmatpush1.msra.mxu0 0.0
  %3093 = vmatprep.subr.mxu0 0.0
  %3094 = vmatpush1.msra.mxu0 0.0
  %3095 = vmatprep.subr.mxu0 0.0
  %3096 = vmatpush1.msra.mxu0 0.0
  %3097 = vmatprep.subr.mxu0 0.0
  %3098 = vmatpush1.msra.mxu0 0.0
  %3099 = vmatprep.subr.mxu0 0.0
  %3100 = vmatpush1.msra.mxu0 0.0
  %3101 = vmatprep.subr.mxu0 0.0
  %3102 = vmatpush1.msra.mxu0 0.0
  %3103 = vmatprep.subr.mxu0 0.0
  %3104 = vmatpush1.msra.mxu0 0.0
  %3105 = vmatprep.subr.mxu0 0.0
  %3106 = vmatpush1.msra.mxu0 0.0
  %3107 = vmatprep.subr.mxu0 0.0
  %3108 = vmatpush1.msra.mxu0 0.0
  %3109 = vmatprep.subr.mxu0 0.0
  %3110 = vmatpush1.msra.mxu0 0.0
  %3111 = vmatprep.subr.mxu0 0.0
  %3112 = vmatpush1.msra.mxu0 0.0
  %3113 = vmatprep.subr.mxu0 0.0
  %3114 = vmatpush1.msra.mxu0 0.0
  %3115 = vmatprep.subr.mxu0 0.0
  %3116 = vmatpush1.msra.mxu0 0.0
  %3117 = vmatprep.subr.mxu0 0.0
  %3118 = vmatpush1.msra.mxu0 0.0
  %3119 = vmatprep.subr.mxu0 0.0
  %3120 = vmatpush1.msra.mxu0 0.0
  %3121 = vmatprep.subr.mxu0 0.0
  %3122 = vmatpush1.msra.mxu0 0.0
  %3123 = vmatprep.subr.mxu0 0.0
  %3124 = vmatpush1.msra.mxu0 0.0
  %3125 = vmatprep.subr.mxu0 0.0
  %3126 = vmatpush1.msra.mxu0 0.0
  %3127 = vmatprep.subr.mxu0 0.0
  %3128 = vmatpush1.msra.mxu0 0.0
  %3129 = vmatprep.subr.mxu0 0.0
  %3130 = vmatpush1.msra.mxu0 0.0
  %3131 = vmatprep.subr.mxu0 0.0
  %3132 = vmatpush1.msra.mxu0 0.0
  %3133 = vmatprep.subr.mxu0 0.0
  %3134 = vmatpush1.msra.mxu0 0.0
  %3135 = vmatprep.subr.mxu0 0.0
  %3136 = vmatpush1.msra.mxu0 0.0
  %3137 = vmatprep.mubr.f32.mxu0 0.0
  %3138 = vmatmul.mubr.f32.gmra.mrb[0].mxu0 %v3071
  %v3139 = vpop.f32.mrb[0].mxu0
  %v3140 = vadd.f32 0.0, %v3139
  %v3141 = vpop.f32.mrb[0].mxu0
  %3142 = vdwg.mxu0
  %v3144 = vrot.slane %v3140, 6
  %v3145 = vrot.slane %v3140, 7
  %v3148 = vadd.f32 %v2528, %v3144
  %v3149 = vadd.f32 %v2534, %v3145
  %v3150 = vxor.u32 %v3148, 2147483648
  %v3151 = vxor.u32 %v3149, 2147483648
  %v3152 = vmul.f32 %v3150, 1.442695
  %v3153 = vpow.pop %v3152
  %v3154 = vmul.f32 %v3151, 1.442695
  %v3155 = vpow.pop %v3154
  %v3156 = vadd.f32 %v3153, 1.0
  %v3157 = vadd.f32 %v3155, 1.0
  %v3158 = vrcp.pop %v3156
  %v3159 = vmul.f32 1.0, %v3158
  %v3160 = vrcp.pop %v3157
  %v3161 = vmul.f32 1.0, %v3160
  %v3162 = vtanh.pop %v3148
  %v3163 = vtanh.pop %v3149
  %v3166 = vrot.slane %v2911, 7
  %v3167 = vrot.slane %v2912, 7
  %v3170 = vmul.f32 %v3159, %v3166
  %v3171 = vmul.f32 %v3161, %v3167
  %3174 = vrot.lane.b32.xlu0 %v3162, 64
  %v3175 = vpop.permute.xlu0 %3174
  %3176 = vrot.lane.b32.xlu0 %v3163, 64
  %v3177 = vpop.permute.xlu0 %3176
  %v3180 = vmul.f32 %v3159, %v3175
  %v3181 = vmul.f32 %v3161, %v3177
  %3184 = vrot.lane.b32.xlu0 %v3180, 32
  %v3185 = vpop.permute.xlu0 %3184
  %3186 = vrot.lane.b32.xlu0 %v3181, 32
  %v3187 = vpop.permute.xlu0 %3186
  %v3190 = vadd.f32 %v3170, %v3185
  %v3191 = vadd.f32 %v3171, %v3187
  %v3192 = vtanh.pop %v3190
  %v3193 = vtanh.pop %v3191
  %3196 = vrot.lane.b32.xlu0 %v3192, 64
  %v3197 = vpop.permute.xlu0 %3196
  %3198 = vrot.lane.b32.xlu0 %v3193, 64
  %v3199 = vpop.permute.xlu0 %3198
  %v3202 = vmul.f32 %v3159, %v3197
  %v3203 = vmul.f32 %v3161, %v3199
  %v3206 = vrot.slane %v3063, 6
  %v3207 = vrot.slane %v3064, 5
  %v3208 = vsel %vm413, %v3207, %v3206
  %3209 = vrot.lane.b32.xlu0 %v3208, 32
  %v3210 = vpop.permute.xlu0 %3209
  %v3211 = vsel %vm74, %v3210, 0
  %3213 = vmatprep.subr.mxu0 0.0
  %3214 = vmatpush1.msra.mxu0 %v2439
  %3215 = vmatprep.subr.mxu0 0.0
  %3216 = vmatpush1.msra.mxu0 %v2440
  %3217 = vmatprep.subr.mxu0 0.0
  %3218 = vmatpush1.msra.mxu0 %v2441
  %3219 = vmatprep.subr.mxu0 0.0
  %3220 = vmatpush1.msra.mxu0 %v2442
  %3221 = vmatprep.subr.mxu0 0.0
  %3222 = vmatpush1.msra.mxu0 0.0
  %3223 = vmatprep.subr.mxu0 0.0
  %3224 = vmatpush1.msra.mxu0 0.0
  %3225 = vmatprep.subr.mxu0 0.0
  %3226 = vmatpush1.msra.mxu0 0.0
  %3227 = vmatprep.subr.mxu0 0.0
  %3228 = vmatpush1.msra.mxu0 0.0
  %3229 = vmatprep.subr.mxu0 0.0
  %3230 = vmatpush1.msra.mxu0 0.0
  %3231 = vmatprep.subr.mxu0 0.0
  %3232 = vmatpush1.msra.mxu0 0.0
  %3233 = vmatprep.subr.mxu0 0.0
  %3234 = vmatpush1.msra.mxu0 0.0
  %3235 = vmatprep.subr.mxu0 0.0
  %3236 = vmatpush1.msra.mxu0 0.0
  %3237 = vmatprep.subr.mxu0 0.0
  %3238 = vmatpush1.msra.mxu0 0.0
  %3239 = vmatprep.subr.mxu0 0.0
  %3240 = vmatpush1.msra.mxu0 0.0
  %3241 = vmatprep.subr.mxu0 0.0
  %3242 = vmatpush1.msra.mxu0 0.0
  %3243 = vmatprep.subr.mxu0 0.0
  %3244 = vmatpush1.msra.mxu0 0.0
  %3245 = vmatprep.subr.mxu0 0.0
  %3246 = vmatpush1.msra.mxu0 0.0
  %3247 = vmatprep.subr.mxu0 0.0
  %3248 = vmatpush1.msra.mxu0 0.0
  %3249 = vmatprep.subr.mxu0 0.0
  %3250 = vmatpush1.msra.mxu0 0.0
  %3251 = vmatprep.subr.mxu0 0.0
  %3252 = vmatpush1.msra.mxu0 0.0
  %3253 = vmatprep.subr.mxu0 0.0
  %3254 = vmatpush1.msra.mxu0 0.0
  %3255 = vmatprep.subr.mxu0 0.0
  %3256 = vmatpush1.msra.mxu0 0.0
  %3257 = vmatprep.subr.mxu0 0.0
  %3258 = vmatpush1.msra.mxu0 0.0
  %3259 = vmatprep.subr.mxu0 0.0
  %3260 = vmatpush1.msra.mxu0 0.0
  %3261 = vmatprep.subr.mxu0 0.0
  %3262 = vmatpush1.msra.mxu0 0.0
  %3263 = vmatprep.subr.mxu0 0.0
  %3264 = vmatpush1.msra.mxu0 0.0
  %3265 = vmatprep.subr.mxu0 0.0
  %3266 = vmatpush1.msra.mxu0 0.0
  %3267 = vmatprep.subr.mxu0 0.0
  %3268 = vmatpush1.msra.mxu0 0.0
  %3269 = vmatprep.subr.mxu0 0.0
  %3270 = vmatpush1.msra.mxu0 0.0
  %3271 = vmatprep.subr.mxu0 0.0
  %3272 = vmatpush1.msra.mxu0 0.0
  %3273 = vmatprep.subr.mxu0 0.0
  %3274 = vmatpush1.msra.mxu0 0.0
  %3275 = vmatprep.subr.mxu0 0.0
  %3276 = vmatpush1.msra.mxu0 0.0
  %3277 = vmatprep.mubr.f32.mxu0 0.0
  %3278 = vmatmul.mubr.f32.gmra.mrb[0].mxu0 %v3211
  %v3279 = vpop.f32.mrb[0].mxu0
  %v3280 = vadd.f32 0.0, %v3279
  %v3281 = vpop.f32.mrb[0].mxu0
  %3282 = vdwg.mxu0
  %v3284 = vrot.slane %v3280, 3
  %v3285 = vrot.slane %v3280, 4
  %v3288 = vadd.f32 %v2530, %v3284
  %v3289 = vadd.f32 %v2536, %v3285
  %v3290 = vxor.u32 %v3288, 2147483648
  %v3291 = vxor.u32 %v3289, 2147483648
  %v3292 = vmul.f32 %v3290, 1.442695
  %v3293 = vpow.pop %v3292
  %v3294 = vmul.f32 %v3291, 1.442695
  %v3295 = vpow.pop %v3294
  %v3296 = vadd.f32 %v3293, 1.0
  %v3297 = vadd.f32 %v3295, 1.0
  %v3298 = vrcp.pop %v3296
  %v3299 = vmul.f32 1.0, %v3298
  %v3300 = vrcp.pop %v3297
  %v3301 = vmul.f32 1.0, %v3300
  %v3302 = vtanh.pop %v3288
  %v3303 = vtanh.pop %v3289
  %v3306 = vrot.slane %v3051, 1
  %v3307 = vrot.slane %v3052, 1
  %v3310 = vmul.f32 %v3299, %v3306
  %v3311 = vmul.f32 %v3301, %v3307
  %3314 = vrot.lane.b32.xlu0 %v3302, 64
  %v3315 = vpop.permute.xlu0 %3314
  %3316 = vrot.lane.b32.xlu0 %v3303, 64
  %v3317 = vpop.permute.xlu0 %3316
  %v3320 = vmul.f32 %v3299, %v3315
  %v3321 = vmul.f32 %v3301, %v3317
  %3324 = vrot.lane.b32.xlu0 %v3320, 32
  %v3325 = vpop.permute.xlu0 %3324
  %3326 = vrot.lane.b32.xlu0 %v3321, 32
  %v3327 = vpop.permute.xlu0 %3326
  %v3330 = vadd.f32 %v3310, %v3325
  %v3331 = vadd.f32 %v3311, %v3327
  %v3332 = vtanh.pop %v3330
  %v3333 = vtanh.pop %v3331
  %3336 = vrot.lane.b32.xlu0 %v3332, 64
  %v3337 = vpop.permute.xlu0 %3336
  %3338 = vrot.lane.b32.xlu0 %v3333, 64
  %v3339 = vpop.permute.xlu0 %3338
  %v3342 = vmul.f32 %v3299, %v3337
  %v3343 = vmul.f32 %v3301, %v3339
  %v3346 = vrot.slane %v3202, 2
  %v3347 = vrot.slane %v3203, 1
  %v3348 = vsel %vm413, %v3347, %v3346
  %3349 = vrot.lane.b32.xlu0 %v3348, 32
  %v3350 = vpop.permute.xlu0 %3349
  %v3351 = vsel %vm74, %v3350, 0
  %3353 = vmatprep.subr.mxu0 0.0
  %3354 = vmatpush1.msra.mxu0 %v2435
  %3355 = vmatprep.subr.mxu0 0.0
  %3356 = vmatpush1.msra.mxu0 %v2436
  %3357 = vmatprep.subr.mxu0 0.0
  %3358 = vmatpush1.msra.mxu0 %v2437
  %3359 = vmatprep.subr.mxu0 0.0
  %3360 = vmatpush1.msra.mxu0 %v2438
  %3361 = vmatprep.subr.mxu0 0.0
  %3362 = vmatpush1.msra.mxu0 0.0
  %3363 = vmatprep.subr.mxu0 0.0
  %3364 = vmatpush1.msra.mxu0 0.0
  %3365 = vmatprep.subr.mxu0 0.0
  %3366 = vmatpush1.msra.mxu0 0.0
  %3367 = vmatprep.subr.mxu0 0.0
  %3368 = vmatpush1.msra.mxu0 0.0
  %3369 = vmatprep.subr.mxu0 0.0
  %3370 = vmatpush1.msra.mxu0 0.0
  %3371 = vmatprep.subr.mxu0 0.0
  %3372 = vmatpush1.msra.mxu0 0.0
  %3373 = vmatprep.subr.mxu0 0.0
  %3374 = vmatpush1.msra.mxu0 0.0
  %3375 = vmatprep.subr.mxu0 0.0
  %3376 = vmatpush1.msra.mxu0 0.0
  %3377 = vmatprep.subr.mxu0 0.0
  %3378 = vmatpush1.msra.mxu0 0.0
  %3379 = vmatprep.subr.mxu0 0.0
  %3380 = vmatpush1.msra.mxu0 0.0
  %3381 = vmatprep.subr.mxu0 0.0
  %3382 = vmatpush1.msra.mxu0 0.0
  %3383 = vmatprep.subr.mxu0 0.0
  %3384 = vmatpush1.msra.mxu0 0.0
  %3385 = vmatprep.subr.mxu0 0.0
  %3386 = vmatpush1.msra.mxu0 0.0
  %3387 = vmatprep.subr.mxu0 0.0
  %3388 = vmatpush1.msra.mxu0 0.0
  %3389 = vmatprep.subr.mxu0 0.0
  %3390 = vmatpush1.msra.mxu0 0.0
  %3391 = vmatprep.subr.mxu0 0.0
  %3392 = vmatpush1.msra.mxu0 0.0
  %3393 = vmatprep.subr.mxu0 0.0
  %3394 = vmatpush1.msra.mxu0 0.0
  %3395 = vmatprep.subr.mxu0 0.0
  %3396 = vmatpush1.msra.mxu0 0.0
  %3397 = vmatprep.subr.mxu0 0.0
  %3398 = vmatpush1.msra.mxu0 0.0
  %3399 = vmatprep.subr.mxu0 0.0
  %3400 = vmatpush1.msra.mxu0 0.0
  %3401 = vmatprep.subr.mxu0 0.0
  %3402 = vmatpush1.msra.mxu0 0.0
  %3403 = vmatprep.subr.mxu0 0.0
  %3404 = vmatpush1.msra.mxu0 0.0
  %3405 = vmatprep.subr.mxu0 0.0
  %3406 = vmatpush1.msra.mxu0 0.0
  %3407 = vmatprep.subr.mxu0 0.0
  %3408 = vmatpush1.msra.mxu0 0.0
  %3409 = vmatprep.subr.mxu0 0.0
  %3410 = vmatpush1.msra.mxu0 0.0
  %3411 = vmatprep.subr.mxu0 0.0
  %3412 = vmatpush1.msra.mxu0 0.0
  %3413 = vmatprep.subr.mxu0 0.0
  %3414 = vmatpush1.msra.mxu0 0.0
  %3415 = vmatprep.subr.mxu0 0.0
  %3416 = vmatpush1.msra.mxu0 0.0
  %3417 = vmatprep.mubr.f32.mxu0 0.0
  %3418 = vmatmul.mubr.f32.gmra.mrb[0].mxu0 %v3351
  %v3419 = vpop.f32.mrb[0].mxu0
  %v3420 = vadd.f32 0.0, %v3419
  %v3421 = vpop.f32.mrb[0].mxu0
  %3422 = vdwg.mxu0
  %v3424 = vrot.slane %v3420, 5
  %v3425 = vrot.slane %v3420, 6
  %v3428 = vadd.f32 %v2528, %v3424
  %v3429 = vadd.f32 %v2534, %v3425
  %v3430 = vxor.u32 %v3428, 2147483648
  %v3431 = vxor.u32 %v3429, 2147483648
  %v3432 = vmul.f32 %v3430, 1.442695
  %v3433 = vpow.pop %v3432
  %v3434 = vmul.f32 %v3431, 1.442695
  %v3435 = vpow.pop %v3434
  %v3436 = vadd.f32 %v3433, 1.0
  %v3437 = vadd.f32 %v3435, 1.0
  %v3438 = vrcp.pop %v3436
  %v3439 = vmul.f32 1.0, %v3438
  %v3440 = vrcp.pop %v3437
  %v3441 = vmul.f32 1.0, %v3440
  %v3442 = vtanh.pop %v3428
  %v3443 = vtanh.pop %v3429
  %v3446 = vrot.slane %v3190, 7
  %v3447 = vrot.slane %v3191, 7
  %v3450 = vmul.f32 %v3439, %v3446
  %v3451 = vmul.f32 %v3441, %v3447
  %3454 = vrot.lane.b32.xlu0 %v3442, 64
  %v3455 = vpop.permute.xlu0 %3454
  %3456 = vrot.lane.b32.xlu0 %v3443, 64
  %v3457 = vpop.permute.xlu0 %3456
  %v3460 = vmul.f32 %v3439, %v3455
  %v3461 = vmul.f32 %v3441, %v3457
  %3464 = vrot.lane.b32.xlu0 %v3460, 32
  %v3465 = vpop.permute.xlu0 %3464
  %3466 = vrot.lane.b32.xlu0 %v3461, 32
  %v3467 = vpop.permute.xlu0 %3466
  %v3470 = vadd.f32 %v3450, %v3465
  %v3471 = vadd.f32 %v3451, %v3467
  %v3472 = vtanh.pop %v3470
  %v3473 = vtanh.pop %v3471
  %3476 = vrot.lane.b32.xlu0 %v3472, 64
  %v3477 = vpop.permute.xlu0 %3476
  %3478 = vrot.lane.b32.xlu0 %v3473, 64
  %v3479 = vpop.permute.xlu0 %3478
  %v3482 = vmul.f32 %v3439, %v3477
  %v3483 = vmul.f32 %v3441, %v3479
  %v3486 = vrot.slane %v3342, 5
  %v3487 = vrot.slane %v3343, 4
  %v3488 = vsel %vm413, %v3487, %v3486
  %3489 = vrot.lane.b32.xlu0 %v3488, 32
  %v3490 = vpop.permute.xlu0 %3489
  %v3491 = vsel %vm74, %v3490, 0
  %3493 = vmatprep.subr.mxu0 0.0
  %3494 = vmatpush1.msra.mxu0 %v2439
  %3495 = vmatprep.subr.mxu0 0.0
  %3496 = vmatpush1.msra.mxu0 %v2440
  %3497 = vmatprep.subr.mxu0 0.0
  %3498 = vmatpush1.msra.mxu0 %v2441
  %3499 = vmatprep.subr.mxu0 0.0
  %3500 = vmatpush1.msra.mxu0 %v2442
  %3501 = vmatprep.subr.mxu0 0.0
  %3502 = vmatpush1.msra.mxu0 0.0
  %3503 = vmatprep.subr.mxu0 0.0
  %3504 = vmatpush1.msra.mxu0 0.0
  %3505 = vmatprep.subr.mxu0 0.0
  %3506 = vmatpush1.msra.mxu0 0.0
  %3507 = vmatprep.subr.mxu0 0.0
  %3508 = vmatpush1.msra.mxu0 0.0
  %3509 = vmatprep.subr.mxu0 0.0
  %3510 = vmatpush1.msra.mxu0 0.0
  %3511 = vmatprep.subr.mxu0 0.0
  %3512 = vmatpush1.msra.mxu0 0.0
  %3513 = vmatprep.subr.mxu0 0.0
  %3514 = vmatpush1.msra.mxu0 0.0
  %3515 = vmatprep.subr.mxu0 0.0
  %3516 = vmatpush1.msra.mxu0 0.0
  %3517 = vmatprep.subr.mxu0 0.0
  %3518 = vmatpush1.msra.mxu0 0.0
  %3519 = vmatprep.subr.mxu0 0.0
  %3520 = vmatpush1.msra.mxu0 0.0
  %3521 = vmatprep.subr.mxu0 0.0
  %3522 = vmatpush1.msra.mxu0 0.0
  %3523 = vmatprep.subr.mxu0 0.0
  %3524 = vmatpush1.msra.mxu0 0.0
  %3525 = vmatprep.subr.mxu0 0.0
  %3526 = vmatpush1.msra.mxu0 0.0
  %3527 = vmatprep.subr.mxu0 0.0
  %3528 = vmatpush1.msra.mxu0 0.0
  %3529 = vmatprep.subr.mxu0 0.0
  %3530 = vmatpush1.msra.mxu0 0.0
  %3531 = vmatprep.subr.mxu0 0.0
  %3532 = vmatpush1.msra.mxu0 0.0
  %3533 = vmatprep.subr.mxu0 0.0
  %3534 = vmatpush1.msra.mxu0 0.0
  %3535 = vmatprep.subr.mxu0 0.0
  %3536 = vmatpush1.msra.mxu0 0.0
  %3537 = vmatprep.subr.mxu0 0.0
  %3538 = vmatpush1.msra.mxu0 0.0
  %3539 = vmatprep.subr.mxu0 0.0
  %3540 = vmatpush1.msra.mxu0 0.0
  %3541 = vmatprep.subr.mxu0 0.0
  %3542 = vmatpush1.msra.mxu0 0.0
  %3543 = vmatprep.subr.mxu0 0.0
  %3544 = vmatpush1.msra.mxu0 0.0
  %3545 = vmatprep.subr.mxu0 0.0
  %3546 = vmatpush1.msra.mxu0 0.0
  %3547 = vmatprep.subr.mxu0 0.0
  %3548 = vmatpush1.msra.mxu0 0.0
  %3549 = vmatprep.subr.mxu0 0.0
  %3550 = vmatpush1.msra.mxu0 0.0
  %3551 = vmatprep.subr.mxu0 0.0
  %3552 = vmatpush1.msra.mxu0 0.0
  %3553 = vmatprep.subr.mxu0 0.0
  %3554 = vmatpush1.msra.mxu0 0.0
  %3555 = vmatprep.subr.mxu0 0.0
  %3556 = vmatpush1.msra.mxu0 0.0
  %3557 = vmatprep.mubr.f32.mxu0 0.0
  %3558 = vmatmul.mubr.f32.gmra.mrb[0].mxu0 %v3491
  %v3559 = vpop.f32.mrb[0].mxu0
  %v3560 = vadd.f32 0.0, %v3559
  %v3561 = vpop.f32.mrb[0].mxu0
  %3562 = vdwg.mxu0
  %v3564 = vrot.slane %v3560, 4
  %v3565 = vrot.slane %v3560, 5
  %v3568 = vadd.f32 %v2530, %v3564
  %v3569 = vadd.f32 %v2536, %v3565
  %v3570 = vxor.u32 %v3568, 2147483648
  %v3571 = vxor.u32 %v3569, 2147483648
  %v3572 = vmul.f32 %v3570, 1.442695
  %v3573 = vpow.pop %v3572
  %v3574 = vmul.f32 %v3571, 1.442695
  %v3575 = vpow.pop %v3574
  %v3576 = vadd.f32 %v3573, 1.0
  %v3577 = vadd.f32 %v3575, 1.0
  %v3578 = vrcp.pop %v3576
  %v3579 = vmul.f32 1.0, %v3578
  %v3580 = vrcp.pop %v3577
  %v3581 = vmul.f32 1.0, %v3580
  %v3582 = vtanh.pop %v3568
  %v3583 = vtanh.pop %v3569
  %v3586 = vrot.slane %v3330, 1
  %v3587 = vrot.slane %v3331, 1
  %v3590 = vmul.f32 %v3579, %v3586
  %v3591 = vmul.f32 %v3581, %v3587
  %3594 = vrot.lane.b32.xlu0 %v3582, 64
  %v3595 = vpop.permute.xlu0 %3594
  %3596 = vrot.lane.b32.xlu0 %v3583, 64
  %v3597 = vpop.permute.xlu0 %3596
  %v3600 = vmul.f32 %v3579, %v3595
  %v3601 = vmul.f32 %v3581, %v3597
  %3604 = vrot.lane.b32.xlu0 %v3600, 32
  %v3605 = vpop.permute.xlu0 %3604
  %3606 = vrot.lane.b32.xlu0 %v3601, 32
  %v3607 = vpop.permute.xlu0 %3606
  %v3610 = vadd.f32 %v3590, %v3605
  %v3611 = vadd.f32 %v3591, %v3607
  %v3612 = vtanh.pop %v3610
  %v3613 = vtanh.pop %v3611
  %3616 = vrot.lane.b32.xlu0 %v3612, 64
  %v3617 = vpop.permute.xlu0 %3616
  %3618 = vrot.lane.b32.xlu0 %v3613, 64
  %v3619 = vpop.permute.xlu0 %3618
  %v3622 = vmul.f32 %v3579, %v3617
  %v3623 = vmul.f32 %v3581, %v3619
  %v3626 = vrot.slane %v3482, 3
  %v3627 = vrot.slane %v3483, 2
  %v3628 = vsel %vm413, %v3627, %v3626
  %3629 = vrot.lane.b32.xlu0 %v3628, 32
  %v3630 = vpop.permute.xlu0 %3629
  %v3631 = vsel %vm74, %v3630, 0
  %3633 = vmatprep.subr.mxu0 0.0
  %3634 = vmatpush1.msra.mxu0 %v2435
  %3635 = vmatprep.subr.mxu0 0.0
  %3636 = vmatpush1.msra.mxu0 %v2436
  %3637 = vmatprep.subr.mxu0 0.0
  %3638 = vmatpush1.msra.mxu0 %v2437
  %3639 = vmatprep.subr.mxu0 0.0
  %3640 = vmatpush1.msra.mxu0 %v2438
  %3641 = vmatprep.subr.mxu0 0.0
  %3642 = vmatpush1.msra.mxu0 0.0
  %3643 = vmatprep.subr.mxu0 0.0
  %3644 = vmatpush1.msra.mxu0 0.0
  %3645 = vmatprep.subr.mxu0 0.0
  %3646 = vmatpush1.msra.mxu0 0.0
  %3647 = vmatprep.subr.mxu0 0.0
  %3648 = vmatpush1.msra.mxu0 0.0
  %3649 = vmatprep.subr.mxu0 0.0
  %3650 = vmatpush1.msra.mxu0 0.0
  %3651 = vmatprep.subr.mxu0 0.0
  %3652 = vmatpush1.msra.mxu0 0.0
  %3653 = vmatprep.subr.mxu0 0.0
  %3654 = vmatpush1.msra.mxu0 0.0
  %3655 = vmatprep.subr.mxu0 0.0
  %3656 = vmatpush1.msra.mxu0 0.0
  %3657 = vmatprep.subr.mxu0 0.0
  %3658 = vmatpush1.msra.mxu0 0.0
  %3659 = vmatprep.subr.mxu0 0.0
  %3660 = vmatpush1.msra.mxu0 0.0
  %3661 = vmatprep.subr.mxu0 0.0
  %3662 = vmatpush1.msra.mxu0 0.0
  %3663 = vmatprep.subr.mxu0 0.0
  %3664 = vmatpush1.msra.mxu0 0.0
  %3665 = vmatprep.subr.mxu0 0.0
  %3666 = vmatpush1.msra.mxu0 0.0
  %3667 = vmatprep.subr.mxu0 0.0
  %3668 = vmatpush1.msra.mxu0 0.0
  %3669 = vmatprep.subr.mxu0 0.0
  %3670 = vmatpush1.msra.mxu0 0.0
  %3671 = vmatprep.subr.mxu0 0.0
  %3672 = vmatpush1.msra.mxu0 0.0
  %3673 = vmatprep.subr.mxu0 0.0
  %3674 = vmatpush1.msra.mxu0 0.0
  %3675 = vmatprep.subr.mxu0 0.0
  %3676 = vmatpush1.msra.mxu0 0.0
  %3677 = vmatprep.subr.mxu0 0.0
  %3678 = vmatpush1.msra.mxu0 0.0
  %3679 = vmatprep.subr.mxu0 0.0
  %3680 = vmatpush1.msra.mxu0 0.0
  %3681 = vmatprep.subr.mxu0 0.0
  %3682 = vmatpush1.msra.mxu0 0.0
  %3683 = vmatprep.subr.mxu0 0.0
  %3684 = vmatpush1.msra.mxu0 0.0
  %3685 = vmatprep.subr.mxu0 0.0
  %3686 = vmatpush1.msra.mxu0 0.0
  %3687 = vmatprep.subr.mxu0 0.0
  %3688 = vmatpush1.msra.mxu0 0.0
  %3689 = vmatprep.subr.mxu0 0.0
  %3690 = vmatpush1.msra.mxu0 0.0
  %3691 = vmatprep.subr.mxu0 0.0
  %3692 = vmatpush1.msra.mxu0 0.0
  %3693 = vmatprep.subr.mxu0 0.0
  %3694 = vmatpush1.msra.mxu0 0.0
  %3695 = vmatprep.subr.mxu0 0.0
  %3696 = vmatpush1.msra.mxu0 0.0
  %3697 = vmatprep.mubr.f32.mxu0 0.0
  %3698 = vmatmul.mubr.f32.gmra.mrb[0].mxu0 %v3631
  %v3699 = vpop.f32.mrb[0].mxu0
  %v3700 = vadd.f32 0.0, %v3699
  %v3701 = vpop.f32.mrb[0].mxu0
  %3702 = vdwg.mxu0
  %v3704 = vrot.slane %v3700, 4
  %v3705 = vrot.slane %v3700, 5
  %v3708 = vadd.f32 %v2528, %v3704
  %v3709 = vadd.f32 %v2534, %v3705
  %v3710 = vxor.u32 %v3708, 2147483648
  %v3711 = vxor.u32 %v3709, 2147483648
  %v3712 = vmul.f32 %v3710, 1.442695
  %v3713 = vpow.pop %v3712
  %v3714 = vmul.f32 %v3711, 1.442695
  %v3715 = vpow.pop %v3714
  %v3716 = vadd.f32 %v3713, 1.0
  %v3717 = vadd.f32 %v3715, 1.0
  %v3718 = vrcp.pop %v3716
  %v3719 = vmul.f32 1.0, %v3718
  %v3720 = vrcp.pop %v3717
  %v3721 = vmul.f32 1.0, %v3720
  %v3722 = vtanh.pop %v3708
  %v3723 = vtanh.pop %v3709
  %v3726 = vrot.slane %v3470, 7
  %v3727 = vrot.slane %v3471, 7
  %v3730 = vmul.f32 %v3719, %v3726
  %v3731 = vmul.f32 %v3721, %v3727
  %3734 = vrot.lane.b32.xlu0 %v3722, 64
  %v3735 = vpop.permute.xlu0 %3734
  %3736 = vrot.lane.b32.xlu0 %v3723, 64
  %v3737 = vpop.permute.xlu0 %3736
  %v3740 = vmul.f32 %v3719, %v3735
  %v3741 = vmul.f32 %v3721, %v3737
  %3744 = vrot.lane.b32.xlu0 %v3740, 32
  %v3745 = vpop.permute.xlu0 %3744
  %3746 = vrot.lane.b32.xlu0 %v3741, 32
  %v3747 = vpop.permute.xlu0 %3746
  %v3750 = vadd.f32 %v3730, %v3745
  %v3751 = vadd.f32 %v3731, %v3747
  %v3752 = vtanh.pop %v3750
  %v3753 = vtanh.pop %v3751
  %3756 = vrot.lane.b32.xlu0 %v3752, 64
  %v3757 = vpop.permute.xlu0 %3756
  %3758 = vrot.lane.b32.xlu0 %v3753, 64
  %v3759 = vpop.permute.xlu0 %3758
  %v3762 = vmul.f32 %v3719, %v3757
  %v3763 = vmul.f32 %v3721, %v3759
  %v3766 = vrot.slane %v3622, 4
  %v3767 = vrot.slane %v3623, 3
  %v3768 = vsel %vm413, %v3767, %v3766
  %3769 = vrot.lane.b32.xlu0 %v3768, 32
  %v3770 = vpop.permute.xlu0 %3769
  %v3771 = vsel %vm74, %v3770, 0
  %3773 = vmatprep.subr.mxu0 0.0
  %3774 = vmatpush1.msra.mxu0 %v2439
  %3775 = vmatprep.subr.mxu0 0.0
  %3776 = vmatpush1.msra.mxu0 %v2440
  %3777 = vmatprep.subr.mxu0 0.0
  %3778 = vmatpush1.msra.mxu0 %v2441
  %3779 = vmatprep.subr.mxu0 0.0
  %3780 = vmatpush1.msra.mxu0 %v2442
  %3781 = vmatprep.subr.mxu0 0.0
  %3782 = vmatpush1.msra.mxu0 0.0
  %3783 = vmatprep.subr.mxu0 0.0
  %3784 = vmatpush1.msra.mxu0 0.0
  %3785 = vmatprep.subr.mxu0 0.0
  %3786 = vmatpush1.msra.mxu0 0.0
  %3787 = vmatprep.subr.mxu0 0.0
  %3788 = vmatpush1.msra.mxu0 0.0
  %3789 = vmatprep.subr.mxu0 0.0
  %3790 = vmatpush1.msra.mxu0 0.0
  %3791 = vmatprep.subr.mxu0 0.0
  %3792 = vmatpush1.msra.mxu0 0.0
  %3793 = vmatprep.subr.mxu0 0.0
  %3794 = vmatpush1.msra.mxu0 0.0
  %3795 = vmatprep.subr.mxu0 0.0
  %3796 = vmatpush1.msra.mxu0 0.0
  %3797 = vmatprep.subr.mxu0 0.0
  %3798 = vmatpush1.msra.mxu0 0.0
  %3799 = vmatprep.subr.mxu0 0.0
  %3800 = vmatpush1.msra.mxu0 0.0
  %3801 = vmatprep.subr.mxu0 0.0
  %3802 = vmatpush1.msra.mxu0 0.0
  %3803 = vmatprep.subr.mxu0 0.0
  %3804 = vmatpush1.msra.mxu0 0.0
  %3805 = vmatprep.subr.mxu0 0.0
  %3806 = vmatpush1.msra.mxu0 0.0
  %3807 = vmatprep.subr.mxu0 0.0
  %3808 = vmatpush1.msra.mxu0 0.0
  %3809 = vmatprep.subr.mxu0 0.0
  %3810 = vmatpush1.msra.mxu0 0.0
  %3811 = vmatprep.subr.mxu0 0.0
  %3812 = vmatpush1.msra.mxu0 0.0
  %3813 = vmatprep.subr.mxu0 0.0
  %3814 = vmatpush1.msra.mxu0 0.0
  %3815 = vmatprep.subr.mxu0 0.0
  %3816 = vmatpush1.msra.mxu0 0.0
  %3817 = vmatprep.subr.mxu0 0.0
  %3818 = vmatpush1.msra.mxu0 0.0
  %3819 = vmatprep.subr.mxu0 0.0
  %3820 = vmatpush1.msra.mxu0 0.0
  %3821 = vmatprep.subr.mxu0 0.0
  %3822 = vmatpush1.msra.mxu0 0.0
  %3823 = vmatprep.subr.mxu0 0.0
  %3824 = vmatpush1.msra.mxu0 0.0
  %3825 = vmatprep.subr.mxu0 0.0
  %3826 = vmatpush1.msra.mxu0 0.0
  %3827 = vmatprep.subr.mxu0 0.0
  %3828 = vmatpush1.msra.mxu0 0.0
  %3829 = vmatprep.subr.mxu0 0.0
  %3830 = vmatpush1.msra.mxu0 0.0
  %3831 = vmatprep.subr.mxu0 0.0
  %3832 = vmatpush1.msra.mxu0 0.0
  %3833 = vmatprep.subr.mxu0 0.0
  %3834 = vmatpush1.msra.mxu0 0.0
  %3835 = vmatprep.subr.mxu0 0.0
  %3836 = vmatpush1.msra.mxu0 0.0
  %3837 = vmatprep.mubr.f32.mxu0 0.0
  %3838 = vmatmul.mubr.f32.gmra.mrb[0].mxu0 %v3771
  %v3839 = vpop.f32.mrb[0].mxu0
  %v3840 = vadd.f32 0.0, %v3839
  %v3841 = vpop.f32.mrb[0].mxu0
  %3842 = vdwg.mxu0
  %v3844 = vrot.slane %v3840, 5
  %v3845 = vrot.slane %v3840, 6
  %v3848 = vadd.f32 %v2530, %v3844
  %v3849 = vadd.f32 %v2536, %v3845
  %v3850 = vxor.u32 %v3848, 2147483648
  %v3851 = vxor.u32 %v3849, 2147483648
  %v3852 = vmul.f32 %v3850, 1.442695
  %v3853 = vpow.pop %v3852
  %v3854 = vmul.f32 %v3851, 1.442695
  %v3855 = vpow.pop %v3854
  %v3856 = vadd.f32 %v3853, 1.0
  %v3857 = vadd.f32 %v3855, 1.0
  %v3858 = vrcp.pop %v3856
  %v3859 = vmul.f32 1.0, %v3858
  %v3860 = vrcp.pop %v3857
  %v3861 = vmul.f32 1.0, %v3860
  %v3862 = vtanh.pop %v3848
  %v3863 = vtanh.pop %v3849
  %v3866 = vrot.slane %v3610, 1
  %v3867 = vrot.slane %v3611, 1
  %v3870 = vmul.f32 %v3859, %v3866
  %v3871 = vmul.f32 %v3861, %v3867
  %3874 = vrot.lane.b32.xlu0 %v3862, 64
  %v3875 = vpop.permute.xlu0 %3874
  %3876 = vrot.lane.b32.xlu0 %v3863, 64
  %v3877 = vpop.permute.xlu0 %3876
  %v3880 = vmul.f32 %v3859, %v3875
  %v3881 = vmul.f32 %v3861, %v3877
  %3884 = vrot.lane.b32.xlu0 %v3880, 32
  %v3885 = vpop.permute.xlu0 %3884
  %3886 = vrot.lane.b32.xlu0 %v3881, 32
  %v3887 = vpop.permute.xlu0 %3886
  %v3890 = vadd.f32 %v3870, %v3885
  %v3891 = vadd.f32 %v3871, %v3887
  %v3892 = vtanh.pop %v3890
  %v3893 = vtanh.pop %v3891
  %3896 = vrot.lane.b32.xlu0 %v3892, 64
  %v3897 = vpop.permute.xlu0 %3896
  %3898 = vrot.lane.b32.xlu0 %v3893, 64
  %v3899 = vpop.permute.xlu0 %3898
  %v3902 = vmul.f32 %v3859, %v3897
  %v3903 = vmul.f32 %v3861, %v3899
  %v3906 = vrot.slane %v3762, 4
  %v3907 = vrot.slane %v3763, 3
  %v3908 = vsel %vm413, %v3907, %v3906
  %3909 = vrot.lane.b32.xlu0 %v3908, 32
  %v3910 = vpop.permute.xlu0 %3909
  %v3911 = vsel %vm74, %v3910, 0
  %3913 = vmatprep.subr.mxu0 0.0
  %3914 = vmatpush1.msra.mxu0 %v2435
  %3915 = vmatprep.subr.mxu0 0.0
  %3916 = vmatpush1.msra.mxu0 %v2436
  %3917 = vmatprep.subr.mxu0 0.0
  %3918 = vmatpush1.msra.mxu0 %v2437
  %3919 = vmatprep.subr.mxu0 0.0
  %3920 = vmatpush1.msra.mxu0 %v2438
  %3921 = vmatprep.subr.mxu0 0.0
  %3922 = vmatpush1.msra.mxu0 0.0
  %3923 = vmatprep.subr.mxu0 0.0
  %3924 = vmatpush1.msra.mxu0 0.0
  %3925 = vmatprep.subr.mxu0 0.0
  %3926 = vmatpush1.msra.mxu0 0.0
  %3927 = vmatprep.subr.mxu0 0.0
  %3928 = vmatpush1.msra.mxu0 0.0
  %3929 = vmatprep.subr.mxu0 0.0
  %3930 = vmatpush1.msra.mxu0 0.0
  %3931 = vmatprep.subr.mxu0 0.0
  %3932 = vmatpush1.msra.mxu0 0.0
  %3933 = vmatprep.subr.mxu0 0.0
  %3934 = vmatpush1.msra.mxu0 0.0
  %3935 = vmatprep.subr.mxu0 0.0
  %3936 = vmatpush1.msra.mxu0 0.0
  %3937 = vmatprep.subr.mxu0 0.0
  %3938 = vmatpush1.msra.mxu0 0.0
  %3939 = vmatprep.subr.mxu0 0.0
  %3940 = vmatpush1.msra.mxu0 0.0
  %3941 = vmatprep.subr.mxu0 0.0
  %3942 = vmatpush1.msra.mxu0 0.0
  %3943 = vmatprep.subr.mxu0 0.0
  %3944 = vmatpush1.msra.mxu0 0.0
  %3945 = vmatprep.subr.mxu0 0.0
  %3946 = vmatpush1.msra.mxu0 0.0
  %3947 = vmatprep.subr.mxu0 0.0
  %3948 = vmatpush1.msra.mxu0 0.0
  %3949 = vmatprep.subr.mxu0 0.0
  %3950 = vmatpush1.msra.mxu0 0.0
  %3951 = vmatprep.subr.mxu0 0.0
  %3952 = vmatpush1.msra.mxu0 0.0
  %3953 = vmatprep.subr.mxu0 0.0
  %3954 = vmatpush1.msra.mxu0 0.0
  %3955 = vmatprep.subr.mxu0 0.0
  %3956 = vmatpush1.msra.mxu0 0.0
  %3957 = vmatprep.subr.mxu0 0.0
  %3958 = vmatpush1.msra.mxu0 0.0
  %3959 = vmatprep.subr.mxu0 0.0
  %3960 = vmatpush1.msra.mxu0 0.0
  %3961 = vmatprep.subr.mxu0 0.0
  %3962 = vmatpush1.msra.mxu0 0.0
  %3963 = vmatprep.subr.mxu0 0.0
  %3964 = vmatpush1.msra.mxu0 0.0
  %3965 = vmatprep.subr.mxu0 0.0
  %3966 = vmatpush1.msra.mxu0 0.0
  %3967 = vmatprep.subr.mxu0 0.0
  %3968 = vmatpush1.msra.mxu0 0.0
  %3969 = vmatprep.subr.mxu0 0.0
  %3970 = vmatpush1.msra.mxu0 0.0
  %3971 = vmatprep.subr.mxu0 0.0
  %3972 = vmatpush1.msra.mxu0 0.0
  %3973 = vmatprep.subr.mxu0 0.0
  %3974 = vmatpush1.msra.mxu0 0.0
  %3975 = vmatprep.subr.mxu0 0.0
  %3976 = vmatpush1.msra.mxu0 0.0
  %3977 = vmatprep.mubr.f32.mxu0 0.0
  %3978 = vmatmul.mubr.f32.gmra.mrb[0].mxu0 %v3911
  %v3979 = vpop.f32.mrb[0].mxu0
  %v3980 = vadd.f32 0.0, %v3979
  %v3981 = vpop.f32.mrb[0].mxu0
  %3982 = vdwg.mxu0
  %v3984 = vrot.slane %v3980, 3
  %v3985 = vrot.slane %v3980, 4
  %v3988 = vadd.f32 %v2528, %v3984
  %v3989 = vadd.f32 %v2534, %v3985
  %v3990 = vxor.u32 %v3988, 2147483648
  %v3991 = vxor.u32 %v3989, 2147483648
  %v3992 = vmul.f32 %v3990, 1.442695
  %v3993 = vpow.pop %v3992
  %v3994 = vmul.f32 %v3991, 1.442695
  %v3995 = vpow.pop %v3994
  %v3996 = vadd.f32 %v3993, 1.0
  %v3997 = vadd.f32 %v3995, 1.0
  %v3998 = vrcp.pop %v3996
  %v3999 = vmul.f32 1.0, %v3998
  %v4000 = vrcp.pop %v3997
  %v4001 = vmul.f32 1.0, %v4000
  %v4002 = vtanh.pop %v3988
  %v4003 = vtanh.pop %v3989
  %v4006 = vrot.slane %v3750, 7
  %v4007 = vrot.slane %v3751, 7
  %v4010 = vmul.f32 %v3999, %v4006
  %v4011 = vmul.f32 %v4001, %v4007
  %4014 = vrot.lane.b32.xlu0 %v4002, 64
  %v4015 = vpop.permute.xlu0 %4014
  %4016 = vrot.lane.b32.xlu0 %v4003, 64
  %v4017 = vpop.permute.xlu0 %4016
  %v4020 = vmul.f32 %v3999, %v4015
  %v4021 = vmul.f32 %v4001, %v4017
  %4024 = vrot.lane.b32.xlu0 %v4020, 32
  %v4025 = vpop.permute.xlu0 %4024
  %4026 = vrot.lane.b32.xlu0 %v4021, 32
  %v4027 = vpop.permute.xlu0 %4026
  %v4030 = vadd.f32 %v4010, %v4025
  %v4031 = vadd.f32 %v4011, %v4027
  %v4032 = vtanh.pop %v4030
  %v4033 = vtanh.pop %v4031
  %4036 = vrot.lane.b32.xlu0 %v4032, 64
  %v4037 = vpop.permute.xlu0 %4036
  %4038 = vrot.lane.b32.xlu0 %v4033, 64
  %v4039 = vpop.permute.xlu0 %4038
  %v4042 = vmul.f32 %v3999, %v4037
  %v4043 = vmul.f32 %v4001, %v4039
  %v4046 = vrot.slane %v3902, 3
  %v4047 = vrot.slane %v3903, 2
  %v4048 = vsel %vm413, %v4047, %v4046
  %4049 = vrot.lane.b32.xlu0 %v4048, 32
  %v4050 = vpop.permute.xlu0 %4049
  %v4051 = vsel %vm74, %v4050, 0
  %4053 = vmatprep.subr.mxu0 0.0
  %4054 = vmatpush1.msra.mxu0 %v2439
  %4055 = vmatprep.subr.mxu0 0.0
  %4056 = vmatpush1.msra.mxu0 %v2440
  %4057 = vmatprep.subr.mxu0 0.0
  %4058 = vmatpush1.msra.mxu0 %v2441
  %4059 = vmatprep.subr.mxu0 0.0
  %4060 = vmatpush1.msra.mxu0 %v2442
  %4061 = vmatprep.subr.mxu0 0.0
  %4062 = vmatpush1.msra.mxu0 0.0
  %4063 = vmatprep.subr.mxu0 0.0
  %4064 = vmatpush1.msra.mxu0 0.0
  %4065 = vmatprep.subr.mxu0 0.0
  %4066 = vmatpush1.msra.mxu0 0.0
  %4067 = vmatprep.subr.mxu0 0.0
  %4068 = vmatpush1.msra.mxu0 0.0
  %4069 = vmatprep.subr.mxu0 0.0
  %4070 = vmatpush1.msra.mxu0 0.0
  %4071 = vmatprep.subr.mxu0 0.0
  %4072 = vmatpush1.msra.mxu0 0.0
  %4073 = vmatprep.subr.mxu0 0.0
  %4074 = vmatpush1.msra.mxu0 0.0
  %4075 = vmatprep.subr.mxu0 0.0
  %4076 = vmatpush1.msra.mxu0 0.0
  %4077 = vmatprep.subr.mxu0 0.0
  %4078 = vmatpush1.msra.mxu0 0.0
  %4079 = vmatprep.subr.mxu0 0.0
  %4080 = vmatpush1.msra.mxu0 0.0
  %4081 = vmatprep.subr.mxu0 0.0
  %4082 = vmatpush1.msra.mxu0 0.0
  %4083 = vmatprep.subr.mxu0 0.0
  %4084 = vmatpush1.msra.mxu0 0.0
  %4085 = vmatprep.subr.mxu0 0.0
  %4086 = vmatpush1.msra.mxu0 0.0
  %4087 = vmatprep.subr.mxu0 0.0
  %4088 = vmatpush1.msra.mxu0 0.0
  %4089 = vmatprep.subr.mxu0 0.0
  %4090 = vmatpush1.msra.mxu0 0.0
  %4091 = vmatprep.subr.mxu0 0.0
  %4092 = vmatpush1.msra.mxu0 0.0
  %4093 = vmatprep.subr.mxu0 0.0
  %4094 = vmatpush1.msra.mxu0 0.0
  %4095 = vmatprep.subr.mxu0 0.0
  %4096 = vmatpush1.msra.mxu0 0.0
  %4097 = vmatprep.subr.mxu0 0.0
  %4098 = vmatpush1.msra.mxu0 0.0
  %4099 = vmatprep.subr.mxu0 0.0
  %4100 = vmatpush1.msra.mxu0 0.0
  %4101 = vmatprep.subr.mxu0 0.0
  %4102 = vmatpush1.msra.mxu0 0.0
  %4103 = vmatprep.subr.mxu0 0.0
  %4104 = vmatpush1.msra.mxu0 0.0
  %4105 = vmatprep.subr.mxu0 0.0
  %4106 = vmatpush1.msra.mxu0 0.0
  %4107 = vmatprep.subr.mxu0 0.0
  %4108 = vmatpush1.msra.mxu0 0.0
  %4109 = vmatprep.subr.mxu0 0.0
  %4110 = vmatpush1.msra.mxu0 0.0
  %4111 = vmatprep.subr.mxu0 0.0
  %4112 = vmatpush1.msra.mxu0 0.0
  %4113 = vmatprep.subr.mxu0 0.0
  %4114 = vmatpush1.msra.mxu0 0.0
  %4115 = vmatprep.subr.mxu0 0.0
  %4116 = vmatpush1.msra.mxu0 0.0
  %4117 = vmatprep.mubr.f32.mxu0 0.0
  %4118 = vmatmul.mubr.f32.gmra.mrb[0].mxu0 %v4051
  %v4119 = vpop.f32.mrb[0].mxu0
  %v4120 = vadd.f32 0.0, %v4119
  %v4121 = vpop.f32.mrb[0].mxu0
  %4122 = vdwg.mxu0
  %v4124 = vrot.slane %v4120, 6
  %v4125 = vrot.slane %v4120, 7
  %v4128 = vadd.f32 %v2530, %v4124
  %v4129 = vadd.f32 %v2536, %v4125
  %v4130 = vxor.u32 %v4128, 2147483648
  %v4131 = vxor.u32 %v4129, 2147483648
  %v4132 = vmul.f32 %v4130, 1.442695
  %v4133 = vpow.pop %v4132
  %v4134 = vmul.f32 %v4131, 1.442695
  %v4135 = vpow.pop %v4134
  %v4136 = vadd.f32 %v4133, 1.0
  %v4137 = vadd.f32 %v4135, 1.0
  %v4138 = vrcp.pop %v4136
  %v4139 = vmul.f32 1.0, %v4138
  %v4140 = vrcp.pop %v4137
  %v4141 = vmul.f32 1.0, %v4140
  %v4142 = vtanh.pop %v4128
  %v4143 = vtanh.pop %v4129
  %v4146 = vrot.slane %v3890, 1
  %v4147 = vrot.slane %v3891, 1
  %v4150 = vmul.f32 %v4139, %v4146
  %v4151 = vmul.f32 %v4141, %v4147
  %4154 = vrot.lane.b32.xlu0 %v4142, 64
  %v4155 = vpop.permute.xlu0 %4154
  %4156 = vrot.lane.b32.xlu0 %v4143, 64
  %v4157 = vpop.permute.xlu0 %4156
  %v4160 = vmul.f32 %v4139, %v4155
  %v4161 = vmul.f32 %v4141, %v4157
  %4164 = vrot.lane.b32.xlu0 %v4160, 32
  %v4165 = vpop.permute.xlu0 %4164
  %4166 = vrot.lane.b32.xlu0 %v4161, 32
  %v4167 = vpop.permute.xlu0 %4166
  %v4170 = vadd.f32 %v4150, %v4165
  %v4171 = vadd.f32 %v4151, %v4167
  %v4172 = vtanh.pop %v4170
  %v4173 = vtanh.pop %v4171
  %4176 = vrot.lane.b32.xlu0 %v4172, 64
  %v4177 = vpop.permute.xlu0 %4176
  %4178 = vrot.lane.b32.xlu0 %v4173, 64
  %v4179 = vpop.permute.xlu0 %4178
  %v4182 = vmul.f32 %v4139, %v4177
  %v4183 = vmul.f32 %v4141, %v4179
  %v4186 = vrot.slane %v4042, 5
  %v4187 = vrot.slane %v4043, 4
  %v4188 = vsel %vm413, %v4187, %v4186
  %4189 = vrot.lane.b32.xlu0 %v4188, 32
  %v4190 = vpop.permute.xlu0 %4189
  %v4191 = vsel %vm74, %v4190, 0
  %4193 = vmatprep.subr.mxu0 0.0
  %4194 = vmatpush1.msra.mxu0 %v2435
  %4195 = vmatprep.subr.mxu0 0.0
  %4196 = vmatpush1.msra.mxu0 %v2436
  %4197 = vmatprep.subr.mxu0 0.0
  %4198 = vmatpush1.msra.mxu0 %v2437
  %4199 = vmatprep.subr.mxu0 0.0
  %4200 = vmatpush1.msra.mxu0 %v2438
  %4201 = vmatprep.subr.mxu0 0.0
  %4202 = vmatpush1.msra.mxu0 0.0
  %4203 = vmatprep.subr.mxu0 0.0
  %4204 = vmatpush1.msra.mxu0 0.0
  %4205 = vmatprep.subr.mxu0 0.0
  %4206 = vmatpush1.msra.mxu0 0.0
  %4207 = vmatprep.subr.mxu0 0.0
  %4208 = vmatpush1.msra.mxu0 0.0
  %4209 = vmatprep.subr.mxu0 0.0
  %4210 = vmatpush1.msra.mxu0 0.0
  %4211 = vmatprep.subr.mxu0 0.0
  %4212 = vmatpush1.msra.mxu0 0.0
  %4213 = vmatprep.subr.mxu0 0.0
  %4214 = vmatpush1.msra.mxu0 0.0
  %4215 = vmatprep.subr.mxu0 0.0
  %4216 = vmatpush1.msra.mxu0 0.0
  %4217 = vmatprep.subr.mxu0 0.0
  %4218 = vmatpush1.msra.mxu0 0.0
  %4219 = vmatprep.subr.mxu0 0.0
  %4220 = vmatpush1.msra.mxu0 0.0
  %4221 = vmatprep.subr.mxu0 0.0
  %4222 = vmatpush1.msra.mxu0 0.0
  %4223 = vmatprep.subr.mxu0 0.0
  %4224 = vmatpush1.msra.mxu0 0.0
  %4225 = vmatprep.subr.mxu0 0.0
  %4226 = vmatpush1.msra.mxu0 0.0
  %4227 = vmatprep.subr.mxu0 0.0
  %4228 = vmatpush1.msra.mxu0 0.0
  %4229 = vmatprep.subr.mxu0 0.0
  %4230 = vmatpush1.msra.mxu0 0.0
  %4231 = vmatprep.subr.mxu0 0.0
  %4232 = vmatpush1.msra.mxu0 0.0
  %4233 = vmatprep.subr.mxu0 0.0
  %4234 = vmatpush1.msra.mxu0 0.0
  %4235 = vmatprep.subr.mxu0 0.0
  %4236 = vmatpush1.msra.mxu0 0.0
  %4237 = vmatprep.subr.mxu0 0.0
  %4238 = vmatpush1.msra.mxu0 0.0
  %4239 = vmatprep.subr.mxu0 0.0
  %4240 = vmatpush1.msra.mxu0 0.0
  %4241 = vmatprep.subr.mxu0 0.0
  %4242 = vmatpush1.msra.mxu0 0.0
  %4243 = vmatprep.subr.mxu0 0.0
  %4244 = vmatpush1.msra.mxu0 0.0
  %4245 = vmatprep.subr.mxu0 0.0
  %4246 = vmatpush1.msra.mxu0 0.0
  %4247 = vmatprep.subr.mxu0 0.0
  %4248 = vmatpush1.msra.mxu0 0.0
  %4249 = vmatprep.subr.mxu0 0.0
  %4250 = vmatpush1.msra.mxu0 0.0
  %4251 = vmatprep.subr.mxu0 0.0
  %4252 = vmatpush1.msra.mxu0 0.0
  %4253 = vmatprep.subr.mxu0 0.0
  %4254 = vmatpush1.msra.mxu0 0.0
  %4255 = vmatprep.subr.mxu0 0.0
  %4256 = vmatpush1.msra.mxu0 0.0
  %4257 = vmatprep.mubr.f32.mxu0 0.0
  %4258 = vmatmul.mubr.f32.gmra.mrb[0].mxu0 %v4191
  %v4259 = vpop.f32.mrb[0].mxu0
  %v4260 = vadd.f32 0.0, %v4259
  %v4261 = vpop.f32.mrb[0].mxu0
  %4262 = vdwg.mxu0
  %v4264 = vrot.slane %v4260, 2
  %v4265 = vrot.slane %v4260, 3
  %v4268 = vadd.f32 %v2528, %v4264
  %v4269 = vadd.f32 %v2534, %v4265
  %v4270 = vxor.u32 %v4268, 2147483648
  %v4271 = vxor.u32 %v4269, 2147483648
  %v4272 = vmul.f32 %v4270, 1.442695
  %v4273 = vpow.pop %v4272
  %v4274 = vmul.f32 %v4271, 1.442695
  %v4275 = vpow.pop %v4274
  %v4276 = vadd.f32 %v4273, 1.0
  %v4277 = vadd.f32 %v4275, 1.0
  %v4278 = vrcp.pop %v4276
  %v4279 = vmul.f32 1.0, %v4278
  %v4280 = vrcp.pop %v4277
  %v4281 = vmul.f32 1.0, %v4280
  %v4282 = vtanh.pop %v4268
  %v4283 = vtanh.pop %v4269
  %v4286 = vrot.slane %v4030, 7
  %v4287 = vrot.slane %v4031, 7
  %v4290 = vmul.f32 %v4279, %v4286
  %v4291 = vmul.f32 %v4281, %v4287
  %4294 = vrot.lane.b32.xlu0 %v4282, 64
  %v4295 = vpop.permute.xlu0 %4294
  %4296 = vrot.lane.b32.xlu0 %v4283, 64
  %v4297 = vpop.permute.xlu0 %4296
  %v4300 = vmul.f32 %v4279, %v4295
  %v4301 = vmul.f32 %v4281, %v4297
  %4304 = vrot.lane.b32.xlu0 %v4300, 32
  %v4305 = vpop.permute.xlu0 %4304
  %4306 = vrot.lane.b32.xlu0 %v4301, 32
  %v4307 = vpop.permute.xlu0 %4306
  %v4310 = vadd.f32 %v4290, %v4305
  %v4311 = vadd.f32 %v4291, %v4307
  %v4312 = vtanh.pop %v4310
  %v4313 = vtanh.pop %v4311
  %4316 = vrot.lane.b32.xlu0 %v4312, 64
  %v4317 = vpop.permute.xlu0 %4316
  %4318 = vrot.lane.b32.xlu0 %v4313, 64
  %v4319 = vpop.permute.xlu0 %4318
  %v4322 = vmul.f32 %v4279, %v4317
  %v4323 = vmul.f32 %v4281, %v4319
  %v4326 = vrot.slane %v4182, 2
  %v4327 = vrot.slane %v4183, 1
  %v4328 = vsel %vm413, %v4327, %v4326
  %4329 = vrot.lane.b32.xlu0 %v4328, 32
  %v4330 = vpop.permute.xlu0 %4329
  %v4331 = vsel %vm74, %v4330, 0
  %4333 = vmatprep.subr.mxu0 0.0
  %4334 = vmatpush1.msra.mxu0 %v2439
  %4335 = vmatprep.subr.mxu0 0.0
  %4336 = vmatpush1.msra.mxu0 %v2440
  %4337 = vmatprep.subr.mxu0 0.0
  %4338 = vmatpush1.msra.mxu0 %v2441
  %4339 = vmatprep.subr.mxu0 0.0
  %4340 = vmatpush1.msra.mxu0 %v2442
  %4341 = vmatprep.subr.mxu0 0.0
  %4342 = vmatpush1.msra.mxu0 0.0
  %4343 = vmatprep.subr.mxu0 0.0
  %4344 = vmatpush1.msra.mxu0 0.0
  %4345 = vmatprep.subr.mxu0 0.0
  %4346 = vmatpush1.msra.mxu0 0.0
  %4347 = vmatprep.subr.mxu0 0.0
  %4348 = vmatpush1.msra.mxu0 0.0
  %4349 = vmatprep.subr.mxu0 0.0
  %4350 = vmatpush1.msra.mxu0 0.0
  %4351 = vmatprep.subr.mxu0 0.0
  %4352 = vmatpush1.msra.mxu0 0.0
  %4353 = vmatprep.subr.mxu0 0.0
  %4354 = vmatpush1.msra.mxu0 0.0
  %4355 = vmatprep.subr.mxu0 0.0
  %4356 = vmatpush1.msra.mxu0 0.0
  %4357 = vmatprep.subr.mxu0 0.0
  %4358 = vmatpush1.msra.mxu0 0.0
  %4359 = vmatprep.subr.mxu0 0.0
  %4360 = vmatpush1.msra.mxu0 0.0
  %4361 = vmatprep.subr.mxu0 0.0
  %4362 = vmatpush1.msra.mxu0 0.0
  %4363 = vmatprep.subr.mxu0 0.0
  %4364 = vmatpush1.msra.mxu0 0.0
  %4365 = vmatprep.subr.mxu0 0.0
  %4366 = vmatpush1.msra.mxu0 0.0
  %4367 = vmatprep.subr.mxu0 0.0
  %4368 = vmatpush1.msra.mxu0 0.0
  %4369 = vmatprep.subr.mxu0 0.0
  %4370 = vmatpush1.msra.mxu0 0.0
  %4371 = vmatprep.subr.mxu0 0.0
  %4372 = vmatpush1.msra.mxu0 0.0
  %4373 = vmatprep.subr.mxu0 0.0
  %4374 = vmatpush1.msra.mxu0 0.0
  %4375 = vmatprep.subr.mxu0 0.0
  %4376 = vmatpush1.msra.mxu0 0.0
  %4377 = vmatprep.subr.mxu0 0.0
  %4378 = vmatpush1.msra.mxu0 0.0
  %4379 = vmatprep.subr.mxu0 0.0
  %4380 = vmatpush1.msra.mxu0 0.0
  %4381 = vmatprep.subr.mxu0 0.0
  %4382 = vmatpush1.msra.mxu0 0.0
  %4383 = vmatprep.subr.mxu0 0.0
  %4384 = vmatpush1.msra.mxu0 0.0
  %4385 = vmatprep.subr.mxu0 0.0
  %4386 = vmatpush1.msra.mxu0 0.0
  %4387 = vmatprep.subr.mxu0 0.0
  %4388 = vmatpush1.msra.mxu0 0.0
  %4389 = vmatprep.subr.mxu0 0.0
  %4390 = vmatpush1.msra.mxu0 0.0
  %4391 = vmatprep.subr.mxu0 0.0
  %4392 = vmatpush1.msra.mxu0 0.0
  %4393 = vmatprep.subr.mxu0 0.0
  %4394 = vmatpush1.msra.mxu0 0.0
  %4395 = vmatprep.subr.mxu0 0.0
  %4396 = vmatpush1.msra.mxu0 0.0
  %4397 = vmatprep.mubr.f32.mxu0 0.0
  %4398 = vmatmul.mubr.f32.gmra.mrb[0].mxu0 %v4331
  %v4399 = vpop.f32.mrb[0].mxu0
  %v4400 = vadd.f32 0.0, %v4399
  %v4401 = vpop.f32.mrb[0].mxu0
  %4402 = vdwg.mxu0
  %v4404 = vrot.slane %v4400, 7
  %v4407 = vadd.f32 %v2530, %v4404
  %v4408 = vadd.f32 %v2536, %v4400
  %v4409 = vxor.u32 %v4407, 2147483648
  %v4410 = vxor.u32 %v4408, 2147483648
  %v4411 = vmul.f32 %v4409, 1.442695
  %v4412 = vpow.pop %v4411
  %v4413 = vmul.f32 %v4410, 1.442695
  %v4414 = vpow.pop %v4413
  %v4415 = vadd.f32 %v4412, 1.0
  %v4416 = vadd.f32 %v4414, 1.0
  %v4417 = vrcp.pop %v4415
  %v4418 = vmul.f32 1.0, %v4417
  %v4419 = vrcp.pop %v4416
  %v4420 = vmul.f32 1.0, %v4419
  %v4421 = vtanh.pop %v4407
  %v4422 = vtanh.pop %v4408
  %v4425 = vrot.slane %v4170, 1
  %v4426 = vrot.slane %v4171, 1
  %v4429 = vmul.f32 %v4418, %v4425
  %v4430 = vmul.f32 %v4420, %v4426
  %4433 = vrot.lane.b32.xlu0 %v4421, 64
  %v4434 = vpop.permute.xlu0 %4433
  %4435 = vrot.lane.b32.xlu0 %v4422, 64
  %v4436 = vpop.permute.xlu0 %4435
  %v4439 = vmul.f32 %v4418, %v4434
  %v4440 = vmul.f32 %v4420, %v4436
  %4443 = vrot.lane.b32.xlu0 %v4439, 32
  %v4444 = vpop.permute.xlu0 %4443
  %4445 = vrot.lane.b32.xlu0 %v4440, 32
  %v4446 = vpop.permute.xlu0 %4445
  %v4449 = vadd.f32 %v4429, %v4444
  %v4450 = vadd.f32 %v4430, %v4446
  %v4451 = vtanh.pop %v4449
  %v4452 = vtanh.pop %v4450
  %4455 = vrot.lane.b32.xlu0 %v4451, 64
  %v4456 = vpop.permute.xlu0 %4455
  %4457 = vrot.lane.b32.xlu0 %v4452, 64
  %v4458 = vpop.permute.xlu0 %4457
  %v4461 = vmul.f32 %v4418, %v4456
  %v4462 = vmul.f32 %v4420, %v4458
  %v4465 = vrot.slane %v4322, 6
  %v4466 = vrot.slane %v4323, 5
  %v4467 = vsel %vm413, %v4466, %v4465
  %4468 = vrot.lane.b32.xlu0 %v4467, 32
  %v4469 = vpop.permute.xlu0 %4468
  %v4470 = vsel %vm74, %v4469, 0
  %4472 = vmatprep.subr.mxu0 0.0
  %4473 = vmatpush1.msra.mxu0 %v2435
  %4474 = vmatprep.subr.mxu0 0.0
  %4475 = vmatpush1.msra.mxu0 %v2436
  %4476 = vmatprep.subr.mxu0 0.0
  %4477 = vmatpush1.msra.mxu0 %v2437
  %4478 = vmatprep.subr.mxu0 0.0
  %4479 = vmatpush1.msra.mxu0 %v2438
  %4480 = vmatprep.subr.mxu0 0.0
  %4481 = vmatpush1.msra.mxu0 0.0
  %4482 = vmatprep.subr.mxu0 0.0
  %4483 = vmatpush1.msra.mxu0 0.0
  %4484 = vmatprep.subr.mxu0 0.0
  %4485 = vmatpush1.msra.mxu0 0.0
  %4486 = vmatprep.subr.mxu0 0.0
  %4487 = vmatpush1.msra.mxu0 0.0
  %4488 = vmatprep.subr.mxu0 0.0
  %4489 = vmatpush1.msra.mxu0 0.0
  %4490 = vmatprep.subr.mxu0 0.0
  %4491 = vmatpush1.msra.mxu0 0.0
  %4492 = vmatprep.subr.mxu0 0.0
  %4493 = vmatpush1.msra.mxu0 0.0
  %4494 = vmatprep.subr.mxu0 0.0
  %4495 = vmatpush1.msra.mxu0 0.0
  %4496 = vmatprep.subr.mxu0 0.0
  %4497 = vmatpush1.msra.mxu0 0.0
  %4498 = vmatprep.subr.mxu0 0.0
  %4499 = vmatpush1.msra.mxu0 0.0
  %4500 = vmatprep.subr.mxu0 0.0
  %4501 = vmatpush1.msra.mxu0 0.0
  %4502 = vmatprep.subr.mxu0 0.0
  %4503 = vmatpush1.msra.mxu0 0.0
  %4504 = vmatprep.subr.mxu0 0.0
  %4505 = vmatpush1.msra.mxu0 0.0
  %4506 = vmatprep.subr.mxu0 0.0
  %4507 = vmatpush1.msra.mxu0 0.0
  %4508 = vmatprep.subr.mxu0 0.0
  %4509 = vmatpush1.msra.mxu0 0.0
  %4510 = vmatprep.subr.mxu0 0.0
  %4511 = vmatpush1.msra.mxu0 0.0
  %4512 = vmatprep.subr.mxu0 0.0
  %4513 = vmatpush1.msra.mxu0 0.0
  %4514 = vmatprep.subr.mxu0 0.0
  %4515 = vmatpush1.msra.mxu0 0.0
  %4516 = vmatprep.subr.mxu0 0.0
  %4517 = vmatpush1.msra.mxu0 0.0
  %4518 = vmatprep.subr.mxu0 0.0
  %4519 = vmatpush1.msra.mxu0 0.0
  %4520 = vmatprep.subr.mxu0 0.0
  %4521 = vmatpush1.msra.mxu0 0.0
  %4522 = vmatprep.subr.mxu0 0.0
  %4523 = vmatpush1.msra.mxu0 0.0
  %4524 = vmatprep.subr.mxu0 0.0
  %4525 = vmatpush1.msra.mxu0 0.0
  %4526 = vmatprep.subr.mxu0 0.0
  %4527 = vmatpush1.msra.mxu0 0.0
  %4528 = vmatprep.subr.mxu0 0.0
  %4529 = vmatpush1.msra.mxu0 0.0
  %4530 = vmatprep.subr.mxu0 0.0
  %4531 = vmatpush1.msra.mxu0 0.0
  %4532 = vmatprep.subr.mxu0 0.0
  %4533 = vmatpush1.msra.mxu0 0.0
  %4534 = vmatprep.subr.mxu0 0.0
  %4535 = vmatpush1.msra.mxu0 0.0
  %4536 = vmatprep.mubr.f32.mxu0 0.0
  %4537 = vmatmul.mubr.f32.gmra.mrb[0].mxu0 %v4470
  %v4538 = vpop.f32.mrb[0].mxu0
  %v4539 = vadd.f32 0.0, %v4538
  %v4540 = vpop.f32.mrb[0].mxu0
  %4541 = vdwg.mxu0
  %v4543 = vrot.slane %v4539, 1
  %v4544 = vrot.slane %v4539, 2
  %v4547 = vadd.f32 %v2528, %v4543
  %v4548 = vadd.f32 %v2534, %v4544
  %v4549 = vxor.u32 %v4547, 2147483648
  %v4550 = vxor.u32 %v4548, 2147483648
  %v4551 = vmul.f32 %v4549, 1.442695
  %v4552 = vpow.pop %v4551
  %v4553 = vmul.f32 %v4550, 1.442695
  %v4554 = vpow.pop %v4553
  %v4555 = vadd.f32 %v4552, 1.0
  %v4556 = vadd.f32 %v4554, 1.0
  %v4557 = vrcp.pop %v4555
  %v4558 = vmul.f32 1.0, %v4557
  %v4559 = vrcp.pop %v4556
  %v4560 = vmul.f32 1.0, %v4559
  %v4561 = vtanh.pop %v4547
  %v4562 = vtanh.pop %v4548
  %v4565 = vrot.slane %v4310, 7
  %v4566 = vrot.slane %v4311, 7
  %v4569 = vmul.f32 %v4558, %v4565
  %v4570 = vmul.f32 %v4560, %v4566
  %4573 = vrot.lane.b32.xlu0 %v4561, 64
  %v4574 = vpop.permute.xlu0 %4573
  %4575 = vrot.lane.b32.xlu0 %v4562, 64
  %v4576 = vpop.permute.xlu0 %4575
  %v4579 = vmul.f32 %v4558, %v4574
  %v4580 = vmul.f32 %v4560, %v4576
  %4583 = vrot.lane.b32.xlu0 %v4579, 32
  %v4584 = vpop.permute.xlu0 %4583
  %4585 = vrot.lane.b32.xlu0 %v4580, 32
  %v4586 = vpop.permute.xlu0 %4585
  %v4589 = vadd.f32 %v4569, %v4584
  %v4590 = vadd.f32 %v4570, %v4586
  %v4591 = vtanh.pop %v4589
  %v4592 = vtanh.pop %v4590
  %4595 = vrot.lane.b32.xlu0 %v4591, 64
  %v4596 = vpop.permute.xlu0 %4595
  %4597 = vrot.lane.b32.xlu0 %v4592, 64
  %v4598 = vpop.permute.xlu0 %4597
  %v4601 = vmul.f32 %v4558, %v4596
  %v4602 = vmul.f32 %v4560, %v4598
  %v4605 = vrot.slane %v4461, 1
  %v4606 = vsel %vm413, %v4462, %v4605
  %4607 = vrot.lane.b32.xlu0 %v4606, 32
  %v4608 = vpop.permute.xlu0 %4607
  %v4609 = vsel %vm74, %v4608, 0
  %4611 = vmatprep.subr.mxu0 0.0
  %4612 = vmatpush1.msra.mxu0 %v2439
  %4613 = vmatprep.subr.mxu0 0.0
  %4614 = vmatpush1.msra.mxu0 %v2440
  %4615 = vmatprep.subr.mxu0 0.0
  %4616 = vmatpush1.msra.mxu0 %v2441
  %4617 = vmatprep.subr.mxu0 0.0
  %4618 = vmatpush1.msra.mxu0 %v2442
  %4619 = vmatprep.subr.mxu0 0.0
  %4620 = vmatpush1.msra.mxu0 0.0
  %4621 = vmatprep.subr.mxu0 0.0
  %4622 = vmatpush1.msra.mxu0 0.0
  %4623 = vmatprep.subr.mxu0 0.0
  %4624 = vmatpush1.msra.mxu0 0.0
  %4625 = vmatprep.subr.mxu0 0.0
  %4626 = vmatpush1.msra.mxu0 0.0
  %4627 = vmatprep.subr.mxu0 0.0
  %4628 = vmatpush1.msra.mxu0 0.0
  %4629 = vmatprep.subr.mxu0 0.0
  %4630 = vmatpush1.msra.mxu0 0.0
  %4631 = vmatprep.subr.mxu0 0.0
  %4632 = vmatpush1.msra.mxu0 0.0
  %4633 = vmatprep.subr.mxu0 0.0
  %4634 = vmatpush1.msra.mxu0 0.0
  %4635 = vmatprep.subr.mxu0 0.0
  %4636 = vmatpush1.msra.mxu0 0.0
  %4637 = vmatprep.subr.mxu0 0.0
  %4638 = vmatpush1.msra.mxu0 0.0
  %4639 = vmatprep.subr.mxu0 0.0
  %4640 = vmatpush1.msra.mxu0 0.0
  %4641 = vmatprep.subr.mxu0 0.0
  %4642 = vmatpush1.msra.mxu0 0.0
  %4643 = vmatprep.subr.mxu0 0.0
  %4644 = vmatpush1.msra.mxu0 0.0
  %4645 = vmatprep.subr.mxu0 0.0
  %4646 = vmatpush1.msra.mxu0 0.0
  %4647 = vmatprep.subr.mxu0 0.0
  %4648 = vmatpush1.msra.mxu0 0.0
  %4649 = vmatprep.subr.mxu0 0.0
  %4650 = vmatpush1.msra.mxu0 0.0
  %4651 = vmatprep.subr.mxu0 0.0
  %4652 = vmatpush1.msra.mxu0 0.0
  %4653 = vmatprep.subr.mxu0 0.0
  %4654 = vmatpush1.msra.mxu0 0.0
  %4655 = vmatprep.subr.mxu0 0.0
  %4656 = vmatpush1.msra.mxu0 0.0
  %4657 = vmatprep.subr.mxu0 0.0
  %4658 = vmatpush1.msra.mxu0 0.0
  %4659 = vmatprep.subr.mxu0 0.0
  %4660 = vmatpush1.msra.mxu0 0.0
  %4661 = vmatprep.subr.mxu0 0.0
  %4662 = vmatpush1.msra.mxu0 0.0
  %4663 = vmatprep.subr.mxu0 0.0
  %4664 = vmatpush1.msra.mxu0 0.0
  %4665 = vmatprep.subr.mxu0 0.0
  %4666 = vmatpush1.msra.mxu0 0.0
  %4667 = vmatprep.subr.mxu0 0.0
  %4668 = vmatpush1.msra.mxu0 0.0
  %4669 = vmatprep.subr.mxu0 0.0
  %4670 = vmatpush1.msra.mxu0 0.0
  %4671 = vmatprep.subr.mxu0 0.0
  %4672 = vmatpush1.msra.mxu0 0.0
  %4673 = vmatprep.subr.mxu0 0.0
  %4674 = vmatpush1.msra.mxu0 0.0
  %4675 = vmatprep.mubr.f32.mxu0 0.0
  %4676 = vmatmul.mubr.f32.gmra.mrb[0].mxu0 %v4609
  %v4677 = vpop.f32.mrb[0].mxu0
  %v4678 = vadd.f32 0.0, %v4677
  %v4679 = vpop.f32.mrb[0].mxu0
  %4680 = vdwg.mxu0
  %v4682 = vrot.slane %v4678, 1
  %v4685 = vadd.f32 %v2530, %v4678
  %v4686 = vadd.f32 %v2536, %v4682
  %v4687 = vxor.u32 %v4685, 2147483648
  %v4688 = vxor.u32 %v4686, 2147483648
  %v4689 = vmul.f32 %v4687, 1.442695
  %v4690 = vpow.pop %v4689
  %v4691 = vmul.f32 %v4688, 1.442695
  %v4692 = vpow.pop %v4691
  %v4693 = vadd.f32 %v4690, 1.0
  %v4694 = vadd.f32 %v4692, 1.0
  %v4695 = vrcp.pop %v4693
  %v4696 = vmul.f32 1.0, %v4695
  %v4697 = vrcp.pop %v4694
  %v4698 = vmul.f32 1.0, %v4697
  %v4699 = vtanh.pop %v4685
  %v4700 = vtanh.pop %v4686
  %v4703 = vrot.slane %v4449, 1
  %v4704 = vrot.slane %v4450, 1
  %v4707 = vmul.f32 %v4696, %v4703
  %v4708 = vmul.f32 %v4698, %v4704
  %4711 = vrot.lane.b32.xlu0 %v4699, 64
  %v4712 = vpop.permute.xlu0 %4711
  %4713 = vrot.lane.b32.xlu0 %v4700, 64
  %v4714 = vpop.permute.xlu0 %4713
  %v4717 = vmul.f32 %v4696, %v4712
  %v4718 = vmul.f32 %v4698, %v4714
  %4721 = vrot.lane.b32.xlu0 %v4717, 32
  %v4722 = vpop.permute.xlu0 %4721
  %4723 = vrot.lane.b32.xlu0 %v4718, 32
  %v4724 = vpop.permute.xlu0 %4723
  %v4727 = vadd.f32 %v4707, %v4722
  %v4728 = vadd.f32 %v4708, %v4724
  %v4729 = vtanh.pop %v4727
  %v4730 = vtanh.pop %v4728
  %4733 = vrot.lane.b32.xlu0 %v4729, 64
  %v4734 = vpop.permute.xlu0 %4733
  %4735 = vrot.lane.b32.xlu0 %v4730, 64
  %v4736 = vpop.permute.xlu0 %4735
  %v4739 = vmul.f32 %v4696, %v4734
  %v4740 = vmul.f32 %v4698, %v4736
  %v4741 = vsel %vm2365, %v2660, %v2923
  %v4742 = vsel %vm2365, %v2661, %v2924
  %v4743 = vsel %vm2368, %v4741, %v3202
  %v4744 = vsel %vm2368, %v4742, %v3203
  %v4745 = vsel %vm2371, %v4743, %v3482
  %v4746 = vsel %vm2371, %v4744, %v3483
  %v4747 = vsel %vm2374, %v4745, %v3762
  %v4748 = vsel %vm2374, %v4746, %v3763
  %v4749 = vsel %vm2377, %v4747, %v4042
  %v4750 = vsel %vm2377, %v4748, %v4043
  %v4751 = vsel %vm2380, %v4749, %v4322
  %v4752 = vsel %vm2380, %v4750, %v4323
  %v4753 = vsel %vm2383, %v4751, %v4601
  %v4754 = vsel %vm2383, %v4752, %v4602
  %v4755 = vsel %vm2365, %v4739, %v4461
  %v4756 = vsel %vm2365, %v4740, %v4462
  %v4757 = vsel %vm2368, %v4755, %v4182
  %v4758 = vsel %vm2368, %v4756, %v4183
  %v4759 = vsel %vm2371, %v4757, %v3902
  %v4760 = vsel %vm2371, %v4758, %v3903
  %v4761 = vsel %vm2374, %v4759, %v3622
  %v4762 = vsel %vm2374, %v4760, %v3623
  %v4763 = vsel %vm2377, %v4761, %v3342
  %v4764 = vsel %vm2377, %v4762, %v3343
  %v4765 = vsel %vm2380, %v4763, %v3063
  %v4766 = vsel %vm2380, %v4764, %v3064
  %v4767 = vsel %vm2383, %v4765, %v2785
  %v4768 = vsel %vm2383, %v4766, %v2786
  %4771 = vrot.lane.b32.xlu0 %v4753, 32
  %v4772 = vpop.permute.xlu0 %4771
  %4773 = vrot.lane.b32.xlu0 %v4754, 32
  %v4774 = vpop.permute.xlu0 %4773
  %4779 = vrot.lane.b32.xlu0 %v4767, 64
  %v4780 = vpop.permute.xlu0 %4779
  %4781 = vrot.lane.b32.xlu0 %v4768, 64
  %v4782 = vpop.permute.xlu0 %4781
  %v4785 = vsel %vm74, %v4772, %v4780
  %v4786 = vsel %vm74, %v4774, %v4782
  %v4787 = vld [vmem:[%s9] sm:$0xff]
  %v4788 = vld [vmem:[%s9 + $0x8] sm:$0xff]
  %v4789 = vld [vmem:[%s9 + $0x10] sm:$0xff]
  %v4790 = vld [vmem:[%s9 + $0x18] sm:$0xff]
  %v4791 = vld [vmem:[%s9 + $0x20] sm:$0xff]
  %v4792 = vld [vmem:[%s9 + $0x28] sm:$0xff]
  %v4793 = vld [vmem:[%s9 + $0x30] sm:$0xff]
  %v4794 = vld [vmem:[%s9 + $0x38] sm:$0xff]
  %v4795 = vld [vmem:[%s10] sm:$0xff]
  %v4796 = vld [vmem:[%s10 + $0x8] sm:$0xff]
  %v4797 = vld [vmem:[%s10 + $0x10] sm:$0xff]
  %v4798 = vld [vmem:[%s10 + $0x18] sm:$0xff]
  %v4799 = vld [vmem:[%s10 + $0x20] sm:$0xff]
  %v4800 = vld [vmem:[%s10 + $0x28] sm:$0xff]
  %v4801 = vld [vmem:[%s10 + $0x30] sm:$0xff]
  %v4802 = vld [vmem:[%s10 + $0x38] sm:$0xff]
  %v4803 = vld [vmem:[%s11] sm:$0xff]
  %v4804 = vld [vmem:[%s11 + $0x8] sm:$0xff]
  %v4805 = vld [vmem:[%s11 + $0x10] sm:$0xff]
  %v4806 = vld [vmem:[%s11 + $0x18] sm:$0xff]
  %v4807 = vld [vmem:[%s11 + $0x20] sm:$0xff]
  %v4808 = vld [vmem:[%s11 + $0x28] sm:$0xff]
  %v4809 = vld [vmem:[%s11 + $0x30] sm:$0xff]
  %v4810 = vld [vmem:[%s11 + $0x38] sm:$0xff]
  %v4811 = vld [vmem:[%s12] sm:$0x1]
  %v4813 = vsel %vm2454, %v4785, 0
  %v4816 = vsel %vm2454, %v4786, 0
  %4818 = vmatprep.subr.mxu0 0.0
  %4819 = vmatpush1.msra.mxu0 %v4787
  %4820 = vmatprep.subr.mxu0 0.0
  %4821 = vmatpush1.msra.mxu0 %v4788
  %4822 = vmatprep.subr.mxu0 0.0
  %4823 = vmatpush1.msra.mxu0 %v4789
  %4824 = vmatprep.subr.mxu0 0.0
  %4825 = vmatpush1.msra.mxu0 %v4790
  %4826 = vmatprep.subr.mxu0 0.0
  %4827 = vmatpush1.msra.mxu0 %v4791
  %4828 = vmatprep.subr.mxu0 0.0
  %4829 = vmatpush1.msra.mxu0 %v4792
  %4830 = vmatprep.subr.mxu0 0.0
  %4831 = vmatpush1.msra.mxu0 %v4793
  %4832 = vmatprep.subr.mxu0 0.0
  %4833 = vmatpush1.msra.mxu0 %v4794
  %4834 = vmatprep.subr.mxu0 0.0
  %4835 = vmatpush1.msra.mxu0 0.0
  %4836 = vmatprep.subr.mxu0 0.0
  %4837 = vmatpush1.msra.mxu0 0.0
  %4838 = vmatprep.subr.mxu0 0.0
  %4839 = vmatpush1.msra.mxu0 0.0
  %4840 = vmatprep.subr.mxu0 0.0
  %4841 = vmatpush1.msra.mxu0 0.0
  %4842 = vmatprep.subr.mxu0 0.0
  %4843 = vmatpush1.msra.mxu0 0.0
  %4844 = vmatprep.subr.mxu0 0.0
  %4845 = vmatpush1.msra.mxu0 0.0
  %4846 = vmatprep.subr.mxu0 0.0
  %4847 = vmatpush1.msra.mxu0 0.0
  %4848 = vmatprep.subr.mxu0 0.0
  %4849 = vmatpush1.msra.mxu0 0.0
  %4850 = vmatprep.subr.mxu0 0.0
  %4851 = vmatpush1.msra.mxu0 0.0
  %4852 = vmatprep.subr.mxu0 0.0
  %4853 = vmatpush1.msra.mxu0 0.0
  %4854 = vmatprep.subr.mxu0 0.0
  %4855 = vmatpush1.msra.mxu0 0.0
  %4856 = vmatprep.subr.mxu0 0.0
  %4857 = vmatpush1.msra.mxu0 0.0
  %4858 = vmatprep.subr.mxu0 0.0
  %4859 = vmatpush1.msra.mxu0 0.0
  %4860 = vmatprep.subr.mxu0 0.0
  %4861 = vmatpush1.msra.mxu0 0.0
  %4862 = vmatprep.subr.mxu0 0.0
  %4863 = vmatpush1.msra.mxu0 0.0
  %4864 = vmatprep.subr.mxu0 0.0
  %4865 = vmatpush1.msra.mxu0 0.0
  %4866 = vmatprep.subr.mxu0 0.0
  %4867 = vmatpush1.msra.mxu0 0.0
  %4868 = vmatprep.subr.mxu0 0.0
  %4869 = vmatpush1.msra.mxu0 0.0
  %4870 = vmatprep.subr.mxu0 0.0
  %4871 = vmatpush1.msra.mxu0 0.0
  %4872 = vmatprep.subr.mxu0 0.0
  %4873 = vmatpush1.msra.mxu0 0.0
  %4874 = vmatprep.subr.mxu0 0.0
  %4875 = vmatpush1.msra.mxu0 0.0
  %4876 = vmatprep.subr.mxu0 0.0
  %4877 = vmatpush1.msra.mxu0 0.0
  %4878 = vmatprep.subr.mxu0 0.0
  %4879 = vmatpush1.msra.mxu0 0.0
  %4880 = vmatprep.subr.mxu0 0.0
  %4881 = vmatpush1.msra.mxu0 0.0
  %4882 = vmatprep.mubr.f32.mxu0 0.0
  %4883 = vmatmul.mubr.f32.gmra.mrb[0].mxu0 %v4813
  %v4884 = vpop.f32.mrb[0].mxu0
  %v4885 = vadd.f32 0.0, %v4884
  %v4886 = vpop.f32.mrb[0].mxu0
  %4887 = vmatprep.mubr.f32.mxu0 0.0
  %4888 = vmatmul.mubr.f32.gmra.mrb[0].mxu0 %v4816
  %v4889 = vpop.f32.mrb[0].mxu0
  %v4890 = vadd.f32 0.0, %v4889
  %v4891 = vpop.f32.mrb[0].mxu0
  %4892 = vdwg.mxu0
  %4893 = vmatprep.subr.mxu0 0.0
  %4894 = vmatpush1.msra.mxu0 %v4795
  %4895 = vmatprep.subr.mxu0 0.0
  %4896 = vmatpush1.msra.mxu0 %v4796
  %4897 = vmatprep.subr.mxu0 0.0
  %4898 = vmatpush1.msra.mxu0 %v4797
  %4899 = vmatprep.subr.mxu0 0.0
  %4900 = vmatpush1.msra.mxu0 %v4798
  %4901 = vmatprep.subr.mxu0 0.0
  %4902 = vmatpush1.msra.mxu0 %v4799
  %4903 = vmatprep.subr.mxu0 0.0
  %4904 = vmatpush1.msra.mxu0 %v4800
  %4905 = vmatprep.subr.mxu0 0.0
  %4906 = vmatpush1.msra.mxu0 %v4801
  %4907 = vmatprep.subr.mxu0 0.0
  %4908 = vmatpush1.msra.mxu0 %v4802
  %4909 = vmatprep.subr.mxu0 0.0
  %4910 = vmatpush1.msra.mxu0 0.0
  %4911 = vmatprep.subr.mxu0 0.0
  %4912 = vmatpush1.msra.mxu0 0.0
  %4913 = vmatprep.subr.mxu0 0.0
  %4914 = vmatpush1.msra.mxu0 0.0
  %4915 = vmatprep.subr.mxu0 0.0
  %4916 = vmatpush1.msra.mxu0 0.0
  %4917 = vmatprep.subr.mxu0 0.0
  %4918 = vmatpush1.msra.mxu0 0.0
  %4919 = vmatprep.subr.mxu0 0.0
  %4920 = vmatpush1.msra.mxu0 0.0
  %4921 = vmatprep.subr.mxu0 0.0
  %4922 = vmatpush1.msra.mxu0 0.0
  %4923 = vmatprep.subr.mxu0 0.0
  %4924 = vmatpush1.msra.mxu0 0.0
  %4925 = vmatprep.subr.mxu0 0.0
  %4926 = vmatpush1.msra.mxu0 0.0
  %4927 = vmatprep.subr.mxu0 0.0
  %4928 = vmatpush1.msra.mxu0 0.0
  %4929 = vmatprep.subr.mxu0 0.0
  %4930 = vmatpush1.msra.mxu0 0.0
  %4931 = vmatprep.subr.mxu0 0.0
  %4932 = vmatpush1.msra.mxu0 0.0
  %4933 = vmatprep.subr.mxu0 0.0
  %4934 = vmatpush1.msra.mxu0 0.0
  %4935 = vmatprep.subr.mxu0 0.0
  %4936 = vmatpush1.msra.mxu0 0.0
  %4937 = vmatprep.subr.mxu0 0.0
  %4938 = vmatpush1.msra.mxu0 0.0
  %4939 = vmatprep.subr.mxu0 0.0
  %4940 = vmatpush1.msra.mxu0 0.0
  %4941 = vmatprep.subr.mxu0 0.0
  %4942 = vmatpush1.msra.mxu0 0.0
  %4943 = vmatprep.subr.mxu0 0.0
  %4944 = vmatpush1.msra.mxu0 0.0
  %4945 = vmatprep.subr.mxu0 0.0
  %4946 = vmatpush1.msra.mxu0 0.0
  %4947 = vmatprep.subr.mxu0 0.0
  %4948 = vmatpush1.msra.mxu0 0.0
  %4949 = vmatprep.subr.mxu0 0.0
  %4950 = vmatpush1.msra.mxu0 0.0
  %4951 = vmatprep.subr.mxu0 0.0
  %4952 = vmatpush1.msra.mxu0 0.0
  %4953 = vmatprep.subr.mxu0 0.0
  %4954 = vmatpush1.msra.mxu0 0.0
  %4955 = vmatprep.subr.mxu0 0.0
  %4956 = vmatpush1.msra.mxu0 0.0
  %4957 = vmatprep.mubr.f32.mxu0 0.0
  %4958 = vmatmul.mubr.f32.gmra.mrb[0].mxu0 %v4813
  %v4959 = vpop.f32.mrb[0].mxu0
  %v4960 = vadd.f32 0.0, %v4959
  %v4961 = vpop.f32.mrb[0].mxu0
  %4962 = vmatprep.mubr.f32.mxu0 0.0
  %4963 = vmatmul.mubr.f32.gmra.mrb[0].mxu0 %v4816
  %v4964 = vpop.f32.mrb[0].mxu0
  %v4965 = vadd.f32 0.0, %v4964
  %v4966 = vpop.f32.mrb[0].mxu0
  %4967 = vdwg.mxu0
  %4968 = vmatprep.subr.mxu0 0.0
  %4969 = vmatpush1.msra.mxu0 %v4803
  %4970 = vmatprep.subr.mxu0 0.0
  %4971 = vmatpush1.msra.mxu0 %v4804
  %4972 = vmatprep.subr.mxu0 0.0
  %4973 = vmatpush1.msra.mxu0 %v4805
  %4974 = vmatprep.subr.mxu0 0.0
  %4975 = vmatpush1.msra.mxu0 %v4806
  %4976 = vmatprep.subr.mxu0 0.0
  %4977 = vmatpush1.msra.mxu0 %v4807
  %4978 = vmatprep.subr.mxu0 0.0
  %4979 = vmatpush1.msra.mxu0 %v4808
  %4980 = vmatprep.subr.mxu0 0.0
  %4981 = vmatpush1.msra.mxu0 %v4809
  %4982 = vmatprep.subr.mxu0 0.0
  %4983 = vmatpush1.msra.mxu0 %v4810
  %4984 = vmatprep.subr.mxu0 0.0
  %4985 = vmatpush1.msra.mxu0 0.0
  %4986 = vmatprep.subr.mxu0 0.0
  %4987 = vmatpush1.msra.mxu0 0.0
  %4988 = vmatprep.subr.mxu0 0.0
  %4989 = vmatpush1.msra.mxu0 0.0
  %4990 = vmatprep.subr.mxu0 0.0
  %4991 = vmatpush1.msra.mxu0 0.0
  %4992 = vmatprep.subr.mxu0 0.0
  %4993 = vmatpush1.msra.mxu0 0.0
  %4994 = vmatprep.subr.mxu0 0.0
  %4995 = vmatpush1.msra.mxu0 0.0
  %4996 = vmatprep.subr.mxu0 0.0
  %4997 = vmatpush1.msra.mxu0 0.0
  %4998 = vmatprep.subr.mxu0 0.0
  %4999 = vmatpush1.msra.mxu0 0.0
  %5000 = vmatprep.subr.mxu0 0.0
  %5001 = vmatpush1.msra.mxu0 0.0
  %5002 = vmatprep.subr.mxu0 0.0
  %5003 = vmatpush1.msra.mxu0 0.0
  %5004 = vmatprep.subr.mxu0 0.0
  %5005 = vmatpush1.msra.mxu0 0.0
  %5006 = vmatprep.subr.mxu0 0.0
  %5007 = vmatpush1.msra.mxu0 0.0
  %5008 = vmatprep.subr.mxu0 0.0
  %5009 = vmatpush1.msra.mxu0 0.0
  %5010 = vmatprep.subr.mxu0 0.0
  %5011 = vmatpush1.msra.mxu0 0.0
  %5012 = vmatprep.subr.mxu0 0.0
  %5013 = vmatpush1.msra.mxu0 0.0
  %5014 = vmatprep.subr.mxu0 0.0
  %5015 = vmatpush1.msra.mxu0 0.0
  %5016 = vmatprep.subr.mxu0 0.0
  %5017 = vmatpush1.msra.mxu0 0.0
  %5018 = vmatprep.subr.mxu0 0.0
  %5019 = vmatpush1.msra.mxu0 0.0
  %5020 = vmatprep.subr.mxu0 0.0
  %5021 = vmatpush1.msra.mxu0 0.0
  %5022 = vmatprep.subr.mxu0 0.0
  %5023 = vmatpush1.msra.mxu0 0.0
  %5024 = vmatprep.subr.mxu0 0.0
  %5025 = vmatpush1.msra.mxu0 0.0
  %5026 = vmatprep.subr.mxu0 0.0
  %5027 = vmatpush1.msra.mxu0 0.0
  %5028 = vmatprep.subr.mxu0 0.0
  %5029 = vmatpush1.msra.mxu0 0.0
  %5030 = vmatprep.subr.mxu0 0.0
  %5031 = vmatpush1.msra.mxu0 0.0
  %5032 = vmatprep.mubr.f32.mxu0 0.0
  %5033 = vmatmul.mubr.f32.gmra.mrb[0].mxu0 %v4813
  %v5034 = vpop.f32.mrb[0].mxu0
  %v5035 = vadd.f32 0.0, %v5034
  %v5036 = vpop.f32.mrb[0].mxu0
  %5037 = vmatprep.mubr.f32.mxu0 0.0
  %5038 = vmatmul.mubr.f32.gmra.mrb[0].mxu0 %v4816
  %v5039 = vpop.f32.mrb[0].mxu0
  %v5040 = vadd.f32 0.0, %v5039
  %v5041 = vpop.f32.mrb[0].mxu0
  %5042 = vdwg.mxu0
  %v5044 = vsel %vm2454, %v4885, 0
  %v5047 = vsel %vm2454, %v4960, 0
  %5049 = vmatprep.subr.mxu0 0.0
  %5050 = vmatpush1.xpose.msra.mxu0 %v5047
  %5051 = vmatprep.subr.mxu0 0.0
  %5052 = vmatpush1.xpose.msra.mxu0 0.0
  %5053 = vmatprep.subr.mxu0 0.0
  %5054 = vmatpush1.xpose.msra.mxu0 0.0
  %5055 = vmatprep.subr.mxu0 0.0
  %5056 = vmatpush1.xpose.msra.mxu0 0.0
  %5057 = vmatprep.subr.mxu0 0.0
  %5058 = vmatpush1.xpose.msra.mxu0 0.0
  %5059 = vmatprep.subr.mxu0 0.0
  %5060 = vmatpush1.xpose.msra.mxu0 0.0
  %5061 = vmatprep.subr.mxu0 0.0
  %5062 = vmatpush1.xpose.msra.mxu0 0.0
  %5063 = vmatprep.subr.mxu0 0.0
  %5064 = vmatpush1.xpose.msra.mxu0 0.0
  %5065 = vmatprep.subr.mxu0 0.0
  %5066 = vmatpush1.xpose.msra.mxu0 0.0
  %5067 = vmatprep.subr.mxu0 0.0
  %5068 = vmatpush1.xpose.msra.mxu0 0.0
  %5069 = vmatprep.subr.mxu0 0.0
  %5070 = vmatpush1.xpose.msra.mxu0 0.0
  %5071 = vmatprep.subr.mxu0 0.0
  %5072 = vmatpush1.xpose.msra.mxu0 0.0
  %5073 = vmatprep.subr.mxu0 0.0
  %5074 = vmatpush1.xpose.msra.mxu0 0.0
  %5075 = vmatprep.subr.mxu0 0.0
  %5076 = vmatpush1.xpose.msra.mxu0 0.0
  %5077 = vmatprep.subr.mxu0 0.0
  %5078 = vmatpush1.xpose.msra.mxu0 0.0
  %5079 = vmatprep.subr.mxu0 0.0
  %5080 = vmatpush1.xpose.msra.mxu0 0.0
  %5081 = vmatprep.subr.mxu0 0.0
  %5082 = vmatpush1.xpose.msra.mxu0 0.0
  %5083 = vmatprep.subr.mxu0 0.0
  %5084 = vmatpush1.xpose.msra.mxu0 0.0
  %5085 = vmatprep.subr.mxu0 0.0
  %5086 = vmatpush1.xpose.msra.mxu0 0.0
  %5087 = vmatprep.subr.mxu0 0.0
  %5088 = vmatpush1.xpose.msra.mxu0 0.0
  %5089 = vmatprep.subr.mxu0 0.0
  %5090 = vmatpush1.xpose.msra.mxu0 0.0
  %5091 = vmatprep.subr.mxu0 0.0
  %5092 = vmatpush1.xpose.msra.mxu0 0.0
  %5093 = vmatprep.subr.mxu0 0.0
  %5094 = vmatpush1.xpose.msra.mxu0 0.0
  %5095 = vmatprep.subr.mxu0 0.0
  %5096 = vmatpush1.xpose.msra.mxu0 0.0
  %5097 = vmatprep.subr.mxu0 0.0
  %5098 = vmatpush1.xpose.msra.mxu0 0.0
  %5099 = vmatprep.subr.mxu0 0.0
  %5100 = vmatpush1.xpose.msra.mxu0 0.0
  %5101 = vmatprep.subr.mxu0 0.0
  %5102 = vmatpush1.xpose.msra.mxu0 0.0
  %5103 = vmatprep.subr.mxu0 0.0
  %5104 = vmatpush1.xpose.msra.mxu0 0.0
  %5105 = vmatprep.subr.mxu0 0.0
  %5106 = vmatpush1.xpose.msra.mxu0 0.0
  %5107 = vmatprep.subr.mxu0 0.0
  %5108 = vmatpush1.xpose.msra.mxu0 0.0
  %5109 = vmatprep.subr.mxu0 0.0
  %5110 = vmatpush1.xpose.msra.mxu0 0.0
  %5111 = vmatprep.subr.mxu0 0.0
  %5112 = vmatpush1.xpose.msra.mxu0 0.0
  %5113 = vmatprep.mubr.f32.mxu0 0.0
  %5114 = vmatmul.mubr.f32.gmra.mrb[0].mxu0 %v5044
  %v5115 = vpop.f32.mrb[0].mxu0
  %v5116 = vadd.f32 0.0, %v5115
  %v5117 = vpop.f32.mrb[0].mxu0
  %5118 = vdwg.mxu0
  %v5120 = vsel %vm2454, %v4890, 0
  %v5123 = vsel %vm2454, %v4965, 0
  %5125 = vmatprep.subr.mxu0 0.0
  %5126 = vmatpush1.xpose.msra.mxu0 %v5123
  %5127 = vmatprep.subr.mxu0 0.0
  %5128 = vmatpush1.xpose.msra.mxu0 0.0
  %5129 = vmatprep.subr.mxu0 0.0
  %5130 = vmatpush1.xpose.msra.mxu0 0.0
  %5131 = vmatprep.subr.mxu0 0.0
  %5132 = vmatpush1.xpose.msra.mxu0 0.0
  %5133 = vmatprep.subr.mxu0 0.0
  %5134 = vmatpush1.xpose.msra.mxu0 0.0
  %5135 = vmatprep.subr.mxu0 0.0
  %5136 = vmatpush1.xpose.msra.mxu0 0.0
  %5137 = vmatprep.subr.mxu0 0.0
  %5138 = vmatpush1.xpose.msra.mxu0 0.0
  %5139 = vmatprep.subr.mxu0 0.0
  %5140 = vmatpush1.xpose.msra.mxu0 0.0
  %5141 = vmatprep.subr.mxu0 0.0
  %5142 = vmatpush1.xpose.msra.mxu0 0.0
  %5143 = vmatprep.subr.mxu0 0.0
  %5144 = vmatpush1.xpose.msra.mxu0 0.0
  %5145 = vmatprep.subr.mxu0 0.0
  %5146 = vmatpush1.xpose.msra.mxu0 0.0
  %5147 = vmatprep.subr.mxu0 0.0
  %5148 = vmatpush1.xpose.msra.mxu0 0.0
  %5149 = vmatprep.subr.mxu0 0.0
  %5150 = vmatpush1.xpose.msra.mxu0 0.0
  %5151 = vmatprep.subr.mxu0 0.0
  %5152 = vmatpush1.xpose.msra.mxu0 0.0
  %5153 = vmatprep.subr.mxu0 0.0
  %5154 = vmatpush1.xpose.msra.mxu0 0.0
  %5155 = vmatprep.subr.mxu0 0.0
  %5156 = vmatpush1.xpose.msra.mxu0 0.0
  %5157 = vmatprep.subr.mxu0 0.0
  %5158 = vmatpush1.xpose.msra.mxu0 0.0
  %5159 = vmatprep.subr.mxu0 0.0
  %5160 = vmatpush1.xpose.msra.mxu0 0.0
  %5161 = vmatprep.subr.mxu0 0.0
  %5162 = vmatpush1.xpose.msra.mxu0 0.0
  %5163 = vmatprep.subr.mxu0 0.0
  %5164 = vmatpush1.xpose.msra.mxu0 0.0
  %5165 = vmatprep.subr.mxu0 0.0
  %5166 = vmatpush1.xpose.msra.mxu0 0.0
  %5167 = vmatprep.subr.mxu0 0.0
  %5168 = vmatpush1.xpose.msra.mxu0 0.0
  %5169 = vmatprep.subr.mxu0 0.0
  %5170 = vmatpush1.xpose.msra.mxu0 0.0
  %5171 = vmatprep.subr.mxu0 0.0
  %5172 = vmatpush1.xpose.msra.mxu0 0.0
  %5173 = vmatprep.subr.mxu0 0.0
  %5174 = vmatpush1.xpose.msra.mxu0 0.0
  %5175 = vmatprep.subr.mxu0 0.0
  %5176 = vmatpush1.xpose.msra.mxu0 0.0
  %5177 = vmatprep.subr.mxu0 0.0
  %5178 = vmatpush1.xpose.msra.mxu0 0.0
  %5179 = vmatprep.subr.mxu0 0.0
  %5180 = vmatpush1.xpose.msra.mxu0 0.0
  %5181 = vmatprep.subr.mxu0 0.0
  %5182 = vmatpush1.xpose.msra.mxu0 0.0
  %5183 = vmatprep.subr.mxu0 0.0
  %5184 = vmatpush1.xpose.msra.mxu0 0.0
  %5185 = vmatprep.subr.mxu0 0.0
  %5186 = vmatpush1.xpose.msra.mxu0 0.0
  %5187 = vmatprep.subr.mxu0 0.0
  %5188 = vmatpush1.xpose.msra.mxu0 0.0
  %5189 = vmatprep.mubr.f32.mxu0 0.0
  %5190 = vmatmul.mubr.f32.gmra.mrb[0].mxu0 %v5120
  %v5191 = vpop.f32.mrb[0].mxu0
  %v5192 = vadd.f32 0.0, %v5191
  %v5193 = vpop.f32.mrb[0].mxu0
  %5194 = vdwg.mxu0
  %vm5195 = vcmask 64512
  %v5196 = vsel %vm5195, %v5116, -inf
  %5197 = vmax.xlane.f32.xlu0 %v5196
  %v5198 = vpop.xlane.xlu0 %5197
  %v5199 = vsel %vm5195, %v5192, -inf
  %5200 = vmax.xlane.f32.xlu0 %v5199
  %v5201 = vpop.xlane.xlu0 %5200
  %v5202 = vsub.f32 %v5116, %v5198
  %v5203 = vsub.f32 %v5192, %v5201
  %v5204 = vmul.f32 %v5202, 1.442695
  %v5205 = vpow.pop %v5204
  %v5206 = vmul.f32 %v5203, 1.442695
  %v5207 = vpow.pop %v5206
  %v5208 = vsel %vm5195, %v5205, 0.0
  %5209 = vadd.xlane.f32.xlu0 %v5208
  %v5210 = vpop.xlane.xlu0 %5209
  %v5211 = vsel %vm5195, %v5207, 0.0
  %5212 = vadd.xlane.f32.xlu0 %v5211
  %v5213 = vpop.xlane.xlu0 %5212
  %v5214 = vrcp.pop %v5210
  %v5215 = vrcp.pop %v5213
  %v5216 = vmul.f32 %v5205, %v5214
  %v5217 = vmul.f32 %v5207, %v5215
  %v5219 = vlaneseq
  %v5220 = vshrl.u32 %v5219, 7
  %v5221 = vsub.s32 0, %v5220
  %v5222 = vrot.slane %v4811, %v5221
  %v5225 = vsel %vm5195, %v5216, 0
  %5227 = vmatprep.subr.mxu0 0.0
  %5228 = vmatpush1.msra.mxu0 %v5035
  %5229 = vmatprep.subr.mxu0 0.0
  %5230 = vmatpush1.msra.mxu0 0.0
  %5231 = vmatprep.subr.mxu0 0.0
  %5232 = vmatpush1.msra.mxu0 0.0
  %5233 = vmatprep.subr.mxu0 0.0
  %5234 = vmatpush1.msra.mxu0 0.0
  %5235 = vmatprep.subr.mxu0 0.0
  %5236 = vmatpush1.msra.mxu0 0.0
  %5237 = vmatprep.subr.mxu0 0.0
  %5238 = vmatpush1.msra.mxu0 0.0
  %5239 = vmatprep.subr.mxu0 0.0
  %5240 = vmatpush1.msra.mxu0 0.0
  %5241 = vmatprep.subr.mxu0 0.0
  %5242 = vmatpush1.msra.mxu0 0.0
  %5243 = vmatprep.subr.mxu0 0.0
  %5244 = vmatpush1.msra.mxu0 0.0
  %5245 = vmatprep.subr.mxu0 0.0
  %5246 = vmatpush1.msra.mxu0 0.0
  %5247 = vmatprep.subr.mxu0 0.0
  %5248 = vmatpush1.msra.mxu0 0.0
  %5249 = vmatprep.subr.mxu0 0.0
  %5250 = vmatpush1.msra.mxu0 0.0
  %5251 = vmatprep.subr.mxu0 0.0
  %5252 = vmatpush1.msra.mxu0 0.0
  %5253 = vmatprep.subr.mxu0 0.0
  %5254 = vmatpush1.msra.mxu0 0.0
  %5255 = vmatprep.subr.mxu0 0.0
  %5256 = vmatpush1.msra.mxu0 0.0
  %5257 = vmatprep.subr.mxu0 0.0
  %5258 = vmatpush1.msra.mxu0 0.0
  %5259 = vmatprep.subr.mxu0 0.0
  %5260 = vmatpush1.msra.mxu0 0.0
  %5261 = vmatprep.subr.mxu0 0.0
  %5262 = vmatpush1.msra.mxu0 0.0
  %5263 = vmatprep.subr.mxu0 0.0
  %5264 = vmatpush1.msra.mxu0 0.0
  %5265 = vmatprep.subr.mxu0 0.0
  %5266 = vmatpush1.msra.mxu0 0.0
  %5267 = vmatprep.subr.mxu0 0.0
  %5268 = vmatpush1.msra.mxu0 0.0
  %5269 = vmatprep.subr.mxu0 0.0
  %5270 = vmatpush1.msra.mxu0 0.0
  %5271 = vmatprep.subr.mxu0 0.0
  %5272 = vmatpush1.msra.mxu0 0.0
  %5273 = vmatprep.subr.mxu0 0.0
  %5274 = vmatpush1.msra.mxu0 0.0
  %5275 = vmatprep.subr.mxu0 0.0
  %5276 = vmatpush1.msra.mxu0 0.0
  %5277 = vmatprep.subr.mxu0 0.0
  %5278 = vmatpush1.msra.mxu0 0.0
  %5279 = vmatprep.subr.mxu0 0.0
  %5280 = vmatpush1.msra.mxu0 0.0
  %5281 = vmatprep.subr.mxu0 0.0
  %5282 = vmatpush1.msra.mxu0 0.0
  %5283 = vmatprep.subr.mxu0 0.0
  %5284 = vmatpush1.msra.mxu0 0.0
  %5285 = vmatprep.subr.mxu0 0.0
  %5286 = vmatpush1.msra.mxu0 0.0
  %5287 = vmatprep.subr.mxu0 0.0
  %5288 = vmatpush1.msra.mxu0 0.0
  %5289 = vmatprep.subr.mxu0 0.0
  %5290 = vmatpush1.msra.mxu0 0.0
  %5291 = vmatprep.mubr.f32.mxu0 0.0
  %5292 = vmatmul.mubr.f32.gmra.mrb[0].mxu0 %v5225
  %v5293 = vpop.f32.mrb[0].mxu0
  %v5294 = vadd.f32 %v5222, %v5293
  %v5295 = vpop.f32.mrb[0].mxu0
  %5296 = vdwg.mxu0
  %v5298 = vsel %vm5195, %v5217, 0
  %5300 = vmatprep.subr.mxu0 0.0
  %5301 = vmatpush1.msra.mxu0 %v5040
  %5302 = vmatprep.subr.mxu0 0.0
  %5303 = vmatpush1.msra.mxu0 0.0
  %5304 = vmatprep.subr.mxu0 0.0
  %5305 = vmatpush1.msra.mxu0 0.0
  %5306 = vmatprep.subr.mxu0 0.0
  %5307 = vmatpush1.msra.mxu0 0.0
  %5308 = vmatprep.subr.mxu0 0.0
  %5309 = vmatpush1.msra.mxu0 0.0
  %5310 = vmatprep.subr.mxu0 0.0
  %5311 = vmatpush1.msra.mxu0 0.0
  %5312 = vmatprep.subr.mxu0 0.0
  %5313 = vmatpush1.msra.mxu0 0.0
  %5314 = vmatprep.subr.mxu0 0.0
  %5315 = vmatpush1.msra.mxu0 0.0
  %5316 = vmatprep.subr.mxu0 0.0
  %5317 = vmatpush1.msra.mxu0 0.0
  %5318 = vmatprep.subr.mxu0 0.0
  %5319 = vmatpush1.msra.mxu0 0.0
  %5320 = vmatprep.subr.mxu0 0.0
  %5321 = vmatpush1.msra.mxu0 0.0
  %5322 = vmatprep.subr.mxu0 0.0
  %5323 = vmatpush1.msra.mxu0 0.0
  %5324 = vmatprep.subr.mxu0 0.0
  %5325 = vmatpush1.msra.mxu0 0.0
  %5326 = vmatprep.subr.mxu0 0.0
  %5327 = vmatpush1.msra.mxu0 0.0
  %5328 = vmatprep.subr.mxu0 0.0
  %5329 = vmatpush1.msra.mxu0 0.0
  %5330 = vmatprep.subr.mxu0 0.0
  %5331 = vmatpush1.msra.mxu0 0.0
  %5332 = vmatprep.subr.mxu0 0.0
  %5333 = vmatpush1.msra.mxu0 0.0
  %5334 = vmatprep.subr.mxu0 0.0
  %5335 = vmatpush1.msra.mxu0 0.0
  %5336 = vmatprep.subr.mxu0 0.0
  %5337 = vmatpush1.msra.mxu0 0.0
  %5338 = vmatprep.subr.mxu0 0.0
  %5339 = vmatpush1.msra.mxu0 0.0
  %5340 = vmatprep.subr.mxu0 0.0
  %5341 = vmatpush1.msra.mxu0 0.0
  %5342 = vmatprep.subr.mxu0 0.0
  %5343 = vmatpush1.msra.mxu0 0.0
  %5344 = vmatprep.subr.mxu0 0.0
  %5345 = vmatpush1.msra.mxu0 0.0
  %5346 = vmatprep.subr.mxu0 0.0
  %5347 = vmatpush1.msra.mxu0 0.0
  %5348 = vmatprep.subr.mxu0 0.0
  %5349 = vmatpush1.msra.mxu0 0.0
  %5350 = vmatprep.subr.mxu0 0.0
  %5351 = vmatpush1.msra.mxu0 0.0
  %5352 = vmatprep.subr.mxu0 0.0
  %5353 = vmatpush1.msra.mxu0 0.0
  %5354 = vmatprep.subr.mxu0 0.0
  %5355 = vmatpush1.msra.mxu0 0.0
  %5356 = vmatprep.subr.mxu0 0.0
  %5357 = vmatpush1.msra.mxu0 0.0
  %5358 = vmatprep.subr.mxu0 0.0
  %5359 = vmatpush1.msra.mxu0 0.0
  %5360 = vmatprep.subr.mxu0 0.0
  %5361 = vmatpush1.msra.mxu0 0.0
  %5362 = vmatprep.subr.mxu0 0.0
  %5363 = vmatpush1.msra.mxu0 0.0
  %5364 = vmatprep.mubr.f32.mxu0 0.0
  %5365 = vmatmul.mubr.f32.gmra.mrb[0].mxu0 %v5298
  %v5366 = vpop.f32.mrb[0].mxu0
  %v5367 = vadd.f32 %v5222, %v5366
  %v5368 = vpop.f32.mrb[0].mxu0
  %5369 = vdwg.mxu0
  %vm5370 = vcmask 56320
  %5371 = vst.msk [vmem:[%s13] sm:$0xff] %vm5370, %v5294
  %5372 = vst.msk [vmem:[%s13 + $0x8] sm:$0xff] %vm5370, %v5367
  // Predicated region
  $region54: #{forward.1} parent=0 // pred_check
    _
  $region55: #{forward.1} parent=0 // pred_check_branch
    %5374 = sbr.rel (0) target = $region57
  $region56: #{forward.1} parent=0 // pred_region
    _
  $region57: #{forward.1} parent=0 // pred_fallthru
    _
  // Predicated region
  $region58: #{forward.1} parent=0 // pred_check
    _
  $region59: #{forward.1} parent=0 // pred_check_branch
    %5376 = sbr.rel (0) target = $region61
  $region60: #{forward.1} parent=0 // pred_region
    _
  $region61: #{forward.1} parent=0 // pred_fallthru
    _

</llo_original>
